<compile_context>
chip_gen: v6e
topology: v6e:2x2x1
jax: 0.10.0
libtpu: 0.0.40
codegen_flags: <defaults>
</compile_context>

<pallas_src>
import functools

import jax
import jax.numpy as jnp
from jax.experimental import pallas as pl
from jax.experimental.pallas import tpu as pltpu

# ---------------- module hyper-parameters (match TimmExtractorv2.__init__) -------------
NUM_HEADS = 12
VIT_DIM = 768                      # timm ViT-base hidden size, hard-coded as 768 in module
LAST_BLOCKS = 1
N_FEATS = VIT_DIM * LAST_BLOCKS    # self.n_feats
DIM = 256                          # self.dim (default)
LN_EPS = 1e-5                      # torch.nn.LayerNorm default


# ------------------------------- fused Pallas kernel -----------------------------------
def _fused_kernel(feat_ref, qkvk_ref, g_ref, beta_ref,
                  wcat_ref, bcat_ref, wb_ref, o_ref, x_scratch):
    """One grid step = one (tm, DIM) output tile of one of the two paths.

    grid = (path, row_tile):
      path == 0 : LayerNorm(feat tokens) -> cluster1 + cluster2                ('code')
      path == 1 : keys slab of qkv       -> folded cluster1/2 + project_head   ('code_kk')
    Per-path weights: wcat[p] = [W1[p] | wa] (C, DIM+C), wb[p] = Wb[p] (C, DIM),
    bcat[p] = [B[p] | ba]; project_head is pre-folded into the p==1 variants, so both
    paths run the same two matmuls.  Matmul operands bf16, accumulation f32; LayerNorm /
    bias math stays f32.
    """
    p = pl.program_id(0)
    D = wb_ref.shape[-1]

    # ---- path-gated input prep (pl.when => select semantics; LN only runs on path 0) ----
    @pl.when(p == 0)
    def _():
        xf = feat_ref[...].astype(jnp.float32)
        mean = jnp.mean(xf, axis=-1, keepdims=True)
        xc = xf - mean
        var = jnp.mean(xc * xc, axis=-1, keepdims=True)
        xn = xc * jax.lax.rsqrt(var + LN_EPS) * g_ref[...] + beta_ref[...]
        x_scratch[...] = xn.astype(jnp.bfloat16)

    @pl.when(p == 1)
    def _():
        x_scratch[...] = qkvk_ref[...].astype(jnp.bfloat16)

    x = x_scratch[...]

    # ---- fused [cluster1 | cluster2-stage-a] matmul, then cluster2-stage-b ---------------
    y = jnp.dot(x, wcat_ref[...], preferred_element_type=jnp.float32) + bcat_ref[...]
    lin = y[:, :D]                                          # cluster1(+proj) output + bias
    h = jnp.maximum(y[:, D:], 0.0).astype(jnp.bfloat16)     # cluster2 hidden after ReLU
    out = lin + jnp.dot(h, wb_ref[...], preferred_element_type=jnp.float32)
    o_ref[...] = out.astype(o_ref.dtype)


@functools.partial(jax.jit, static_argnames=("tm", "out_dtype"))
def _fused_forward(tokens_feat, tokens_qkv, ln_g, ln_b, w_cat, b_cat, w_b,
                   *, tm, out_dtype):
    """Runs both post-backbone paths in a single pallas_call.

    tokens_feat : (T, C)          ViT block tokens (CLS removed), any float dtype (bf16 preferred)
    tokens_qkv  : (T, 3*C)        fused qkv tokens; the K slab is selected via the BlockSpec
    w_cat       : (2, C, DIM+C)   per-path [W1 | wa], bf16
    b_cat       : (2, 1, DIM+C)   per-path [B  | ba], f32
    w_b         : (2, C, DIM)     per-path Wb, bf16
    returns     : (2, T, DIM)     [0] = code, [1] = code_kk
    """
    T, C = tokens_feat.shape
    W = w_cat.shape[-1]
    D = W - C
    assert tokens_qkv.shape == (T, 3 * C)
    assert w_cat.shape == (2, C, W) and w_b.shape == (2, C, D)
    assert b_cat.shape == (2, 1, W)
    assert C % 128 == 0 and D % 128 == 0
    assert tm == T or tm % 16 == 0
    nt = pl.cdiv(T, tm)              # no padding: last tile may be partial (clipped by Pallas)

    return pl.pallas_call(
        _fused_kernel,
        out_shape=jax.ShapeDtypeStruct((2, T, D), out_dtype),
        grid=(2, nt),
        in_specs=[
            # feat tokens: streamed only while p == 0, parked at block (0, 0) otherwise
            pl.BlockSpec((tm, C), lambda p, i: (i * (1 - p), 0)),
            # qkv tokens: last-dim block index 1 selects the K slab; parked while p == 0
            pl.BlockSpec((tm, C), lambda p, i: (i * p, 1)),
            # resident params: constant / path-only index maps, single-buffered
            pl.BlockSpec((1, C), lambda p, i: (0, 0),
                         pipeline_mode=pl.Buffered(1)),                    # ln gamma (f32)
            pl.BlockSpec((1, C), lambda p, i: (0, 0),
                         pipeline_mode=pl.Buffered(1)),                    # ln beta  (f32)
            pl.BlockSpec((None, C, W), lambda p, i: (p, 0, 0),
                         pipeline_mode=pl.Buffered(1)),                    # [W1|wa]  (bf16)
            pl.BlockSpec((None, 1, W), lambda p, i: (p, 0, 0),
                         pipeline_mode=pl.Buffered(1)),                    # [B |ba]  (f32)
            pl.BlockSpec((None, C, D), lambda p, i: (p, 0, 0),
                         pipeline_mode=pl.Buffered(1)),                    # Wb       (bf16)
        ],
        out_specs=pl.BlockSpec((None, tm, D), lambda p, i: (p, i, 0)),
        scratch_shapes=[pltpu.VMEM((tm, C), jnp.bfloat16)],                # path-selected input
        compiler_params=pltpu.CompilerParams(
            dimension_semantics=("parallel", "parallel"),
            vmem_limit_bytes=48 * 1024 * 1024),
    )(tokens_feat, tokens_qkv, ln_g, ln_b, w_cat, b_cat, w_b)


# --------------------------- one-time weight packing (per model) -----------------------
def prepare_params(params):
    """Packs / casts the module weights once (hoisted out of the per-call path).

    1x1 convs are per-token linear maps.  project_head (wp, bp) is folded into the path-1
    weights in f32 so both grid paths run the identical two-matmul kernel:
        out_p = x @ W1[p] + relu(x @ wa + ba) @ Wb[p] + B[p]
        W1[0] = w1,      Wb[0] = wb,      B[0] = b1 + bb
        W1[1] = w1 @ wp, Wb[1] = wb @ wp, B[1] = (b1 + bb) @ wp + bp
    """
    f32 = jnp.float32
    w1, wa, wb, wp = (params[k].astype(f32) for k in ("w1", "wa", "wb", "wp"))
    b1, ba, bb, bp = (params[k].astype(f32) for k in ("b1", "ba", "bb", "bp"))

    w1_kk = w1 @ wp
    wb_kk = wb @ wp
    b_code = b1 + bb
    b_kk = b_code @ wp + bp

    wa_bf = wa.astype(jnp.bfloat16)
    w_cat = jnp.stack([jnp.concatenate([w1.astype(jnp.bfloat16), wa_bf], axis=1),
                       jnp.concatenate([w1_kk.astype(jnp.bfloat16), wa_bf], axis=1)], axis=0)
    b_cat = jnp.stack([jnp.concatenate([b_code, ba], axis=1),
                       jnp.concatenate([b_kk, ba], axis=1)], axis=0)
    w_b = jnp.stack([wb.astype(jnp.bfloat16), wb_kk.astype(jnp.bfloat16)], axis=0)

    return {"ln_g": params["ln_g"].astype(f32), "ln_b": params["ln_b"].astype(f32),
            "w_cat": w_cat, "b_cat": b_cat, "w_b": w_b}


# ------------------------------- wrapper (glue in plain JAX) ---------------------------
def timm_extractor_v2_image_kk(backbone_outputs, packed, feature_name, *,
                               tm=512, out_dtype=jnp.float32):
    """Post-backbone forward of TimmExtractorv2 in mode='image_kk', proj_type='nonlinear'.

    backbone_outputs: dict with
        feature_name            -> (B, 1+N, 768)   ViT block tokens (incl. CLS), bf16 preferred
        feature_name + '_keys'  -> (B, 1+N, 2304)  fused qkv projection of that block
    packed: output of prepare_params() (call once per model, not per forward).
    """
    # is_vit: drop CLS token from every extracted feature
    outputs = {k: v[:, 1:] for k, v in backbone_outputs.items()}

    feats = outputs[feature_name]                      # (B, N, 768)
    qkv = outputs[feature_name + "_keys"]              # (B, N, 2304)
    B, N, C = feats.shape
    feat_h = feat_w = int(N ** 0.5)
    assert feat_h * feat_w == N
    assert C == N_FEATS

    # Keys layout: last dim of qkv is (3, num_heads, head_dim) flattened -> K slab = [C:2C].
    # All the reshape/permute pairs of the reference forward cancel at the token level, so the
    # per-pixel channel vector of image_kk is exactly qkv[b, n, C:2C].  The slab is selected
    # inside the kernel's BlockSpec (block index 1 along the last dim), not copied here.
    T = B * N
    tokens_feat = feats.reshape(T, C)
    tokens_qkv = qkv.reshape(T, 3 * C)

    # No padding: grid row axis is cdiv(T, tm) and the last tile (if partial) is clipped by
    # Pallas on load/store.  The tile adapts down for tiny inputs.
    tm_eff = T if T <= tm else tm

    # TODO(synk): Dropout2d(p=0.1) is stochastic in train mode; eval-mode (identity) is used here.
    both = _fused_forward(tokens_feat, tokens_qkv,
                          packed["ln_g"], packed["ln_b"],
                          packed["w_cat"], packed["b_cat"], packed["w_b"],
                          tm=tm_eff, out_dtype=out_dtype)
    code, code_kk = both[0], both[1]

    # Mirrors the module's `outputs[list(outputs.keys())[-1]][:, 1:, :]` quirk verbatim
    # (second CLS-style drop on an already-CLS-dropped tensor; key-order dependent).
    last_key = list(outputs.keys())[-1]
    return {
        feature_name: code.reshape(B, feat_h * feat_w, -1),
        f"{feature_name}_last": outputs[last_key][:, 1:, :],
        "image_kk": code_kk.reshape(B, feat_h * feat_w, -1),
    }


# ------------------------------- pure-JAX reference (f32) ------------------------------
def _reference(tokens_feat, tokens_keys, p):
    x = tokens_feat
    mean = x.mean(-1, keepdims=True)
    var = ((x - mean) ** 2).mean(-1, keepdims=True)
    xn = (x - mean) / jnp.sqrt(var + LN_EPS) * p["ln_g"][0] + p["ln_b"][0]
    code = (xn @ p["w1"] + p["b1"][0]
            + jnp.maximum(xn @ p["wa"] + p["ba"][0], 0) @ p["wb"] + p["bb"][0])
    y = tokens_keys
    ck = (y @ p["w1"] + p["b1"][0]
          + jnp.maximum(y @ p["wa"] + p["ba"][0], 0) @ p["wb"] + p["bb"][0])
    ck = ck @ p["wp"] + p["bp"][0]
    return code, ck


# ------------------------------------- main ---------------------------------------------
if __name__ == "__main__":
    key = jax.random.PRNGKey(0)
    ks = jax.random.split(key, 12)

    B, feat_hw = 2, 8
    N = feat_hw * feat_hw          # 64 tokens per image after CLS removal
    C = N_FEATS                    # 768

    # deterministic synthetic parameters (shapes from module __init__)
    params = {
        "ln_g": (1.0 + 0.1 * jax.random.normal(ks[10], (1, C))).astype(jnp.float32),
        "ln_b": (0.1 * jax.random.normal(ks[11], (1, C))).astype(jnp.float32),
        "w1": 0.02 * jax.random.normal(ks[0], (C, DIM), jnp.float32),        # cluster1 Conv2d 1x1
        "b1": 0.02 * jax.random.normal(ks[1], (1, DIM), jnp.float32),
        "wa": 0.02 * jax.random.normal(ks[2], (C, C), jnp.float32),          # cluster2 Conv2d 1x1 (a)
        "ba": 0.02 * jax.random.normal(ks[3], (1, C), jnp.float32),
        "wb": 0.02 * jax.random.normal(ks[4], (C, DIM), jnp.float32),        # cluster2 Conv2d 1x1 (b)
        "bb": 0.02 * jax.random.normal(ks[5], (1, DIM), jnp.float32),
        "wp": 0.02 * jax.random.normal(ks[6], (DIM, DIM), jnp.float32),      # project_head Linear
        "bp": 0.02 * jax.random.normal(ks[7], (1, DIM), jnp.float32),
    }
    packed = prepare_params(params)    # once per model, not per forward call

    # synthetic backbone outputs (ViT block tokens incl. CLS + fused qkv), handed off in bf16
    feats_full = jax.random.normal(ks[8], (B, N + 1, C), jnp.float32).astype(jnp.bfloat16)
    qkv_full = jax.random.normal(ks[9], (B, N + 1, 3 * C), jnp.float32).astype(jnp.bfloat16)
    backbone_outputs = {"vit_block12": feats_full, "vit_block12_keys": qkv_full}

    out = timm_extractor_v2_image_kk(backbone_outputs, packed, "vit_block12")
    out = jax.tree_util.tree_map(jax.block_until_ready, out)

    # correctness check vs. pure-JAX f32 reference (bf16 matmul operands -> relaxed tolerance)
    tokens_feat = feats_full[:, 1:].reshape(B * N, C).astype(jnp.float32)
    tokens_keys = qkv_full[:, 1:, C:2 * C].reshape(B * N, C).astype(jnp.float32)
    ref_code, ref_kk = _reference(tokens_feat, tokens_keys, params)

    assert out["vit_block12"].shape == (B, N, DIM)
    assert out["image_kk"].shape == (B, N, DIM)
    assert out["vit_block12_last"].shape == (B, N - 1, 3 * C)
    assert jnp.allclose(out["vit_block12"].reshape(B * N, DIM), ref_code,
                        atol=5e-2, rtol=5e-2)
    assert jnp.allclose(out["image_kk"].reshape(B * N, DIM), ref_kk,
                        atol=5e-2, rtol=5e-2)

    print("KERNEL_OK")
</pallas_src>

<mosaic_0001>
module attributes {stable_mosaic.version = 11 : i64} {
  func.func @_fused_kernel(%arg0: i32, %arg1: i32, %arg2: memref<128x768xbf16, #tpu.memory_space<vmem>>, %arg3: memref<128x768xbf16, #tpu.memory_space<vmem>>, %arg4: memref<1x768xf32, #tpu.memory_space<vmem>>, %arg5: memref<1x768xf32, #tpu.memory_space<vmem>>, %arg6: memref<1x768x1024xbf16, #tpu.memory_space<vmem>>, %arg7: memref<1x1x1024xf32, #tpu.memory_space<vmem>>, %arg8: memref<1x768x256xbf16, #tpu.memory_space<vmem>>, %arg9: memref<1x128x256xf32, #tpu.memory_space<vmem>>, %arg10: memref<128x768xbf16, #tpu.memory_space<vmem>>) attributes {dimension_semantics = [#tpu.dimension_semantics<parallel>, #tpu.dimension_semantics<parallel>], iteration_bounds = array<i64: 2, 1>, scalar_prefetch = 0 : i64, scratch_operands = 1 : i64, tpu.core_type = #tpu.core_type<tc>, window_params = [{transform_indices = @transform_0, window_bounds = array<i64: 128, 768>}, {transform_indices = @transform_1, window_bounds = array<i64: 128, 768>}, {pipeline_mode = #tpu.pipeline_mode<synchronous>, transform_indices = @transform_2, window_bounds = array<i64: 1, 768>}, {pipeline_mode = #tpu.pipeline_mode<synchronous>, transform_indices = @transform_3, window_bounds = array<i64: 1, 768>}, {pipeline_mode = #tpu.pipeline_mode<synchronous>, transform_indices = @transform_4, window_bounds = array<i64: 1, 768, 1024>}, {pipeline_mode = #tpu.pipeline_mode<synchronous>, transform_indices = @transform_5, window_bounds = array<i64: 1, 1, 1024>}, {pipeline_mode = #tpu.pipeline_mode<synchronous>, transform_indices = @transform_6, window_bounds = array<i64: 1, 768, 256>}, {transform_indices = @transform_7, window_bounds = array<i64: 1, 128, 256>}]} {
    %c0_i32 = arith.constant 0 : i32
    %0 = arith.cmpi eq, %arg0, %c0_i32 : i32
    %1 = arith.extui %0 : i1 to i32
    %c0_i32_0 = arith.constant 0 : i32
    %2 = arith.cmpi ne, %1, %c0_i32_0 : i32
    scf.if %2 {
      %c0_17 = arith.constant 0 : index
      %c0_18 = arith.constant 0 : index
      %26 = vector.load %arg2[%c0_17, %c0_18] : memref<128x768xbf16, #tpu.memory_space<vmem>>, vector<128x768xbf16>
      %27 = arith.extf %26 : vector<128x768xbf16> to vector<128x768xf32>
      %cst_19 = arith.constant dense<0.000000e+00> : vector<128xf32>
      %28 = vector.multi_reduction <add>, %27, %cst_19 [1] : vector<128x768xf32> to vector<128xf32>
      %29 = vector.shape_cast %28 : vector<128xf32> to vector<128x1xf32>
      %cst_20 = arith.constant 7.680000e+02 : f32
      %30 = vector.broadcast %cst_20 : f32 to vector<128x1xf32>
      %31 = arith.divf %29, %30 : vector<128x1xf32>
      %32 = vector.broadcast %31 : vector<128x1xf32> to vector<128x768xf32>
      %33 = arith.subf %27, %32 : vector<128x768xf32>
      %34 = arith.mulf %33, %33 : vector<128x768xf32>
      %cst_21 = arith.constant dense<0.000000e+00> : vector<128xf32>
      %35 = vector.multi_reduction <add>, %34, %cst_21 [1] : vector<128x768xf32> to vector<128xf32>
      %36 = vector.shape_cast %35 : vector<128xf32> to vector<128x1xf32>
      %cst_22 = arith.constant 7.680000e+02 : f32
      %37 = vector.broadcast %cst_22 : f32 to vector<128x1xf32>
      %38 = arith.divf %36, %37 : vector<128x1xf32>
      %cst_23 = arith.constant 9.99999974E-6 : f32
      %39 = vector.broadcast %cst_23 : f32 to vector<128x1xf32>
      %40 = arith.addf %38, %39 : vector<128x1xf32>
      %41 = math.rsqrt %40 : vector<128x1xf32>
      %42 = vector.broadcast %41 : vector<128x1xf32> to vector<128x768xf32>
      %43 = arith.mulf %33, %42 : vector<128x768xf32>
      %c0_24 = arith.constant 0 : index
      %c0_25 = arith.constant 0 : index
      %44 = vector.load %arg4[%c0_24, %c0_25] : memref<1x768xf32, #tpu.memory_space<vmem>>, vector<1x768xf32>
      %45 = vector.broadcast %44 : vector<1x768xf32> to vector<128x768xf32>
      %46 = arith.mulf %43, %45 : vector<128x768xf32>
      %c0_26 = arith.constant 0 : index
      %c0_27 = arith.constant 0 : index
      %47 = vector.load %arg5[%c0_26, %c0_27] : memref<1x768xf32, #tpu.memory_space<vmem>>, vector<1x768xf32>
      %48 = vector.broadcast %47 : vector<1x768xf32> to vector<128x768xf32>
      %49 = arith.addf %46, %48 : vector<128x768xf32>
      %50 = arith.truncf %49 : vector<128x768xf32> to vector<128x768xbf16>
      %c0_28 = arith.constant 0 : index
      %c0_29 = arith.constant 0 : index
      %51 = vector.load %arg10[%c0_28, %c0_29] : memref<128x768xbf16, #tpu.memory_space<vmem>>, vector<128x768xbf16>
      tpu.vector_store %arg10[%c0_28, %c0_29], %50 {strides = array<i32>} : memref<128x768xbf16, #tpu.memory_space<vmem>>, vector<128x768xbf16>,
    } else {
    }
    %c1_i32 = arith.constant 1 : i32
    %3 = arith.cmpi eq, %arg0, %c1_i32 : i32
    %4 = arith.extui %3 : i1 to i32
    %c0_i32_1 = arith.constant 0 : i32
    %5 = arith.cmpi ne, %4, %c0_i32_1 : i32
    scf.if %5 {
      %c0_17 = arith.constant 0 : index
      %c0_18 = arith.constant 0 : index
      %26 = vector.load %arg3[%c0_17, %c0_18] : memref<128x768xbf16, #tpu.memory_space<vmem>>, vector<128x768xbf16>
      %c0_19 = arith.constant 0 : index
      %c0_20 = arith.constant 0 : index
      %27 = vector.load %arg10[%c0_19, %c0_20] : memref<128x768xbf16, #tpu.memory_space<vmem>>, vector<128x768xbf16>
      tpu.vector_store %arg10[%c0_19, %c0_20], %26 {strides = array<i32>} : memref<128x768xbf16, #tpu.memory_space<vmem>>, vector<128x768xbf16>,
    } else {
    }
    %c0 = arith.constant 0 : index
    %c0_2 = arith.constant 0 : index
    %6 = vector.load %arg10[%c0, %c0_2] : memref<128x768xbf16, #tpu.memory_space<vmem>>, vector<128x768xbf16>
    %c0_3 = arith.constant 0 : index
    %c0_4 = arith.constant 0 : index
    %c0_5 = arith.constant 0 : index
    %7 = vector.load %arg6[%c0_3, %c0_4, %c0_5] : memref<1x768x1024xbf16, #tpu.memory_space<vmem>>, vector<1x768x1024xbf16>
    %8 = vector.shape_cast %7 : vector<1x768x1024xbf16> to vector<768x1024xbf16>
    %cst = arith.constant dense<0.000000e+00> : vector<128x1024xf32>
    %9 = tpu.matmul %6, %8, %cst {dimension_numbers = #tpu.dot_dimension_numbers<[1], [0], [0], [1], [0, 0, 1, 1], [], []>} : vector<128x768xbf16>, vector<768x1024xbf16>, vector<128x1024xf32> -> vector<128x1024xf32>
    %c0_6 = arith.constant 0 : index
    %c0_7 = arith.constant 0 : index
    %c0_8 = arith.constant 0 : index
    %10 = vector.load %arg7[%c0_6, %c0_7, %c0_8] : memref<1x1x1024xf32, #tpu.memory_space<vmem>>, vector<1x1x1024xf32>
    %11 = vector.shape_cast %10 : vector<1x1x1024xf32> to vector<1x1024xf32>
    %12 = vector.broadcast %11 : vector<1x1024xf32> to vector<128x1024xf32>
    %13 = arith.addf %9, %12 : vector<128x1024xf32>
    %14 = vector.extract_strided_slice %13 {offsets = [0, 0], sizes = [128, 256], strides = [1, 1]} : vector<128x1024xf32> to vector<128x256xf32>
    %15 = vector.extract_strided_slice %13 {offsets = [0, 256], sizes = [128, 768], strides = [1, 1]} : vector<128x1024xf32> to vector<128x768xf32>
    %cst_9 = arith.constant 0.000000e+00 : f32
    %16 = vector.broadcast %cst_9 : f32 to vector<128x768xf32>
    %17 = arith.maximumf %15, %16 : vector<128x768xf32>
    %18 = arith.truncf %17 : vector<128x768xf32> to vector<128x768xbf16>
    %c0_10 = arith.constant 0 : index
    %c0_11 = arith.constant 0 : index
    %c0_12 = arith.constant 0 : index
    %19 = vector.load %arg8[%c0_10, %c0_11, %c0_12] : memref<1x768x256xbf16, #tpu.memory_space<vmem>>, vector<1x768x256xbf16>
    %20 = vector.shape_cast %19 : vector<1x768x256xbf16> to vector<768x256xbf16>
    %cst_13 = arith.constant dense<0.000000e+00> : vector<128x256xf32>
    %21 = tpu.matmul %18, %20, %cst_13 {dimension_numbers = #tpu.dot_dimension_numbers<[1], [0], [0], [1], [0, 0, 1, 1], [], []>} : vector<128x768xbf16>, vector<768x256xbf16>, vector<128x256xf32> -> vector<128x256xf32>
    %22 = arith.addf %14, %21 : vector<128x256xf32>
    %c0_14 = arith.constant 0 : index
    %c0_15 = arith.constant 0 : index
    %c0_16 = arith.constant 0 : index
    %23 = vector.load %arg9[%c0_14, %c0_15, %c0_16] : memref<1x128x256xf32, #tpu.memory_space<vmem>>, vector<1x128x256xf32>
    %24 = vector.shape_cast %23 : vector<1x128x256xf32> to vector<128x256xf32>
    %25 = vector.shape_cast %22 : vector<128x256xf32> to vector<1x128x256xf32>
    tpu.vector_store %arg9[%c0_14, %c0_15, %c0_16], %25 {strides = array<i32>} : memref<1x128x256xf32, #tpu.memory_space<vmem>>, vector<1x128x256xf32>,
    return
  }
  func.func @transform_0(%arg0: i32, %arg1: i32) -> (i32, i32) {
    %c1_i32 = arith.constant 1 : i32
    %0 = arith.subi %c1_i32, %arg0 : i32
    %1 = arith.muli %arg1, %0 : i32
    %c0_i32 = arith.constant 0 : i32
    %c0_i32_0 = arith.constant 0 : i32
    return %1, %c0_i32 : i32, i32
  }
  func.func @transform_1(%arg0: i32, %arg1: i32) -> (i32, i32) {
    %0 = arith.muli %arg1, %arg0 : i32
    %c1_i32 = arith.constant 1 : i32
    %c0_i32 = arith.constant 0 : i32
    return %0, %c1_i32 : i32, i32
  }
  func.func @transform_2(%arg0: i32, %arg1: i32) -> (i32, i32) {
    %c0_i32 = arith.constant 0 : i32
    %c0_i32_0 = arith.constant 0 : i32
    %c0_i32_1 = arith.constant 0 : i32
    return %c0_i32, %c0_i32_0 : i32, i32
  }
  func.func @transform_3(%arg0: i32, %arg1: i32) -> (i32, i32) {
    %c0_i32 = arith.constant 0 : i32
    %c0_i32_0 = arith.constant 0 : i32
    %c0_i32_1 = arith.constant 0 : i32
    return %c0_i32, %c0_i32_0 : i32, i32
  }
  func.func @transform_4(%arg0: i32, %arg1: i32) -> (i32, i32, i32) {
    %c0_i32 = arith.constant 0 : i32
    %c0_i32_0 = arith.constant 0 : i32
    %c0_i32_1 = arith.constant 0 : i32
    return %arg0, %c0_i32, %c0_i32_0 : i32, i32, i32
  }
  func.func @transform_5(%arg0: i32, %arg1: i32) -> (i32, i32, i32) {
    %c0_i32 = arith.constant 0 : i32
    %c0_i32_0 = arith.constant 0 : i32
    %c0_i32_1 = arith.constant 0 : i32
    return %arg0, %c0_i32, %c0_i32_0 : i32, i32, i32
  }
  func.func @transform_6(%arg0: i32, %arg1: i32) -> (i32, i32, i32) {
    %c0_i32 = arith.constant 0 : i32
    %c0_i32_0 = arith.constant 0 : i32
    %c0_i32_1 = arith.constant 0 : i32
    return %arg0, %c0_i32, %c0_i32_0 : i32, i32, i32
  }
  func.func @transform_7(%arg0: i32, %arg1: i32) -> (i32, i32, i32) {
    %c0_i32 = arith.constant 0 : i32
    %c0_i32_0 = arith.constant 0 : i32
    return %arg0, %arg1, %c0_i32 : i32, i32, i32
  }
}

</mosaic_0001>

<llo_original>
// kernel: _fused_forward.1
$region0: #{_fused_forward.1}
  #allocation0 [shape = 'u32[]', space=smem, size = 0x4, offset = 0x4, fixed_abs, tag = 'smem constant byte address 0x4 - core index']
  #allocation1 [shape = 'u32[144,128]{1,0:T(1,128)}', space=vmem, size = 0x12000, scoped, tag = 'internal scratch']
  #allocation2 [shape = 'bf16[128,768]{1,0:T(8,128)(2,1)}', space=vmem, size = 0x30000, scoped, tag = 'scratch operand']
  %s0 = inlined_call_operand.hbm [shape: bf16[128,768], index: 0, kind: input, shape index: {}]
  %s1 = inlined_call_operand.hbm [shape: bf16[128,2304], index: 1, kind: input, shape index: {}]
  %s2 = inlined_call_operand.hbm [shape: f32[1,768], index: 2, kind: input, shape index: {}]
  %s3 = inlined_call_operand.hbm [shape: f32[1,768], index: 3, kind: input, shape index: {}]
  %s4 = inlined_call_operand.hbm [shape: bf16[2,768,1024], index: 4, kind: input, shape index: {}]
  %s5 = inlined_call_operand.hbm [shape: f32[2,1,1024], index: 5, kind: input, shape index: {}]
  %s6 = inlined_call_operand.hbm [shape: bf16[2,768,256], index: 6, kind: input, shape index: {}]
  %s7 = inlined_call_operand.hbm [shape: f32[2,128,256], index: 7, kind: output, shape index: {}]
  %s8 = sld [smem:[#allocation0]]
  $region97: #{_fused_forward.1} parent=0
    _
  %s10 = ssub.s32 1, %s8
  %s11 = scalar_select 0, %s10, %s8
  $region1: #{_fused_forward.1} parent=0
    #allocation3 [shape = 'u8[393216]{0}', space=vmem, size = 0x60000, scoped, tag = 'input window, operand 0']
    #allocation4 [shape = 's32[2]{0}', space=sflag, size = 0x8, scoped, tag = 'scoped memory for _fused_forward.1']
    #allocation5 [shape = 's32[2]{0}', space=sflag, size = 0x8, scoped, tag = 'scoped memory for _fused_forward.1']
    #allocation6 [shape = 'u8[393216]{0}', space=vmem, size = 0x60000, scoped, tag = 'input window, operand 1']
    #allocation7 [shape = 's32[2]{0}', space=sflag, size = 0x8, scoped, tag = 'scoped memory for _fused_forward.1']
    #allocation8 [shape = 'u8[3072]{0}', space=vmem, size = 0xc00, scoped, tag = 'input window, operand 2, single buffered']
    #allocation9 [shape = 'u8[3072]{0}', space=vmem, size = 0xc00, scoped, tag = 'input window, operand 3, single buffered']
    #allocation10 [shape = 's32[1]{0}', space=sflag, size = 0x4, scoped, tag = 'scoped memory for _fused_forward.1']
    #allocation11 [shape = 'u8[1572864]{0}', space=vmem, size = 0x180000, scoped, tag = 'input window, operand 4, single buffered']
    #allocation12 [shape = 'u8[4096]{0}', space=vmem, size = 0x1000, scoped, tag = 'input window, operand 5, single buffered']
    #allocation13 [shape = 's32[1]{0}', space=sflag, size = 0x4, scoped, tag = 'scoped memory for _fused_forward.1']
    #allocation14 [shape = 'u8[393216]{0}', space=vmem, size = 0x60000, scoped, tag = 'input window, operand 6, single buffered']
    #allocation15 [shape = 'u8[262144]{0}', space=vmem, size = 0x40000, scoped, tag = 'output window, operand 0']
    %12 = vsyncpa [#allocation4], 0
    %s13 = scalar_lea.sflag [#allocation4], 1
    %14 = vsyncpa %s13, 0
    %15 = vsyncpa [#allocation7], 0
    %s16 = scalar_lea.sflag [#allocation7], 1
    %17 = vsyncpa %s16, 0
    %18 = vsyncpa [#allocation10], 0
    %19 = vsyncpa [#allocation13], 0
    %20 = vsyncpa [#allocation5], 0
    %s21 = scalar_lea.sflag [#allocation5], 1
    %22 = vsyncpa %s21, 0
    loop: start=0, step=1, limit=4
    $region2: #{_fused_forward.1} parent=1 // loop_pre_header
      _
    $region3: #{_fused_forward.1} parent=1 // loop_header
      %s24 = sphi 0, %s28
      %p25 = scmp.ge.s32.totalorder %s24, 4
      %s31 = sphi 0, %s43
      %s32 = sphi 0, %s39
      %s33 = sphi 0, %s31
      %s34 = sphi 0, %s32
      %s35 = sphi 0, %s33
      %s36 = sphi 0, %s34
      %s50 = sphi 0, %s52
      %s53 = sphi 0, %s50
      %s54 = sphi 0, %s53
      %s70 = sphi 0, %s54
      %s78 = sphi 0, %s80
      %s81 = sphi 0, %s78
      %s82 = sphi 0, %s81
      %s98 = sphi 0, %s82
      %s102 = sphi 0, %s102
      %s104 = sphi 0, %s102
      %s105 = sphi 0, %s104
      %s119 = sphi 0, %s105
      %s123 = sphi 0, %s123
      %s125 = sphi 0, %s123
      %s126 = sphi 0, %s125
      %s140 = sphi 0, %s126
      %s146 = sphi 0, %s148
      %s149 = sphi 0, %s146
      %s150 = sphi 0, %s149
      %s166 = sphi 0, %s150
      %s172 = sphi 0, %s174
      %s175 = sphi 0, %s172
      %s176 = sphi 0, %s175
      %s192 = sphi 0, %s176
      %s198 = sphi 0, %s200
      %s201 = sphi 0, %s198
      %s202 = sphi 0, %s201
      %s218 = sphi 0, %s202
      %s226 = sphi 0, %s228
      %s229 = sphi 0, %s226
      %s230 = sphi 0, %s229
      %s246 = sphi 0, %s230
    $region4: #{_fused_forward.1} parent=1 // loop_header_branch
      %27 = sbr.rel (%p25) target = $region8
    $region5: #{_fused_forward.1} parent=1 // loop_body
      %s29 = ssub.s32 %s24, 1
      %s30 = ssub.s32 %s24, 2
      %s37 = sadd.s32 1, %s32
      %p38 = scmp.ge.s32.totalorder %s37, 1
      %s39 = scalar_select %p38, 0, %s37
      %s40 = sadd.s32 1, %s31
      %s41 = scalar_select %p38, %s40, %s31
      %p42 = scmp.ge.s32.totalorder %s41, 2
      %s43 = scalar_select %p42, 0, %s41
      %s44 = ssub.s32 1, %s31
      %s45 = smul.u32 %s32, %s44
      %s46 = ssub.s32 1, %s43
      %s47 = smul.u32 %s39, %s46
      %s48 = ssub.s32 %s45, %s47
      %p49 = scmp.eq.s32.totalorder %s48, 0
      %s51 = sadd.s32 %s50, 1
      %s52 = scalar_select %p49, %s50, %s51
      %p55 = pneg %p49
      %p56 = scmp.eq.s32.totalorder %s24, 1
      %p57 = por %p55, %p56
      %p58 = scmp.ne.s32.totalorder %s50, %s53
      %p59 = scmp.eq.s32.totalorder %s24, 0
      %p60 = por %p58, %p59
      %p61 = scmp.ne.s32.totalorder %s50, %s53
      %p62 = scmp.eq.s32.totalorder %s29, 1
      %p63 = por %p61, %p62
      %p64 = scmp.ne.s32.totalorder %s53, %s54
      %p65 = scmp.eq.s32.totalorder %s29, 0
      %p66 = por %p64, %p65
      %p67 = scmp.ne.s32.totalorder %s53, %s54
      %p68 = scmp.eq.s32.totalorder %s30, 1
      %p69 = por %p67, %p68
      %p71 = scmp.ne.s32.totalorder %s54, %s70
      %p72 = scmp.eq.s32.totalorder %s30, 0
      %p73 = por %p71, %p72
      %s74 = smul.u32 %s32, %s31
      %s75 = smul.u32 %s39, %s43
      %s76 = ssub.s32 %s74, %s75
      %p77 = scmp.eq.s32.totalorder %s76, 0
      %s79 = sadd.s32 %s78, 1
      %s80 = scalar_select %p77, %s78, %s79
      %p83 = pneg %p77
      %p84 = scmp.eq.s32.totalorder %s24, 1
      %p85 = por %p83, %p84
      %p86 = scmp.ne.s32.totalorder %s78, %s81
      %p87 = scmp.eq.s32.totalorder %s24, 0
      %p88 = por %p86, %p87
      %p89 = scmp.ne.s32.totalorder %s78, %s81
      %p90 = scmp.eq.s32.totalorder %s29, 1
      %p91 = por %p89, %p90
      %p92 = scmp.ne.s32.totalorder %s81, %s82
      %p93 = scmp.eq.s32.totalorder %s29, 0
      %p94 = por %p92, %p93
      %p95 = scmp.ne.s32.totalorder %s81, %s82
      %p96 = scmp.eq.s32.totalorder %s30, 1
      %p97 = por %p95, %p96
      %p99 = scmp.ne.s32.totalorder %s82, %s98
      %p100 = scmp.eq.s32.totalorder %s30, 0
      %p101 = por %p99, %p100
      %s103 = sadd.s32 %s102, 1
      %p106 = scmp.eq.s32.totalorder %s24, 1
      %p107 = scmp.ne.s32.totalorder %s102, %s104
      %p108 = scmp.eq.s32.totalorder %s24, 0
      %p109 = por %p107, %p108
      %p110 = scmp.ne.s32.totalorder %s102, %s104
      %p111 = scmp.eq.s32.totalorder %s29, 1
      %p112 = por %p110, %p111
      %p113 = scmp.ne.s32.totalorder %s104, %s105
      %p114 = scmp.eq.s32.totalorder %s29, 0
      %p115 = por %p113, %p114
      %p116 = scmp.ne.s32.totalorder %s104, %s105
      %p117 = scmp.eq.s32.totalorder %s30, 1
      %p118 = por %p116, %p117
      %p120 = scmp.ne.s32.totalorder %s105, %s119
      %p121 = scmp.eq.s32.totalorder %s30, 0
      %p122 = por %p120, %p121
      %s124 = sadd.s32 %s123, 1
      %p127 = scmp.eq.s32.totalorder %s24, 1
      %p128 = scmp.ne.s32.totalorder %s123, %s125
      %p129 = scmp.eq.s32.totalorder %s24, 0
      %p130 = por %p128, %p129
      %p131 = scmp.ne.s32.totalorder %s123, %s125
      %p132 = scmp.eq.s32.totalorder %s29, 1
      %p133 = por %p131, %p132
      %p134 = scmp.ne.s32.totalorder %s125, %s126
      %p135 = scmp.eq.s32.totalorder %s29, 0
      %p136 = por %p134, %p135
      %p137 = scmp.ne.s32.totalorder %s125, %s126
      %p138 = scmp.eq.s32.totalorder %s30, 1
      %p139 = por %p137, %p138
      %p141 = scmp.ne.s32.totalorder %s126, %s140
      %p142 = scmp.eq.s32.totalorder %s30, 0
      %p143 = por %p141, %p142
      %s144 = ssub.s32 %s31, %s43
      %p145 = scmp.eq.s32.totalorder %s144, 0
      %s147 = sadd.s32 %s146, 1
      %s148 = scalar_select %p145, %s146, %s147
      %p151 = pneg %p145
      %p152 = scmp.eq.s32.totalorder %s24, 1
      %p153 = por %p151, %p152
      %p154 = scmp.ne.s32.totalorder %s146, %s149
      %p155 = scmp.eq.s32.totalorder %s24, 0
      %p156 = por %p154, %p155
      %p157 = scmp.ne.s32.totalorder %s146, %s149
      %p158 = scmp.eq.s32.totalorder %s29, 1
      %p159 = por %p157, %p158
      %p160 = scmp.ne.s32.totalorder %s149, %s150
      %p161 = scmp.eq.s32.totalorder %s29, 0
      %p162 = por %p160, %p161
      %p163 = scmp.ne.s32.totalorder %s149, %s150
      %p164 = scmp.eq.s32.totalorder %s30, 1
      %p165 = por %p163, %p164
      %p167 = scmp.ne.s32.totalorder %s150, %s166
      %p168 = scmp.eq.s32.totalorder %s30, 0
      %p169 = por %p167, %p168
      %s170 = ssub.s32 %s31, %s43
      %p171 = scmp.eq.s32.totalorder %s170, 0
      %s173 = sadd.s32 %s172, 1
      %s174 = scalar_select %p171, %s172, %s173
      %p177 = pneg %p171
      %p178 = scmp.eq.s32.totalorder %s24, 1
      %p179 = por %p177, %p178
      %p180 = scmp.ne.s32.totalorder %s172, %s175
      %p181 = scmp.eq.s32.totalorder %s24, 0
      %p182 = por %p180, %p181
      %p183 = scmp.ne.s32.totalorder %s172, %s175
      %p184 = scmp.eq.s32.totalorder %s29, 1
      %p185 = por %p183, %p184
      %p186 = scmp.ne.s32.totalorder %s175, %s176
      %p187 = scmp.eq.s32.totalorder %s29, 0
      %p188 = por %p186, %p187
      %p189 = scmp.ne.s32.totalorder %s175, %s176
      %p190 = scmp.eq.s32.totalorder %s30, 1
      %p191 = por %p189, %p190
      %p193 = scmp.ne.s32.totalorder %s176, %s192
      %p194 = scmp.eq.s32.totalorder %s30, 0
      %p195 = por %p193, %p194
      %s196 = ssub.s32 %s31, %s43
      %p197 = scmp.eq.s32.totalorder %s196, 0
      %s199 = sadd.s32 %s198, 1
      %s200 = scalar_select %p197, %s198, %s199
      %p203 = pneg %p197
      %p204 = scmp.eq.s32.totalorder %s24, 1
      %p205 = por %p203, %p204
      %p206 = scmp.ne.s32.totalorder %s198, %s201
      %p207 = scmp.eq.s32.totalorder %s24, 0
      %p208 = por %p206, %p207
      %p209 = scmp.ne.s32.totalorder %s198, %s201
      %p210 = scmp.eq.s32.totalorder %s29, 1
      %p211 = por %p209, %p210
      %p212 = scmp.ne.s32.totalorder %s201, %s202
      %p213 = scmp.eq.s32.totalorder %s29, 0
      %p214 = por %p212, %p213
      %p215 = scmp.ne.s32.totalorder %s201, %s202
      %p216 = scmp.eq.s32.totalorder %s30, 1
      %p217 = por %p215, %p216
      %p219 = scmp.ne.s32.totalorder %s202, %s218
      %p220 = scmp.eq.s32.totalorder %s30, 0
      %p221 = por %p219, %p220
      %s222 = ssub.s32 %s31, %s43
      %s223 = ssub.s32 %s32, %s39
      %s224 = sor.u32 %s222, %s223
      %p225 = scmp.eq.s32.totalorder %s224, 0
      %s227 = sadd.s32 %s226, 1
      %s228 = scalar_select %p225, %s226, %s227
      %p231 = pneg %p225
      %p232 = scmp.eq.s32.totalorder %s24, 1
      %p233 = por %p231, %p232
      %p234 = scmp.ne.s32.totalorder %s226, %s229
      %p235 = scmp.eq.s32.totalorder %s24, 0
      %p236 = por %p234, %p235
      %p237 = scmp.ne.s32.totalorder %s226, %s229
      %p238 = scmp.eq.s32.totalorder %s29, 1
      %p239 = por %p237, %p238
      %p240 = scmp.ne.s32.totalorder %s229, %s230
      %p241 = scmp.eq.s32.totalorder %s29, 0
      %p242 = por %p240, %p241
      %p243 = scmp.ne.s32.totalorder %s229, %s230
      %p244 = scmp.eq.s32.totalorder %s30, 1
      %p245 = por %p243, %p244
      %p247 = scmp.ne.s32.totalorder %s230, %s246
      %p248 = scmp.eq.s32.totalorder %s30, 0
      %p249 = por %p247, %p248
      %p250 = scmp.le.s32.totalorder 1, %s24
      %p251 = scmp.lt.s32.totalorder %s24, 3
      %p252 = pnand %p250, %p251
      %p253 = pneg %p252
      // Predicated region
      $region9: #{_fused_forward.1} parent=5 // pred_check
        _
      $region10: #{_fused_forward.1} parent=5 // pred_check_branch
        %255 = sbr.rel (%p252) target = $region12
      $region11: #{_fused_forward.1} parent=5 // pred_region
        %s256 = ssub.s32 %s24, 1
        // Predicated region
        $region13: #{_fused_forward.1} parent=11 // pred_check
          %p257 = pneg %p115
        $region14: #{_fused_forward.1} parent=11 // pred_check_branch
          %259 = sbr.rel (%p257) target = $region16
        $region15: #{_fused_forward.1} parent=11 // pred_region
          %s261 = ssub.s32 96, 96
          %262 = vsyncadd [#allocation7], %s261
          %s264 = sshll.u32 [#allocation8], 4
          %s265 = int_to_ptr.vmem [resolvable:$true] %s264
          %267 = dma.hbm_to_vmem [thread:$0]  %s2, 96, %s265, [#allocation7]
        $region16: #{_fused_forward.1} parent=11 // pred_fallthru
          _
        // Predicated region
        $region17: #{_fused_forward.1} parent=11 // pred_check
          %p268 = pneg %p136
        $region18: #{_fused_forward.1} parent=11 // pred_check_branch
          %270 = sbr.rel (%p268) target = $region20
        $region19: #{_fused_forward.1} parent=11 // pred_region
          %s272 = ssub.s32 96, 96
          %273 = vsyncadd [#allocation10], %s272
          %s275 = sshll.u32 [#allocation9], 4
          %s276 = int_to_ptr.vmem [resolvable:$true] %s275
          %278 = dma.hbm_to_vmem [thread:$0]  %s3, 96, %s276, [#allocation10]
        $region20: #{_fused_forward.1} parent=11 // pred_fallthru
          _
        // Predicated region
        $region21: #{_fused_forward.1} parent=11 // pred_check
          %p279 = pneg %p162
        $region22: #{_fused_forward.1} parent=11 // pred_check_branch
          %281 = sbr.rel (%p279) target = $region24
        $region23: #{_fused_forward.1} parent=11 // pred_region
          %s283 = ssub.s32 49152, 49152
          %284 = vsyncadd [#allocation10], %s283
          %s285 = smul.addr %s33, 768
          %s286 = smul.addr %s285, 64
          %s287 = scalar_lea.hbm %s4, %s286
          %s288 = sshll.u32 [#allocation11], 4
          %s289 = int_to_ptr.vmem [resolvable:$true] %s288
          %294 = dma.hbm_to_vmem [thread:$0]  %s287, 49152, %s289, [#allocation10], 512, 512, 32
        $region24: #{_fused_forward.1} parent=11 // pred_fallthru
          _
        // Predicated region
        $region25: #{_fused_forward.1} parent=11 // pred_check
          %p295 = pneg %p188
        $region26: #{_fused_forward.1} parent=11 // pred_check_branch
          %297 = sbr.rel (%p295) target = $region28
        $region27: #{_fused_forward.1} parent=11 // pred_region
          %s299 = ssub.s32 128, 128
          %300 = vsyncadd [#allocation13], %s299
          %s301 = smul.addr %s33, 8
          %s302 = smul.addr %s301, 16
          %s303 = scalar_lea.hbm %s5, %s302
          %s305 = sshll.u32 [#allocation12], 4
          %s306 = int_to_ptr.vmem [resolvable:$true] %s305
          %308 = dma.hbm_to_vmem [thread:$0]  %s303, 128, %s306, [#allocation13]
        $region28: #{_fused_forward.1} parent=11 // pred_fallthru
          _
        // Predicated region
        $region29: #{_fused_forward.1} parent=11 // pred_check
          %p309 = pneg %p214
        $region30: #{_fused_forward.1} parent=11 // pred_check_branch
          %311 = sbr.rel (%p309) target = $region32
        $region31: #{_fused_forward.1} parent=11 // pred_region
          %s313 = ssub.s32 12288, 12288
          %314 = vsyncadd [#allocation13], %s313
          %s315 = smul.addr %s33, 192
          %s316 = smul.addr %s315, 64
          %s317 = scalar_lea.hbm %s6, %s316
          %s318 = sshll.u32 [#allocation14], 4
          %s319 = int_to_ptr.vmem [resolvable:$true] %s318
          %324 = dma.hbm_to_vmem [thread:$0]  %s317, 12288, %s319, [#allocation13], 128, 128, 8
        $region32: #{_fused_forward.1} parent=11 // pred_fallthru
          _
      $region12: #{_fused_forward.1} parent=5 // pred_fallthru
        _
      %p325 = scmp.lt.s32.totalorder %s24, 2
      // Predicated region
      $region33: #{_fused_forward.1} parent=5 // pred_check
        %p326 = pneg %p325
      $region34: #{_fused_forward.1} parent=5 // pred_check_branch
        %328 = sbr.rel (%p326) target = $region36
      $region35: #{_fused_forward.1} parent=5 // pred_region
        // Predicated region
        $region37: #{_fused_forward.1} parent=35 // pred_check
          %p329 = pneg %p60
        $region38: #{_fused_forward.1} parent=35 // pred_check_branch
          %331 = sbr.rel (%p329) target = $region40
        $region39: #{_fused_forward.1} parent=35 // pred_region
          %s332 = sand.u32 %s50, 1
          %s333 = scalar_lea.sflag [#allocation4], %s332
          %s334 = sand.u32 %s50, 1
          %s335 = smul.addr %s334, 384
          %s336 = scalar_lea.vmem [#allocation3], %s335
          %s337 = ssub.s32 1, %s31
          %s338 = smul.u32 %s32, %s337
          %s339 = smul.u32 16, %s338
          %s341 = ssub.s32 6144, 6144
          %342 = vsyncadd %s333, %s341
          %s343 = smul.addr %s339, 6
          %s344 = smul.addr %s343, 64
          %s345 = scalar_lea.hbm %s0, %s344
          %s346 = sshll.u32 %s336, 4
          %s347 = int_to_ptr.vmem [resolvable:$true] %s346
          %352 = dma.hbm_to_vmem [thread:$0]  %s345, 6144, %s347, %s333, 384, 384, 24
        $region40: #{_fused_forward.1} parent=35 // pred_fallthru
          _
        // Predicated region
        $region41: #{_fused_forward.1} parent=35 // pred_check
          %p353 = pneg %p88
        $region42: #{_fused_forward.1} parent=35 // pred_check_branch
          %355 = sbr.rel (%p353) target = $region44
        $region43: #{_fused_forward.1} parent=35 // pred_region
          %s356 = sand.u32 %s24, 1
          %s357 = scalar_lea.sflag [#allocation7], %s356
          %s358 = sand.u32 %s78, 1
          %s359 = smul.addr %s358, 384
          %s360 = scalar_lea.vmem [#allocation6], %s359
          %s361 = smul.u32 %s32, %s31
          %s362 = smul.u32 16, %s361
          %s364 = ssub.s32 6144, 6144
          %365 = vsyncadd %s357, %s364
          %s366 = smul.addr %s362, 18
          %s367 = sadd.s32 6, %s366
          %s368 = smul.addr %s367, 64
          %s369 = scalar_lea.hbm %s1, %s368
          %s370 = sshll.u32 %s360, 4
          %s371 = int_to_ptr.vmem [resolvable:$true] %s370
          %376 = dma.hbm_to_vmem [thread:$0]  %s369, 6144, %s371, %s357, 1152, 384, 24
        $region44: #{_fused_forward.1} parent=35 // pred_fallthru
          _
      $region36: #{_fused_forward.1} parent=5 // pred_fallthru
        _
      %p377 = scmp.le.s32.totalorder 1, %s24
      %p378 = scmp.lt.s32.totalorder %s24, 3
      %p379 = pnand %p377, %p378
      %p380 = pneg %p379
      // Predicated region
      $region45: #{_fused_forward.1} parent=5 // pred_check
        _
      $region46: #{_fused_forward.1} parent=5 // pred_check_branch
        %382 = sbr.rel (%p379) target = $region48
      $region47: #{_fused_forward.1} parent=5 // pred_region
        %s383 = ssub.s32 %s24, 1
        %s384 = sand.u32 %s53, 1
        %s385 = scalar_lea.sflag [#allocation4], %s384
        %s386 = sand.u32 %s53, 1
        %s387 = smul.addr %s386, 384
        %s388 = scalar_lea.vmem [#allocation3], %s387
        // Predicated region
        $region49: #{_fused_forward.1} parent=47 // pred_check
          %p389 = pneg %p66
        $region50: #{_fused_forward.1} parent=47 // pred_check_branch
          %391 = sbr.rel (%p389) target = $region52
        $region51: #{_fused_forward.1} parent=47 // pred_region
          %392 = dma.done %s385, 6144
        $region52: #{_fused_forward.1} parent=47 // pred_fallthru
          _
        %s393 = sand.u32 %s29, 1
        %s394 = scalar_lea.sflag [#allocation7], %s393
        %s395 = sand.u32 %s81, 1
        %s396 = smul.addr %s395, 384
        %s397 = scalar_lea.vmem [#allocation6], %s396
        // Predicated region
        $region53: #{_fused_forward.1} parent=47 // pred_check
          %p398 = pneg %p94
        $region54: #{_fused_forward.1} parent=47 // pred_check_branch
          %400 = sbr.rel (%p398) target = $region56
        $region55: #{_fused_forward.1} parent=47 // pred_region
          %401 = dma.done %s394, 6144
        $region56: #{_fused_forward.1} parent=47 // pred_fallthru
          _
        // Predicated region
        $region57: #{_fused_forward.1} parent=47 // pred_check
          %p402 = pneg %p115
        $region58: #{_fused_forward.1} parent=47 // pred_check_branch
          %404 = sbr.rel (%p402) target = $region60
        $region59: #{_fused_forward.1} parent=47 // pred_region
          %405 = dma.done [#allocation7], 96
        $region60: #{_fused_forward.1} parent=47 // pred_fallthru
          _
        // Predicated region
        $region61: #{_fused_forward.1} parent=47 // pred_check
          %p406 = pneg %p136
        $region62: #{_fused_forward.1} parent=47 // pred_check_branch
          %408 = sbr.rel (%p406) target = $region64
        $region63: #{_fused_forward.1} parent=47 // pred_region
          %409 = dma.done [#allocation10], 96
        $region64: #{_fused_forward.1} parent=47 // pred_fallthru
          _
        // Predicated region
        $region65: #{_fused_forward.1} parent=47 // pred_check
          %p410 = pneg %p162
        $region66: #{_fused_forward.1} parent=47 // pred_check_branch
          %412 = sbr.rel (%p410) target = $region68
        $region67: #{_fused_forward.1} parent=47 // pred_region
          %413 = dma.done [#allocation10], 49152
        $region68: #{_fused_forward.1} parent=47 // pred_fallthru
          _
        // Predicated region
        $region69: #{_fused_forward.1} parent=47 // pred_check
          %p414 = pneg %p188
        $region70: #{_fused_forward.1} parent=47 // pred_check_branch
          %416 = sbr.rel (%p414) target = $region72
        $region71: #{_fused_forward.1} parent=47 // pred_region
          %417 = dma.done [#allocation13], 128
        $region72: #{_fused_forward.1} parent=47 // pred_fallthru
          _
        // Predicated region
        $region73: #{_fused_forward.1} parent=47 // pred_check
          %p418 = pneg %p214
        $region74: #{_fused_forward.1} parent=47 // pred_check_branch
          %420 = sbr.rel (%p418) target = $region76
        $region75: #{_fused_forward.1} parent=47 // pred_region
          %421 = dma.done [#allocation13], 12288
        $region76: #{_fused_forward.1} parent=47 // pred_fallthru
          _
        %s422 = sand.u32 %s53, 1
        %s423 = scalar_lea.sflag [#allocation4], %s422
        %s424 = sand.u32 %s53, 1
        %s425 = smul.addr %s424, 384
        %s426 = scalar_lea.vmem [#allocation3], %s425
        %p427 = pneg %p66
        %p428 = pneg %p63
        %s429 = sand.u32 %s29, 1
        %s430 = scalar_lea.sflag [#allocation7], %s429
        %s431 = sand.u32 %s81, 1
        %s432 = smul.addr %s431, 384
        %s433 = scalar_lea.vmem [#allocation6], %s432
        %p434 = pneg %p94
        %p435 = pneg %p91
        %p436 = pneg %p115
        %p437 = pneg %p112
        %p438 = pneg %p136
        %p439 = pneg %p133
        %p440 = pneg %p162
        %p441 = pneg %p159
        %p442 = pneg %p188
        %p443 = pneg %p185
        %p444 = pneg %p214
        %p445 = pneg %p211
        %p446 = pneg %p242
        %p447 = pneg %p239
        %s448 = sand.u32 %s229, 1
        %s449 = scalar_lea.sflag [#allocation5], %s448
        %s450 = sand.u32 %s229, 1
        %s451 = smul.addr %s450, 256
        %s452 = scalar_lea.vmem [#allocation15], %s451
        %s453 = ssub.s32 1, %s33
        %s454 = smul.u32 %s34, %s453
        %s455 = smul.u32 16, %s454
        %s456 = smul.u32 %s34, %s33
        %s457 = smul.u32 16, %s456
        %s458 = smul.u32 16, %s34
        %p459 = scmp.eq.s32.totalorder %s33, 0
        // Predicated region
        $region77: #{_fused_forward.1} parent=47 // pred_check
          %p460 = pneg %p459
        $region78: #{_fused_forward.1} parent=47 // pred_check_branch
          %462 = sbr.rel (%p460) target = $region80
        $region79: #{_fused_forward.1} parent=47 // pred_region
          %v463 = vld [vmem:[%s388] sm:$0xff]
          %v464 = vld [vmem:[%s388 + $0x8] sm:$0xff]
          %v465 = vld [vmem:[%s388 + $0x10] sm:$0xff]
          %v466 = vld [vmem:[%s388 + $0x18] sm:$0xff]
          %v467 = vld [vmem:[%s388 + $0x20] sm:$0xff]
          %v468 = vld [vmem:[%s388 + $0x28] sm:$0xff]
          %v469 = vld [vmem:[%s388 + $0x30] sm:$0xff]
          %v470 = vld [vmem:[%s388 + $0x38] sm:$0xff]
          %v471 = vld [vmem:[%s388 + $0x40] sm:$0xff]
          %v472 = vld [vmem:[%s388 + $0x48] sm:$0xff]
          %v473 = vld [vmem:[%s388 + $0x50] sm:$0xff]
          %v474 = vld [vmem:[%s388 + $0x58] sm:$0xff]
          %v475 = vld [vmem:[%s388 + $0x60] sm:$0xff]
          %v476 = vld [vmem:[%s388 + $0x68] sm:$0xff]
          %v477 = vld [vmem:[%s388 + $0x70] sm:$0xff]
          %v478 = vld [vmem:[%s388 + $0x78] sm:$0xff]
          %v479 = vld [vmem:[%s388 + $0x80] sm:$0xff]
          %v480 = vld [vmem:[%s388 + $0x88] sm:$0xff]
          %v481 = vld [vmem:[%s388 + $0x90] sm:$0xff]
          %v482 = vld [vmem:[%s388 + $0x98] sm:$0xff]
          %v483 = vld [vmem:[%s388 + $0xa0] sm:$0xff]
          %v484 = vld [vmem:[%s388 + $0xa8] sm:$0xff]
          %v485 = vld [vmem:[%s388 + $0xb0] sm:$0xff]
          %v486 = vld [vmem:[%s388 + $0xb8] sm:$0xff]
          %v487 = vld [vmem:[%s388 + $0xc0] sm:$0xff]
          %v488 = vld [vmem:[%s388 + $0xc8] sm:$0xff]
          %v489 = vld [vmem:[%s388 + $0xd0] sm:$0xff]
          %v490 = vld [vmem:[%s388 + $0xd8] sm:$0xff]
          %v491 = vld [vmem:[%s388 + $0xe0] sm:$0xff]
          %v492 = vld [vmem:[%s388 + $0xe8] sm:$0xff]
          %v493 = vld [vmem:[%s388 + $0xf0] sm:$0xff]
          %v494 = vld [vmem:[%s388 + $0xf8] sm:$0xff]
          %v495 = vld [vmem:[%s388 + $0x100] sm:$0xff]
          %v496 = vld [vmem:[%s388 + $0x108] sm:$0xff]
          %v497 = vld [vmem:[%s388 + $0x110] sm:$0xff]
          %v498 = vld [vmem:[%s388 + $0x118] sm:$0xff]
          %v499 = vld [vmem:[%s388 + $0x120] sm:$0xff]
          %v500 = vld [vmem:[%s388 + $0x128] sm:$0xff]
          %v501 = vld [vmem:[%s388 + $0x130] sm:$0xff]
          %v502 = vld [vmem:[%s388 + $0x138] sm:$0xff]
          %v503 = vld [vmem:[%s388 + $0x140] sm:$0xff]
          %v504 = vld [vmem:[%s388 + $0x148] sm:$0xff]
          %v505 = vld [vmem:[%s388 + $0x150] sm:$0xff]
          %v506 = vld [vmem:[%s388 + $0x158] sm:$0xff]
          %v507 = vld [vmem:[%s388 + $0x160] sm:$0xff]
          %v508 = vld [vmem:[%s388 + $0x168] sm:$0xff]
          %v509 = vld [vmem:[%s388 + $0x170] sm:$0xff]
          %v510 = vld [vmem:[%s388 + $0x178] sm:$0xff]
          %v511 = vunpack.c.l.bf16 %v463
          %v512 = vunpack.c.h.bf16 %v463
          %v513 = vunpack.c.l.bf16 %v464
          %v514 = vunpack.c.h.bf16 %v464
          %v515 = vunpack.c.l.bf16 %v465
          %v516 = vunpack.c.h.bf16 %v465
          %v517 = vunpack.c.l.bf16 %v466
          %v518 = vunpack.c.h.bf16 %v466
          %v519 = vunpack.c.l.bf16 %v467
          %v520 = vunpack.c.h.bf16 %v467
          %v521 = vunpack.c.l.bf16 %v468
          %v522 = vunpack.c.h.bf16 %v468
          %v523 = vunpack.c.l.bf16 %v469
          %v524 = vunpack.c.h.bf16 %v469
          %v525 = vunpack.c.l.bf16 %v470
          %v526 = vunpack.c.h.bf16 %v470
          %v527 = vunpack.c.l.bf16 %v471
          %v528 = vunpack.c.h.bf16 %v471
          %v529 = vunpack.c.l.bf16 %v472
          %v530 = vunpack.c.h.bf16 %v472
          %v531 = vunpack.c.l.bf16 %v473
          %v532 = vunpack.c.h.bf16 %v473
          %v533 = vunpack.c.l.bf16 %v474
          %v534 = vunpack.c.h.bf16 %v474
          %v535 = vunpack.c.l.bf16 %v475
          %v536 = vunpack.c.h.bf16 %v475
          %v537 = vunpack.c.l.bf16 %v476
          %v538 = vunpack.c.h.bf16 %v476
          %v539 = vunpack.c.l.bf16 %v477
          %v540 = vunpack.c.h.bf16 %v477
          %v541 = vunpack.c.l.bf16 %v478
          %v542 = vunpack.c.h.bf16 %v478
          %v543 = vunpack.c.l.bf16 %v479
          %v544 = vunpack.c.h.bf16 %v479
          %v545 = vunpack.c.l.bf16 %v480
          %v546 = vunpack.c.h.bf16 %v480
          %v547 = vunpack.c.l.bf16 %v481
          %v548 = vunpack.c.h.bf16 %v481
          %v549 = vunpack.c.l.bf16 %v482
          %v550 = vunpack.c.h.bf16 %v482
          %v551 = vunpack.c.l.bf16 %v483
          %v552 = vunpack.c.h.bf16 %v483
          %v553 = vunpack.c.l.bf16 %v484
          %v554 = vunpack.c.h.bf16 %v484
          %v555 = vunpack.c.l.bf16 %v485
          %v556 = vunpack.c.h.bf16 %v485
          %v557 = vunpack.c.l.bf16 %v486
          %v558 = vunpack.c.h.bf16 %v486
          %v559 = vunpack.c.l.bf16 %v487
          %v560 = vunpack.c.h.bf16 %v487
          %v561 = vunpack.c.l.bf16 %v488
          %v562 = vunpack.c.h.bf16 %v488
          %v563 = vunpack.c.l.bf16 %v489
          %v564 = vunpack.c.h.bf16 %v489
          %v565 = vunpack.c.l.bf16 %v490
          %v566 = vunpack.c.h.bf16 %v490
          %v567 = vunpack.c.l.bf16 %v491
          %v568 = vunpack.c.h.bf16 %v491
          %v569 = vunpack.c.l.bf16 %v492
          %v570 = vunpack.c.h.bf16 %v492
          %v571 = vunpack.c.l.bf16 %v493
          %v572 = vunpack.c.h.bf16 %v493
          %v573 = vunpack.c.l.bf16 %v494
          %v574 = vunpack.c.h.bf16 %v494
          %v575 = vunpack.c.l.bf16 %v495
          %v576 = vunpack.c.h.bf16 %v495
          %v577 = vunpack.c.l.bf16 %v496
          %v578 = vunpack.c.h.bf16 %v496
          %v579 = vunpack.c.l.bf16 %v497
          %v580 = vunpack.c.h.bf16 %v497
          %v581 = vunpack.c.l.bf16 %v498
          %v582 = vunpack.c.h.bf16 %v498
          %v583 = vunpack.c.l.bf16 %v499
          %v584 = vunpack.c.h.bf16 %v499
          %v585 = vunpack.c.l.bf16 %v500
          %v586 = vunpack.c.h.bf16 %v500
          %v587 = vunpack.c.l.bf16 %v501
          %v588 = vunpack.c.h.bf16 %v501
          %v589 = vunpack.c.l.bf16 %v502
          %v590 = vunpack.c.h.bf16 %v502
          %v591 = vunpack.c.l.bf16 %v503
          %v592 = vunpack.c.h.bf16 %v503
          %v593 = vunpack.c.l.bf16 %v504
          %v594 = vunpack.c.h.bf16 %v504
          %v595 = vunpack.c.l.bf16 %v505
          %v596 = vunpack.c.h.bf16 %v505
          %v597 = vunpack.c.l.bf16 %v506
          %v598 = vunpack.c.h.bf16 %v506
          %v599 = vunpack.c.l.bf16 %v507
          %v600 = vunpack.c.h.bf16 %v507
          %v601 = vunpack.c.l.bf16 %v508
          %v602 = vunpack.c.h.bf16 %v508
          %v603 = vunpack.c.l.bf16 %v509
          %v604 = vunpack.c.h.bf16 %v509
          %v605 = vunpack.c.l.bf16 %v510
          %v606 = vunpack.c.h.bf16 %v510
          %v607 = vadd.f32 %v511, %v512
          %v608 = vadd.f32 %v607, %v513
          %v609 = vadd.f32 %v608, %v514
          %v610 = vadd.f32 %v609, %v515
          %v611 = vadd.f32 %v610, %v516
          %612 = vadd.xlane.f32.xlu0 %v611
          %v613 = vpop.xlane.xlu0 %612
          %v614 = vadd.f32 %v517, %v518
          %v615 = vadd.f32 %v614, %v519
          %v616 = vadd.f32 %v615, %v520
          %v617 = vadd.f32 %v616, %v521
          %v618 = vadd.f32 %v617, %v522
          %619 = vadd.xlane.f32.xlu0 %v618
          %v620 = vpop.xlane.xlu0 %619
          %v621 = vadd.f32 %v523, %v524
          %v622 = vadd.f32 %v621, %v525
          %v623 = vadd.f32 %v622, %v526
          %v624 = vadd.f32 %v623, %v527
          %v625 = vadd.f32 %v624, %v528
          %626 = vadd.xlane.f32.xlu0 %v625
          %v627 = vpop.xlane.xlu0 %626
          %v628 = vadd.f32 %v529, %v530
          %v629 = vadd.f32 %v628, %v531
          %v630 = vadd.f32 %v629, %v532
          %v631 = vadd.f32 %v630, %v533
          %v632 = vadd.f32 %v631, %v534
          %633 = vadd.xlane.f32.xlu0 %v632
          %v634 = vpop.xlane.xlu0 %633
          %v635 = vadd.f32 %v535, %v536
          %v636 = vadd.f32 %v635, %v537
          %v637 = vadd.f32 %v636, %v538
          %v638 = vadd.f32 %v637, %v539
          %v639 = vadd.f32 %v638, %v540
          %640 = vadd.xlane.f32.xlu0 %v639
          %v641 = vpop.xlane.xlu0 %640
          %v642 = vadd.f32 %v541, %v542
          %v643 = vadd.f32 %v642, %v543
          %v644 = vadd.f32 %v643, %v544
          %v645 = vadd.f32 %v644, %v545
          %v646 = vadd.f32 %v645, %v546
          %647 = vadd.xlane.f32.xlu0 %v646
          %v648 = vpop.xlane.xlu0 %647
          %v649 = vadd.f32 %v547, %v548
          %v650 = vadd.f32 %v649, %v549
          %v651 = vadd.f32 %v650, %v550
          %v652 = vadd.f32 %v651, %v551
          %v653 = vadd.f32 %v652, %v552
          %654 = vadd.xlane.f32.xlu0 %v653
          %v655 = vpop.xlane.xlu0 %654
          %v656 = vadd.f32 %v553, %v554
          %v657 = vadd.f32 %v656, %v555
          %v658 = vadd.f32 %v657, %v556
          %v659 = vadd.f32 %v658, %v557
          %v660 = vadd.f32 %v659, %v558
          %661 = vadd.xlane.f32.xlu0 %v660
          %v662 = vpop.xlane.xlu0 %661
          %v663 = vadd.f32 %v559, %v560
          %v664 = vadd.f32 %v663, %v561
          %v665 = vadd.f32 %v664, %v562
          %v666 = vadd.f32 %v665, %v563
          %v667 = vadd.f32 %v666, %v564
          %668 = vadd.xlane.f32.xlu0 %v667
          %v669 = vpop.xlane.xlu0 %668
          %v670 = vadd.f32 %v565, %v566
          %v671 = vadd.f32 %v670, %v567
          %v672 = vadd.f32 %v671, %v568
          %v673 = vadd.f32 %v672, %v569
          %v674 = vadd.f32 %v673, %v570
          %675 = vadd.xlane.f32.xlu0 %v674
          %v676 = vpop.xlane.xlu0 %675
          %v677 = vadd.f32 %v571, %v572
          %v678 = vadd.f32 %v677, %v573
          %v679 = vadd.f32 %v678, %v574
          %v680 = vadd.f32 %v679, %v575
          %v681 = vadd.f32 %v680, %v576
          %682 = vadd.xlane.f32.xlu0 %v681
          %v683 = vpop.xlane.xlu0 %682
          %v684 = vadd.f32 %v577, %v578
          %v685 = vadd.f32 %v684, %v579
          %v686 = vadd.f32 %v685, %v580
          %v687 = vadd.f32 %v686, %v581
          %v688 = vadd.f32 %v687, %v582
          %689 = vadd.xlane.f32.xlu0 %v688
          %v690 = vpop.xlane.xlu0 %689
          %v691 = vadd.f32 %v583, %v584
          %v692 = vadd.f32 %v691, %v585
          %v693 = vadd.f32 %v692, %v586
          %v694 = vadd.f32 %v693, %v587
          %v695 = vadd.f32 %v694, %v588
          %696 = vadd.xlane.f32.xlu0 %v695
          %v697 = vpop.xlane.xlu0 %696
          %v698 = vadd.f32 %v589, %v590
          %v699 = vadd.f32 %v698, %v591
          %v700 = vadd.f32 %v699, %v592
          %v701 = vadd.f32 %v700, %v593
          %v702 = vadd.f32 %v701, %v594
          %703 = vadd.xlane.f32.xlu0 %v702
          %v704 = vpop.xlane.xlu0 %703
          %v705 = vadd.f32 %v595, %v596
          %v706 = vadd.f32 %v705, %v597
          %v707 = vadd.f32 %v706, %v598
          %v708 = vadd.f32 %v707, %v599
          %v709 = vadd.f32 %v708, %v600
          %710 = vadd.xlane.f32.xlu0 %v709
          %v711 = vpop.xlane.xlu0 %710
          %v712 = vadd.f32 %v601, %v602
          %v713 = vadd.f32 %v712, %v603
          %v714 = vadd.f32 %v713, %v604
          %v715 = vadd.f32 %v714, %v605
          %v716 = vadd.f32 %v715, %v606
          %717 = vadd.xlane.f32.xlu0 %v716
          %v718 = vpop.xlane.xlu0 %717
          %v719 = vrcp.pop 768.0
          %v720 = vmul.f32 %v613, %v719
          %v721 = vmul.f32 %v620, %v719
          %v722 = vmul.f32 %v627, %v719
          %v723 = vmul.f32 %v634, %v719
          %v724 = vmul.f32 %v641, %v719
          %v725 = vmul.f32 %v648, %v719
          %v726 = vmul.f32 %v655, %v719
          %v727 = vmul.f32 %v662, %v719
          %v728 = vmul.f32 %v669, %v719
          %v729 = vmul.f32 %v676, %v719
          %v730 = vmul.f32 %v683, %v719
          %v731 = vmul.f32 %v690, %v719
          %v732 = vmul.f32 %v697, %v719
          %v733 = vmul.f32 %v704, %v719
          %v734 = vmul.f32 %v711, %v719
          %v735 = vmul.f32 %v718, %v719
          %v736 = vsub.f32 %v511, %v720
          %v737 = vsub.f32 %v512, %v720
          %v738 = vsub.f32 %v513, %v720
          %v739 = vsub.f32 %v514, %v720
          %v740 = vsub.f32 %v515, %v720
          %v741 = vsub.f32 %v516, %v720
          %v742 = vsub.f32 %v517, %v721
          %v743 = vsub.f32 %v518, %v721
          %v744 = vsub.f32 %v519, %v721
          %v745 = vsub.f32 %v520, %v721
          %v746 = vsub.f32 %v521, %v721
          %v747 = vsub.f32 %v522, %v721
          %v748 = vsub.f32 %v523, %v722
          %v749 = vsub.f32 %v524, %v722
          %v750 = vsub.f32 %v525, %v722
          %v751 = vsub.f32 %v526, %v722
          %v752 = vsub.f32 %v527, %v722
          %v753 = vsub.f32 %v528, %v722
          %v754 = vsub.f32 %v529, %v723
          %v755 = vsub.f32 %v530, %v723
          %v756 = vsub.f32 %v531, %v723
          %v757 = vsub.f32 %v532, %v723
          %v758 = vsub.f32 %v533, %v723
          %v759 = vsub.f32 %v534, %v723
          %v760 = vsub.f32 %v535, %v724
          %v761 = vsub.f32 %v536, %v724
          %v762 = vsub.f32 %v537, %v724
          %v763 = vsub.f32 %v538, %v724
          %v764 = vsub.f32 %v539, %v724
          %v765 = vsub.f32 %v540, %v724
          %v766 = vsub.f32 %v541, %v725
          %v767 = vsub.f32 %v542, %v725
          %v768 = vsub.f32 %v543, %v725
          %v769 = vsub.f32 %v544, %v725
          %v770 = vsub.f32 %v545, %v725
          %v771 = vsub.f32 %v546, %v725
          %v772 = vsub.f32 %v547, %v726
          %v773 = vsub.f32 %v548, %v726
          %v774 = vsub.f32 %v549, %v726
          %v775 = vsub.f32 %v550, %v726
          %v776 = vsub.f32 %v551, %v726
          %v777 = vsub.f32 %v552, %v726
          %v778 = vsub.f32 %v553, %v727
          %v779 = vsub.f32 %v554, %v727
          %v780 = vsub.f32 %v555, %v727
          %v781 = vsub.f32 %v556, %v727
          %v782 = vsub.f32 %v557, %v727
          %v783 = vsub.f32 %v558, %v727
          %v784 = vsub.f32 %v559, %v728
          %v785 = vsub.f32 %v560, %v728
          %v786 = vsub.f32 %v561, %v728
          %v787 = vsub.f32 %v562, %v728
          %v788 = vsub.f32 %v563, %v728
          %v789 = vsub.f32 %v564, %v728
          %v790 = vsub.f32 %v565, %v729
          %v791 = vsub.f32 %v566, %v729
          %v792 = vsub.f32 %v567, %v729
          %v793 = vsub.f32 %v568, %v729
          %v794 = vsub.f32 %v569, %v729
          %v795 = vsub.f32 %v570, %v729
          %v796 = vsub.f32 %v571, %v730
          %v797 = vsub.f32 %v572, %v730
          %v798 = vsub.f32 %v573, %v730
          %v799 = vsub.f32 %v574, %v730
          %v800 = vsub.f32 %v575, %v730
          %v801 = vsub.f32 %v576, %v730
          %v802 = vsub.f32 %v577, %v731
          %v803 = vsub.f32 %v578, %v731
          %v804 = vsub.f32 %v579, %v731
          %v805 = vsub.f32 %v580, %v731
          %v806 = vsub.f32 %v581, %v731
          %v807 = vsub.f32 %v582, %v731
          %v808 = vsub.f32 %v583, %v732
          %v809 = vsub.f32 %v584, %v732
          %v810 = vsub.f32 %v585, %v732
          %v811 = vsub.f32 %v586, %v732
          %v812 = vsub.f32 %v587, %v732
          %v813 = vsub.f32 %v588, %v732
          %v814 = vsub.f32 %v589, %v733
          %v815 = vsub.f32 %v590, %v733
          %v816 = vsub.f32 %v591, %v733
          %v817 = vsub.f32 %v592, %v733
          %v818 = vsub.f32 %v593, %v733
          %v819 = vsub.f32 %v594, %v733
          %v820 = vsub.f32 %v595, %v734
          %v821 = vsub.f32 %v596, %v734
          %v822 = vsub.f32 %v597, %v734
          %v823 = vsub.f32 %v598, %v734
          %v824 = vsub.f32 %v599, %v734
          %v825 = vsub.f32 %v600, %v734
          %v826 = vsub.f32 %v601, %v735
          %v827 = vsub.f32 %v602, %v735
          %v828 = vsub.f32 %v603, %v735
          %v829 = vsub.f32 %v604, %v735
          %v830 = vsub.f32 %v605, %v735
          %v831 = vsub.f32 %v606, %v735
          %v832 = vmul.f32 %v736, %v736
          %v833 = vmul.f32 %v737, %v737
          %v834 = vmul.f32 %v738, %v738
          %v835 = vmul.f32 %v739, %v739
          %v836 = vmul.f32 %v740, %v740
          %v837 = vmul.f32 %v741, %v741
          %v838 = vmul.f32 %v742, %v742
          %v839 = vmul.f32 %v743, %v743
          %v840 = vmul.f32 %v744, %v744
          %v841 = vmul.f32 %v745, %v745
          %v842 = vmul.f32 %v746, %v746
          %v843 = vmul.f32 %v747, %v747
          %v844 = vmul.f32 %v748, %v748
          %v845 = vmul.f32 %v749, %v749
          %v846 = vmul.f32 %v750, %v750
          %v847 = vmul.f32 %v751, %v751
          %v848 = vmul.f32 %v752, %v752
          %v849 = vmul.f32 %v753, %v753
          %v850 = vmul.f32 %v754, %v754
          %v851 = vmul.f32 %v755, %v755
          %v852 = vmul.f32 %v756, %v756
          %v853 = vmul.f32 %v757, %v757
          %v854 = vmul.f32 %v758, %v758
          %v855 = vmul.f32 %v759, %v759
          %v856 = vmul.f32 %v760, %v760
          %v857 = vmul.f32 %v761, %v761
          %v858 = vmul.f32 %v762, %v762
          %v859 = vmul.f32 %v763, %v763
          %v860 = vmul.f32 %v764, %v764
          %v861 = vmul.f32 %v765, %v765
          %v862 = vmul.f32 %v766, %v766
          %v863 = vmul.f32 %v767, %v767
          %v864 = vmul.f32 %v768, %v768
          %v865 = vmul.f32 %v769, %v769
          %v866 = vmul.f32 %v770, %v770
          %v867 = vmul.f32 %v771, %v771
          %v868 = vmul.f32 %v772, %v772
          %v869 = vmul.f32 %v773, %v773
          %v870 = vmul.f32 %v774, %v774
          %v871 = vmul.f32 %v775, %v775
          %v872 = vmul.f32 %v776, %v776
          %v873 = vmul.f32 %v777, %v777
          %v874 = vmul.f32 %v778, %v778
          %v875 = vmul.f32 %v779, %v779
          %v876 = vmul.f32 %v780, %v780
          %v877 = vmul.f32 %v781, %v781
          %v878 = vmul.f32 %v782, %v782
          %v879 = vmul.f32 %v783, %v783
          %v880 = vmul.f32 %v784, %v784
          %v881 = vmul.f32 %v785, %v785
          %v882 = vmul.f32 %v786, %v786
          %v883 = vmul.f32 %v787, %v787
          %v884 = vmul.f32 %v788, %v788
          %v885 = vmul.f32 %v789, %v789
          %v886 = vmul.f32 %v790, %v790
          %v887 = vmul.f32 %v791, %v791
          %v888 = vmul.f32 %v792, %v792
          %v889 = vmul.f32 %v793, %v793
          %v890 = vmul.f32 %v794, %v794
          %v891 = vmul.f32 %v795, %v795
          %v892 = vmul.f32 %v796, %v796
          %v893 = vmul.f32 %v797, %v797
          %v894 = vmul.f32 %v798, %v798
          %v895 = vmul.f32 %v799, %v799
          %v896 = vmul.f32 %v800, %v800
          %v897 = vmul.f32 %v801, %v801
          %v898 = vmul.f32 %v802, %v802
          %v899 = vmul.f32 %v803, %v803
          %v900 = vmul.f32 %v804, %v804
          %v901 = vmul.f32 %v805, %v805
          %v902 = vmul.f32 %v806, %v806
          %v903 = vmul.f32 %v807, %v807
          %v904 = vmul.f32 %v808, %v808
          %v905 = vmul.f32 %v809, %v809
          %v906 = vmul.f32 %v810, %v810
          %v907 = vmul.f32 %v811, %v811
          %v908 = vmul.f32 %v812, %v812
          %v909 = vmul.f32 %v813, %v813
          %v910 = vmul.f32 %v814, %v814
          %v911 = vmul.f32 %v815, %v815
          %v912 = vmul.f32 %v816, %v816
          %v913 = vmul.f32 %v817, %v817
          %v914 = vmul.f32 %v818, %v818
          %v915 = vmul.f32 %v819, %v819
          %v916 = vmul.f32 %v820, %v820
          %v917 = vmul.f32 %v821, %v821
          %v918 = vmul.f32 %v822, %v822
          %v919 = vmul.f32 %v823, %v823
          %v920 = vmul.f32 %v824, %v824
          %v921 = vmul.f32 %v825, %v825
          %v922 = vmul.f32 %v826, %v826
          %v923 = vmul.f32 %v827, %v827
          %v924 = vmul.f32 %v828, %v828
          %v925 = vmul.f32 %v829, %v829
          %v926 = vmul.f32 %v830, %v830
          %v927 = vmul.f32 %v831, %v831
          %v928 = vadd.f32 %v832, %v833
          %v929 = vadd.f32 %v928, %v834
          %v930 = vadd.f32 %v929, %v835
          %v931 = vadd.f32 %v930, %v836
          %v932 = vadd.f32 %v931, %v837
          %933 = vadd.xlane.f32.xlu0 %v932
          %v934 = vpop.xlane.xlu0 %933
          %v935 = vadd.f32 %v838, %v839
          %v936 = vadd.f32 %v935, %v840
          %v937 = vadd.f32 %v936, %v841
          %v938 = vadd.f32 %v937, %v842
          %v939 = vadd.f32 %v938, %v843
          %940 = vadd.xlane.f32.xlu0 %v939
          %v941 = vpop.xlane.xlu0 %940
          %v942 = vadd.f32 %v844, %v845
          %v943 = vadd.f32 %v942, %v846
          %v944 = vadd.f32 %v943, %v847
          %v945 = vadd.f32 %v944, %v848
          %v946 = vadd.f32 %v945, %v849
          %947 = vadd.xlane.f32.xlu0 %v946
          %v948 = vpop.xlane.xlu0 %947
          %v949 = vadd.f32 %v850, %v851
          %v950 = vadd.f32 %v949, %v852
          %v951 = vadd.f32 %v950, %v853
          %v952 = vadd.f32 %v951, %v854
          %v953 = vadd.f32 %v952, %v855
          %954 = vadd.xlane.f32.xlu0 %v953
          %v955 = vpop.xlane.xlu0 %954
          %v956 = vadd.f32 %v856, %v857
          %v957 = vadd.f32 %v956, %v858
          %v958 = vadd.f32 %v957, %v859
          %v959 = vadd.f32 %v958, %v860
          %v960 = vadd.f32 %v959, %v861
          %961 = vadd.xlane.f32.xlu0 %v960
          %v962 = vpop.xlane.xlu0 %961
          %v963 = vadd.f32 %v862, %v863
          %v964 = vadd.f32 %v963, %v864
          %v965 = vadd.f32 %v964, %v865
          %v966 = vadd.f32 %v965, %v866
          %v967 = vadd.f32 %v966, %v867
          %968 = vadd.xlane.f32.xlu0 %v967
          %v969 = vpop.xlane.xlu0 %968
          %v970 = vadd.f32 %v868, %v869
          %v971 = vadd.f32 %v970, %v870
          %v972 = vadd.f32 %v971, %v871
          %v973 = vadd.f32 %v972, %v872
          %v974 = vadd.f32 %v973, %v873
          %975 = vadd.xlane.f32.xlu0 %v974
          %v976 = vpop.xlane.xlu0 %975
          %v977 = vadd.f32 %v874, %v875
          %v978 = vadd.f32 %v977, %v876
          %v979 = vadd.f32 %v978, %v877
          %v980 = vadd.f32 %v979, %v878
          %v981 = vadd.f32 %v980, %v879
          %982 = vadd.xlane.f32.xlu0 %v981
          %v983 = vpop.xlane.xlu0 %982
          %v984 = vadd.f32 %v880, %v881
          %v985 = vadd.f32 %v984, %v882
          %v986 = vadd.f32 %v985, %v883
          %v987 = vadd.f32 %v986, %v884
          %v988 = vadd.f32 %v987, %v885
          %989 = vadd.xlane.f32.xlu0 %v988
          %v990 = vpop.xlane.xlu0 %989
          %v991 = vadd.f32 %v886, %v887
          %v992 = vadd.f32 %v991, %v888
          %v993 = vadd.f32 %v992, %v889
          %v994 = vadd.f32 %v993, %v890
          %v995 = vadd.f32 %v994, %v891
          %996 = vadd.xlane.f32.xlu0 %v995
          %v997 = vpop.xlane.xlu0 %996
          %v998 = vadd.f32 %v892, %v893
          %v999 = vadd.f32 %v998, %v894
          %v1000 = vadd.f32 %v999, %v895
          %v1001 = vadd.f32 %v1000, %v896
          %v1002 = vadd.f32 %v1001, %v897
          %1003 = vadd.xlane.f32.xlu0 %v1002
          %v1004 = vpop.xlane.xlu0 %1003
          %v1005 = vadd.f32 %v898, %v899
          %v1006 = vadd.f32 %v1005, %v900
          %v1007 = vadd.f32 %v1006, %v901
          %v1008 = vadd.f32 %v1007, %v902
          %v1009 = vadd.f32 %v1008, %v903
          %1010 = vadd.xlane.f32.xlu0 %v1009
          %v1011 = vpop.xlane.xlu0 %1010
          %v1012 = vadd.f32 %v904, %v905
          %v1013 = vadd.f32 %v1012, %v906
          %v1014 = vadd.f32 %v1013, %v907
          %v1015 = vadd.f32 %v1014, %v908
          %v1016 = vadd.f32 %v1015, %v909
          %1017 = vadd.xlane.f32.xlu0 %v1016
          %v1018 = vpop.xlane.xlu0 %1017
          %v1019 = vadd.f32 %v910, %v911
          %v1020 = vadd.f32 %v1019, %v912
          %v1021 = vadd.f32 %v1020, %v913
          %v1022 = vadd.f32 %v1021, %v914
          %v1023 = vadd.f32 %v1022, %v915
          %1024 = vadd.xlane.f32.xlu0 %v1023
          %v1025 = vpop.xlane.xlu0 %1024
          %v1026 = vadd.f32 %v916, %v917
          %v1027 = vadd.f32 %v1026, %v918
          %v1028 = vadd.f32 %v1027, %v919
          %v1029 = vadd.f32 %v1028, %v920
          %v1030 = vadd.f32 %v1029, %v921
          %1031 = vadd.xlane.f32.xlu0 %v1030
          %v1032 = vpop.xlane.xlu0 %1031
          %v1033 = vadd.f32 %v922, %v923
          %v1034 = vadd.f32 %v1033, %v924
          %v1035 = vadd.f32 %v1034, %v925
          %v1036 = vadd.f32 %v1035, %v926
          %v1037 = vadd.f32 %v1036, %v927
          %1038 = vadd.xlane.f32.xlu0 %v1037
          %v1039 = vpop.xlane.xlu0 %1038
          %v1040 = vmul.f32 %v934, %v719
          %v1041 = vmul.f32 %v941, %v719
          %v1042 = vmul.f32 %v948, %v719
          %v1043 = vmul.f32 %v955, %v719
          %v1044 = vmul.f32 %v962, %v719
          %v1045 = vmul.f32 %v969, %v719
          %v1046 = vmul.f32 %v976, %v719
          %v1047 = vmul.f32 %v983, %v719
          %v1048 = vmul.f32 %v990, %v719
          %v1049 = vmul.f32 %v997, %v719
          %v1050 = vmul.f32 %v1004, %v719
          %v1051 = vmul.f32 %v1011, %v719
          %v1052 = vmul.f32 %v1018, %v719
          %v1053 = vmul.f32 %v1025, %v719
          %v1054 = vmul.f32 %v1032, %v719
          %v1055 = vmul.f32 %v1039, %v719
          %v1056 = vadd.f32 %v1040, 1e-05
          %v1057 = vadd.f32 %v1041, 1e-05
          %v1058 = vadd.f32 %v1042, 1e-05
          %v1059 = vadd.f32 %v1043, 1e-05
          %v1060 = vadd.f32 %v1044, 1e-05
          %v1061 = vadd.f32 %v1045, 1e-05
          %v1062 = vadd.f32 %v1046, 1e-05
          %v1063 = vadd.f32 %v1047, 1e-05
          %v1064 = vadd.f32 %v1048, 1e-05
          %v1065 = vadd.f32 %v1049, 1e-05
          %v1066 = vadd.f32 %v1050, 1e-05
          %v1067 = vadd.f32 %v1051, 1e-05
          %v1068 = vadd.f32 %v1052, 1e-05
          %v1069 = vadd.f32 %v1053, 1e-05
          %v1070 = vadd.f32 %v1054, 1e-05
          %v1071 = vadd.f32 %v1055, 1e-05
          %v1072 = vrsqrt.pop %v1056
          %v1073 = vrsqrt.pop %v1057
          %v1074 = vrsqrt.pop %v1058
          %v1075 = vrsqrt.pop %v1059
          %v1076 = vrsqrt.pop %v1060
          %v1077 = vrsqrt.pop %v1061
          %v1078 = vrsqrt.pop %v1062
          %v1079 = vrsqrt.pop %v1063
          %v1080 = vrsqrt.pop %v1064
          %v1081 = vrsqrt.pop %v1065
          %v1082 = vrsqrt.pop %v1066
          %v1083 = vrsqrt.pop %v1067
          %v1084 = vrsqrt.pop %v1068
          %v1085 = vrsqrt.pop %v1069
          %v1086 = vrsqrt.pop %v1070
          %v1087 = vrsqrt.pop %v1071
          %v1088 = vmul.f32 %v736, %v1072
          %v1089 = vmul.f32 %v737, %v1072
          %v1090 = vmul.f32 %v738, %v1072
          %v1091 = vmul.f32 %v739, %v1072
          %v1092 = vmul.f32 %v740, %v1072
          %v1093 = vmul.f32 %v741, %v1072
          %v1094 = vmul.f32 %v742, %v1073
          %v1095 = vmul.f32 %v743, %v1073
          %v1096 = vmul.f32 %v744, %v1073
          %v1097 = vmul.f32 %v745, %v1073
          %v1098 = vmul.f32 %v746, %v1073
          %v1099 = vmul.f32 %v747, %v1073
          %v1100 = vmul.f32 %v748, %v1074
          %v1101 = vmul.f32 %v749, %v1074
          %v1102 = vmul.f32 %v750, %v1074
          %v1103 = vmul.f32 %v751, %v1074
          %v1104 = vmul.f32 %v752, %v1074
          %v1105 = vmul.f32 %v753, %v1074
          %v1106 = vmul.f32 %v754, %v1075
          %v1107 = vmul.f32 %v755, %v1075
          %v1108 = vmul.f32 %v756, %v1075
          %v1109 = vmul.f32 %v757, %v1075
          %v1110 = vmul.f32 %v758, %v1075
          %v1111 = vmul.f32 %v759, %v1075
          %v1112 = vmul.f32 %v760, %v1076
          %v1113 = vmul.f32 %v761, %v1076
          %v1114 = vmul.f32 %v762, %v1076
          %v1115 = vmul.f32 %v763, %v1076
          %v1116 = vmul.f32 %v764, %v1076
          %v1117 = vmul.f32 %v765, %v1076
          %v1118 = vmul.f32 %v766, %v1077
          %v1119 = vmul.f32 %v767, %v1077
          %v1120 = vmul.f32 %v768, %v1077
          %v1121 = vmul.f32 %v769, %v1077
          %v1122 = vmul.f32 %v770, %v1077
          %v1123 = vmul.f32 %v771, %v1077
          %v1124 = vmul.f32 %v772, %v1078
          %v1125 = vmul.f32 %v773, %v1078
          %v1126 = vmul.f32 %v774, %v1078
          %v1127 = vmul.f32 %v775, %v1078
          %v1128 = vmul.f32 %v776, %v1078
          %v1129 = vmul.f32 %v777, %v1078
          %v1130 = vmul.f32 %v778, %v1079
          %v1131 = vmul.f32 %v779, %v1079
          %v1132 = vmul.f32 %v780, %v1079
          %v1133 = vmul.f32 %v781, %v1079
          %v1134 = vmul.f32 %v782, %v1079
          %v1135 = vmul.f32 %v783, %v1079
          %v1136 = vmul.f32 %v784, %v1080
          %v1137 = vmul.f32 %v785, %v1080
          %v1138 = vmul.f32 %v786, %v1080
          %v1139 = vmul.f32 %v787, %v1080
          %v1140 = vmul.f32 %v788, %v1080
          %v1141 = vmul.f32 %v789, %v1080
          %v1142 = vmul.f32 %v790, %v1081
          %v1143 = vmul.f32 %v791, %v1081
          %v1144 = vmul.f32 %v792, %v1081
          %v1145 = vmul.f32 %v793, %v1081
          %v1146 = vmul.f32 %v794, %v1081
          %v1147 = vmul.f32 %v795, %v1081
          %v1148 = vmul.f32 %v796, %v1082
          %v1149 = vmul.f32 %v797, %v1082
          %v1150 = vmul.f32 %v798, %v1082
          %v1151 = vmul.f32 %v799, %v1082
          %v1152 = vmul.f32 %v800, %v1082
          %v1153 = vmul.f32 %v801, %v1082
          %v1154 = vmul.f32 %v802, %v1083
          %v1155 = vmul.f32 %v803, %v1083
          %v1156 = vmul.f32 %v804, %v1083
          %v1157 = vmul.f32 %v805, %v1083
          %v1158 = vmul.f32 %v806, %v1083
          %v1159 = vmul.f32 %v807, %v1083
          %v1160 = vmul.f32 %v808, %v1084
          %v1161 = vmul.f32 %v809, %v1084
          %v1162 = vmul.f32 %v810, %v1084
          %v1163 = vmul.f32 %v811, %v1084
          %v1164 = vmul.f32 %v812, %v1084
          %v1165 = vmul.f32 %v813, %v1084
          %v1166 = vmul.f32 %v814, %v1085
          %v1167 = vmul.f32 %v815, %v1085
          %v1168 = vmul.f32 %v816, %v1085
          %v1169 = vmul.f32 %v817, %v1085
          %v1170 = vmul.f32 %v818, %v1085
          %v1171 = vmul.f32 %v819, %v1085
          %v1172 = vmul.f32 %v820, %v1086
          %v1173 = vmul.f32 %v821, %v1086
          %v1174 = vmul.f32 %v822, %v1086
          %v1175 = vmul.f32 %v823, %v1086
          %v1176 = vmul.f32 %v824, %v1086
          %v1177 = vmul.f32 %v825, %v1086
          %v1178 = vmul.f32 %v826, %v1087
          %v1179 = vmul.f32 %v827, %v1087
          %v1180 = vmul.f32 %v828, %v1087
          %v1181 = vmul.f32 %v829, %v1087
          %v1182 = vmul.f32 %v830, %v1087
          %v1183 = vmul.f32 %v831, %v1087
          %v1184 = vld [vmem:[#allocation8] sm:$0x3f]
          %v1186 = vlaneseq
          %v1187 = vshrl.u32 %v1186, 7
          %v1188 = vsub.s32 0, %v1187
          %v1189 = vrot.slane %v1184, %v1188
          %v1190 = vlaneseq
          %v1191 = vshrl.u32 %v1190, 7
          %v1192 = vsub.s32 1, %v1191
          %v1193 = vrot.slane %v1184, %v1192
          %v1194 = vlaneseq
          %v1195 = vshrl.u32 %v1194, 7
          %v1196 = vsub.s32 2, %v1195
          %v1197 = vrot.slane %v1184, %v1196
          %v1198 = vlaneseq
          %v1199 = vshrl.u32 %v1198, 7
          %v1200 = vsub.s32 3, %v1199
          %v1201 = vrot.slane %v1184, %v1200
          %v1202 = vlaneseq
          %v1203 = vshrl.u32 %v1202, 7
          %v1204 = vsub.s32 4, %v1203
          %v1205 = vrot.slane %v1184, %v1204
          %v1206 = vlaneseq
          %v1207 = vshrl.u32 %v1206, 7
          %v1208 = vsub.s32 5, %v1207
          %v1209 = vrot.slane %v1184, %v1208
          %v1216 = vmul.f32 %v1088, %v1189
          %v1217 = vmul.f32 %v1089, %v1193
          %v1218 = vmul.f32 %v1090, %v1197
          %v1219 = vmul.f32 %v1091, %v1201
          %v1220 = vmul.f32 %v1092, %v1205
          %v1221 = vmul.f32 %v1093, %v1209
          %v1222 = vmul.f32 %v1094, %v1189
          %v1223 = vmul.f32 %v1095, %v1193
          %v1224 = vmul.f32 %v1096, %v1197
          %v1225 = vmul.f32 %v1097, %v1201
          %v1226 = vmul.f32 %v1098, %v1205
          %v1227 = vmul.f32 %v1099, %v1209
          %v1228 = vmul.f32 %v1100, %v1189
          %v1229 = vmul.f32 %v1101, %v1193
          %v1230 = vmul.f32 %v1102, %v1197
          %v1231 = vmul.f32 %v1103, %v1201
          %v1232 = vmul.f32 %v1104, %v1205
          %v1233 = vmul.f32 %v1105, %v1209
          %v1234 = vmul.f32 %v1106, %v1189
          %v1235 = vmul.f32 %v1107, %v1193
          %v1236 = vmul.f32 %v1108, %v1197
          %v1237 = vmul.f32 %v1109, %v1201
          %v1238 = vmul.f32 %v1110, %v1205
          %v1239 = vmul.f32 %v1111, %v1209
          %v1240 = vmul.f32 %v1112, %v1189
          %v1241 = vmul.f32 %v1113, %v1193
          %v1242 = vmul.f32 %v1114, %v1197
          %v1243 = vmul.f32 %v1115, %v1201
          %v1244 = vmul.f32 %v1116, %v1205
          %v1245 = vmul.f32 %v1117, %v1209
          %v1246 = vmul.f32 %v1118, %v1189
          %v1247 = vmul.f32 %v1119, %v1193
          %v1248 = vmul.f32 %v1120, %v1197
          %v1249 = vmul.f32 %v1121, %v1201
          %v1250 = vmul.f32 %v1122, %v1205
          %v1251 = vmul.f32 %v1123, %v1209
          %v1252 = vmul.f32 %v1124, %v1189
          %v1253 = vmul.f32 %v1125, %v1193
          %v1254 = vmul.f32 %v1126, %v1197
          %v1255 = vmul.f32 %v1127, %v1201
          %v1256 = vmul.f32 %v1128, %v1205
          %v1257 = vmul.f32 %v1129, %v1209
          %v1258 = vmul.f32 %v1130, %v1189
          %v1259 = vmul.f32 %v1131, %v1193
          %v1260 = vmul.f32 %v1132, %v1197
          %v1261 = vmul.f32 %v1133, %v1201
          %v1262 = vmul.f32 %v1134, %v1205
          %v1263 = vmul.f32 %v1135, %v1209
          %v1264 = vmul.f32 %v1136, %v1189
          %v1265 = vmul.f32 %v1137, %v1193
          %v1266 = vmul.f32 %v1138, %v1197
          %v1267 = vmul.f32 %v1139, %v1201
          %v1268 = vmul.f32 %v1140, %v1205
          %v1269 = vmul.f32 %v1141, %v1209
          %v1270 = vmul.f32 %v1142, %v1189
          %v1271 = vmul.f32 %v1143, %v1193
          %v1272 = vmul.f32 %v1144, %v1197
          %v1273 = vmul.f32 %v1145, %v1201
          %v1274 = vmul.f32 %v1146, %v1205
          %v1275 = vmul.f32 %v1147, %v1209
          %v1276 = vmul.f32 %v1148, %v1189
          %v1277 = vmul.f32 %v1149, %v1193
          %v1278 = vmul.f32 %v1150, %v1197
          %v1279 = vmul.f32 %v1151, %v1201
          %v1280 = vmul.f32 %v1152, %v1205
          %v1281 = vmul.f32 %v1153, %v1209
          %v1282 = vmul.f32 %v1154, %v1189
          %v1283 = vmul.f32 %v1155, %v1193
          %v1284 = vmul.f32 %v1156, %v1197
          %v1285 = vmul.f32 %v1157, %v1201
          %v1286 = vmul.f32 %v1158, %v1205
          %v1287 = vmul.f32 %v1159, %v1209
          %v1288 = vmul.f32 %v1160, %v1189
          %v1289 = vmul.f32 %v1161, %v1193
          %v1290 = vmul.f32 %v1162, %v1197
          %v1291 = vmul.f32 %v1163, %v1201
          %v1292 = vmul.f32 %v1164, %v1205
          %v1293 = vmul.f32 %v1165, %v1209
          %v1294 = vmul.f32 %v1166, %v1189
          %v1295 = vmul.f32 %v1167, %v1193
          %v1296 = vmul.f32 %v1168, %v1197
          %v1297 = vmul.f32 %v1169, %v1201
          %v1298 = vmul.f32 %v1170, %v1205
          %v1299 = vmul.f32 %v1171, %v1209
          %v1300 = vmul.f32 %v1172, %v1189
          %v1301 = vmul.f32 %v1173, %v1193
          %v1302 = vmul.f32 %v1174, %v1197
          %v1303 = vmul.f32 %v1175, %v1201
          %v1304 = vmul.f32 %v1176, %v1205
          %v1305 = vmul.f32 %v1177, %v1209
          %v1306 = vmul.f32 %v1178, %v1189
          %v1307 = vmul.f32 %v1179, %v1193
          %v1308 = vmul.f32 %v1180, %v1197
          %v1309 = vmul.f32 %v1181, %v1201
          %v1310 = vmul.f32 %v1182, %v1205
          %v1311 = vmul.f32 %v1183, %v1209
          %v1312 = vld [vmem:[#allocation9] sm:$0x3f]
          %v1314 = vlaneseq
          %v1315 = vshrl.u32 %v1314, 7
          %v1316 = vsub.s32 0, %v1315
          %v1317 = vrot.slane %v1312, %v1316
          %v1318 = vlaneseq
          %v1319 = vshrl.u32 %v1318, 7
          %v1320 = vsub.s32 1, %v1319
          %v1321 = vrot.slane %v1312, %v1320
          %v1322 = vlaneseq
          %v1323 = vshrl.u32 %v1322, 7
          %v1324 = vsub.s32 2, %v1323
          %v1325 = vrot.slane %v1312, %v1324
          %v1326 = vlaneseq
          %v1327 = vshrl.u32 %v1326, 7
          %v1328 = vsub.s32 3, %v1327
          %v1329 = vrot.slane %v1312, %v1328
          %v1330 = vlaneseq
          %v1331 = vshrl.u32 %v1330, 7
          %v1332 = vsub.s32 4, %v1331
          %v1333 = vrot.slane %v1312, %v1332
          %v1334 = vlaneseq
          %v1335 = vshrl.u32 %v1334, 7
          %v1336 = vsub.s32 5, %v1335
          %v1337 = vrot.slane %v1312, %v1336
          %v1344 = vadd.f32 %v1216, %v1317
          %v1345 = vadd.f32 %v1217, %v1321
          %v1346 = vadd.f32 %v1218, %v1325
          %v1347 = vadd.f32 %v1219, %v1329
          %v1348 = vadd.f32 %v1220, %v1333
          %v1349 = vadd.f32 %v1221, %v1337
          %v1350 = vadd.f32 %v1222, %v1317
          %v1351 = vadd.f32 %v1223, %v1321
          %v1352 = vadd.f32 %v1224, %v1325
          %v1353 = vadd.f32 %v1225, %v1329
          %v1354 = vadd.f32 %v1226, %v1333
          %v1355 = vadd.f32 %v1227, %v1337
          %v1356 = vadd.f32 %v1228, %v1317
          %v1357 = vadd.f32 %v1229, %v1321
          %v1358 = vadd.f32 %v1230, %v1325
          %v1359 = vadd.f32 %v1231, %v1329
          %v1360 = vadd.f32 %v1232, %v1333
          %v1361 = vadd.f32 %v1233, %v1337
          %v1362 = vadd.f32 %v1234, %v1317
          %v1363 = vadd.f32 %v1235, %v1321
          %v1364 = vadd.f32 %v1236, %v1325
          %v1365 = vadd.f32 %v1237, %v1329
          %v1366 = vadd.f32 %v1238, %v1333
          %v1367 = vadd.f32 %v1239, %v1337
          %v1368 = vadd.f32 %v1240, %v1317
          %v1369 = vadd.f32 %v1241, %v1321
          %v1370 = vadd.f32 %v1242, %v1325
          %v1371 = vadd.f32 %v1243, %v1329
          %v1372 = vadd.f32 %v1244, %v1333
          %v1373 = vadd.f32 %v1245, %v1337
          %v1374 = vadd.f32 %v1246, %v1317
          %v1375 = vadd.f32 %v1247, %v1321
          %v1376 = vadd.f32 %v1248, %v1325
          %v1377 = vadd.f32 %v1249, %v1329
          %v1378 = vadd.f32 %v1250, %v1333
          %v1379 = vadd.f32 %v1251, %v1337
          %v1380 = vadd.f32 %v1252, %v1317
          %v1381 = vadd.f32 %v1253, %v1321
          %v1382 = vadd.f32 %v1254, %v1325
          %v1383 = vadd.f32 %v1255, %v1329
          %v1384 = vadd.f32 %v1256, %v1333
          %v1385 = vadd.f32 %v1257, %v1337
          %v1386 = vadd.f32 %v1258, %v1317
          %v1387 = vadd.f32 %v1259, %v1321
          %v1388 = vadd.f32 %v1260, %v1325
          %v1389 = vadd.f32 %v1261, %v1329
          %v1390 = vadd.f32 %v1262, %v1333
          %v1391 = vadd.f32 %v1263, %v1337
          %v1392 = vadd.f32 %v1264, %v1317
          %v1393 = vadd.f32 %v1265, %v1321
          %v1394 = vadd.f32 %v1266, %v1325
          %v1395 = vadd.f32 %v1267, %v1329
          %v1396 = vadd.f32 %v1268, %v1333
          %v1397 = vadd.f32 %v1269, %v1337
          %v1398 = vadd.f32 %v1270, %v1317
          %v1399 = vadd.f32 %v1271, %v1321
          %v1400 = vadd.f32 %v1272, %v1325
          %v1401 = vadd.f32 %v1273, %v1329
          %v1402 = vadd.f32 %v1274, %v1333
          %v1403 = vadd.f32 %v1275, %v1337
          %v1404 = vadd.f32 %v1276, %v1317
          %v1405 = vadd.f32 %v1277, %v1321
          %v1406 = vadd.f32 %v1278, %v1325
          %v1407 = vadd.f32 %v1279, %v1329
          %v1408 = vadd.f32 %v1280, %v1333
          %v1409 = vadd.f32 %v1281, %v1337
          %v1410 = vadd.f32 %v1282, %v1317
          %v1411 = vadd.f32 %v1283, %v1321
          %v1412 = vadd.f32 %v1284, %v1325
          %v1413 = vadd.f32 %v1285, %v1329
          %v1414 = vadd.f32 %v1286, %v1333
          %v1415 = vadd.f32 %v1287, %v1337
          %v1416 = vadd.f32 %v1288, %v1317
          %v1417 = vadd.f32 %v1289, %v1321
          %v1418 = vadd.f32 %v1290, %v1325
          %v1419 = vadd.f32 %v1291, %v1329
          %v1420 = vadd.f32 %v1292, %v1333
          %v1421 = vadd.f32 %v1293, %v1337
          %v1422 = vadd.f32 %v1294, %v1317
          %v1423 = vadd.f32 %v1295, %v1321
          %v1424 = vadd.f32 %v1296, %v1325
          %v1425 = vadd.f32 %v1297, %v1329
          %v1426 = vadd.f32 %v1298, %v1333
          %v1427 = vadd.f32 %v1299, %v1337
          %v1428 = vadd.f32 %v1300, %v1317
          %v1429 = vadd.f32 %v1301, %v1321
          %v1430 = vadd.f32 %v1302, %v1325
          %v1431 = vadd.f32 %v1303, %v1329
          %v1432 = vadd.f32 %v1304, %v1333
          %v1433 = vadd.f32 %v1305, %v1337
          %v1434 = vadd.f32 %v1306, %v1317
          %v1435 = vadd.f32 %v1307, %v1321
          %v1436 = vadd.f32 %v1308, %v1325
          %v1437 = vadd.f32 %v1309, %v1329
          %v1438 = vadd.f32 %v1310, %v1333
          %v1439 = vadd.f32 %v1311, %v1337
          %v1440 = vpack.c.bf16 %v1350, %v1344
          %v1441 = vpack.c.bf16 %v1351, %v1345
          %v1442 = vpack.c.bf16 %v1352, %v1346
          %v1443 = vpack.c.bf16 %v1353, %v1347
          %v1444 = vpack.c.bf16 %v1354, %v1348
          %v1445 = vpack.c.bf16 %v1355, %v1349
          %v1446 = vpack.c.bf16 %v1362, %v1356
          %v1447 = vpack.c.bf16 %v1363, %v1357
          %v1448 = vpack.c.bf16 %v1364, %v1358
          %v1449 = vpack.c.bf16 %v1365, %v1359
          %v1450 = vpack.c.bf16 %v1366, %v1360
          %v1451 = vpack.c.bf16 %v1367, %v1361
          %v1452 = vpack.c.bf16 %v1374, %v1368
          %v1453 = vpack.c.bf16 %v1375, %v1369
          %v1454 = vpack.c.bf16 %v1376, %v1370
          %v1455 = vpack.c.bf16 %v1377, %v1371
          %v1456 = vpack.c.bf16 %v1378, %v1372
          %v1457 = vpack.c.bf16 %v1379, %v1373
          %v1458 = vpack.c.bf16 %v1386, %v1380
          %v1459 = vpack.c.bf16 %v1387, %v1381
          %v1460 = vpack.c.bf16 %v1388, %v1382
          %v1461 = vpack.c.bf16 %v1389, %v1383
          %v1462 = vpack.c.bf16 %v1390, %v1384
          %v1463 = vpack.c.bf16 %v1391, %v1385
          %v1464 = vpack.c.bf16 %v1398, %v1392
          %v1465 = vpack.c.bf16 %v1399, %v1393
          %v1466 = vpack.c.bf16 %v1400, %v1394
          %v1467 = vpack.c.bf16 %v1401, %v1395
          %v1468 = vpack.c.bf16 %v1402, %v1396
          %v1469 = vpack.c.bf16 %v1403, %v1397
          %v1470 = vpack.c.bf16 %v1410, %v1404
          %v1471 = vpack.c.bf16 %v1411, %v1405
          %v1472 = vpack.c.bf16 %v1412, %v1406
          %v1473 = vpack.c.bf16 %v1413, %v1407
          %v1474 = vpack.c.bf16 %v1414, %v1408
          %v1475 = vpack.c.bf16 %v1415, %v1409
          %v1476 = vpack.c.bf16 %v1422, %v1416
          %v1477 = vpack.c.bf16 %v1423, %v1417
          %v1478 = vpack.c.bf16 %v1424, %v1418
          %v1479 = vpack.c.bf16 %v1425, %v1419
          %v1480 = vpack.c.bf16 %v1426, %v1420
          %v1481 = vpack.c.bf16 %v1427, %v1421
          %v1482 = vpack.c.bf16 %v1434, %v1428
          %v1483 = vpack.c.bf16 %v1435, %v1429
          %v1484 = vpack.c.bf16 %v1436, %v1430
          %v1485 = vpack.c.bf16 %v1437, %v1431
          %v1486 = vpack.c.bf16 %v1438, %v1432
          %v1487 = vpack.c.bf16 %v1439, %v1433
          %v1536 = vunpack.c.l.b16 %v1440
          %v1537 = vunpack.c.l.b16 %v1441
          %v1538 = vunpack.c.l.b16 %v1442
          %v1539 = vunpack.c.l.b16 %v1443
          %v1540 = vunpack.c.l.b16 %v1444
          %v1541 = vunpack.c.l.b16 %v1445
          %v1542 = vunpack.c.h.b16 %v1440
          %v1543 = vunpack.c.h.b16 %v1441
          %v1544 = vunpack.c.h.b16 %v1442
          %v1545 = vunpack.c.h.b16 %v1443
          %v1546 = vunpack.c.h.b16 %v1444
          %v1547 = vunpack.c.h.b16 %v1445
          %v1548 = vunpack.c.l.b16 %v1446
          %v1549 = vunpack.c.l.b16 %v1447
          %v1550 = vunpack.c.l.b16 %v1448
          %v1551 = vunpack.c.l.b16 %v1449
          %v1552 = vunpack.c.l.b16 %v1450
          %v1553 = vunpack.c.l.b16 %v1451
          %v1554 = vunpack.c.h.b16 %v1446
          %v1555 = vunpack.c.h.b16 %v1447
          %v1556 = vunpack.c.h.b16 %v1448
          %v1557 = vunpack.c.h.b16 %v1449
          %v1558 = vunpack.c.h.b16 %v1450
          %v1559 = vunpack.c.h.b16 %v1451
          %v1560 = vunpack.c.l.b16 %v1452
          %v1561 = vunpack.c.l.b16 %v1453
          %v1562 = vunpack.c.l.b16 %v1454
          %v1563 = vunpack.c.l.b16 %v1455
          %v1564 = vunpack.c.l.b16 %v1456
          %v1565 = vunpack.c.l.b16 %v1457
          %v1566 = vunpack.c.h.b16 %v1452
          %v1567 = vunpack.c.h.b16 %v1453
          %v1568 = vunpack.c.h.b16 %v1454
          %v1569 = vunpack.c.h.b16 %v1455
          %v1570 = vunpack.c.h.b16 %v1456
          %v1571 = vunpack.c.h.b16 %v1457
          %v1572 = vunpack.c.l.b16 %v1458
          %v1573 = vunpack.c.l.b16 %v1459
          %v1574 = vunpack.c.l.b16 %v1460
          %v1575 = vunpack.c.l.b16 %v1461
          %v1576 = vunpack.c.l.b16 %v1462
          %v1577 = vunpack.c.l.b16 %v1463
          %v1578 = vunpack.c.h.b16 %v1458
          %v1579 = vunpack.c.h.b16 %v1459
          %v1580 = vunpack.c.h.b16 %v1460
          %v1581 = vunpack.c.h.b16 %v1461
          %v1582 = vunpack.c.h.b16 %v1462
          %v1583 = vunpack.c.h.b16 %v1463
          %v1584 = vunpack.c.l.b16 %v1464
          %v1585 = vunpack.c.l.b16 %v1465
          %v1586 = vunpack.c.l.b16 %v1466
          %v1587 = vunpack.c.l.b16 %v1467
          %v1588 = vunpack.c.l.b16 %v1468
          %v1589 = vunpack.c.l.b16 %v1469
          %v1590 = vunpack.c.h.b16 %v1464
          %v1591 = vunpack.c.h.b16 %v1465
          %v1592 = vunpack.c.h.b16 %v1466
          %v1593 = vunpack.c.h.b16 %v1467
          %v1594 = vunpack.c.h.b16 %v1468
          %v1595 = vunpack.c.h.b16 %v1469
          %v1596 = vunpack.c.l.b16 %v1470
          %v1597 = vunpack.c.l.b16 %v1471
          %v1598 = vunpack.c.l.b16 %v1472
          %v1599 = vunpack.c.l.b16 %v1473
          %v1600 = vunpack.c.l.b16 %v1474
          %v1601 = vunpack.c.l.b16 %v1475
          %v1602 = vunpack.c.h.b16 %v1470
          %v1603 = vunpack.c.h.b16 %v1471
          %v1604 = vunpack.c.h.b16 %v1472
          %v1605 = vunpack.c.h.b16 %v1473
          %v1606 = vunpack.c.h.b16 %v1474
          %v1607 = vunpack.c.h.b16 %v1475
          %v1608 = vunpack.c.l.b16 %v1476
          %v1609 = vunpack.c.l.b16 %v1477
          %v1610 = vunpack.c.l.b16 %v1478
          %v1611 = vunpack.c.l.b16 %v1479
          %v1612 = vunpack.c.l.b16 %v1480
          %v1613 = vunpack.c.l.b16 %v1481
          %v1614 = vunpack.c.h.b16 %v1476
          %v1615 = vunpack.c.h.b16 %v1477
          %v1616 = vunpack.c.h.b16 %v1478
          %v1617 = vunpack.c.h.b16 %v1479
          %v1618 = vunpack.c.h.b16 %v1480
          %v1619 = vunpack.c.h.b16 %v1481
          %v1620 = vunpack.c.l.b16 %v1482
          %v1621 = vunpack.c.l.b16 %v1483
          %v1622 = vunpack.c.l.b16 %v1484
          %v1623 = vunpack.c.l.b16 %v1485
          %v1624 = vunpack.c.l.b16 %v1486
          %v1625 = vunpack.c.l.b16 %v1487
          %v1626 = vunpack.c.h.b16 %v1482
          %v1627 = vunpack.c.h.b16 %v1483
          %v1628 = vunpack.c.h.b16 %v1484
          %v1629 = vunpack.c.h.b16 %v1485
          %v1630 = vunpack.c.h.b16 %v1486
          %v1631 = vunpack.c.h.b16 %v1487
          %v1632 = vpack.c.b16 %v1537, %v1536
          %v1633 = vpack.c.b16 %v1539, %v1538
          %v1634 = vpack.c.b16 %v1541, %v1540
          %v1635 = vpack.c.b16 %v1543, %v1542
          %v1636 = vpack.c.b16 %v1545, %v1544
          %v1637 = vpack.c.b16 %v1547, %v1546
          %v1638 = vpack.c.b16 %v1549, %v1548
          %v1639 = vpack.c.b16 %v1551, %v1550
          %v1640 = vpack.c.b16 %v1553, %v1552
          %v1641 = vpack.c.b16 %v1555, %v1554
          %v1642 = vpack.c.b16 %v1557, %v1556
          %v1643 = vpack.c.b16 %v1559, %v1558
          %v1644 = vpack.c.b16 %v1561, %v1560
          %v1645 = vpack.c.b16 %v1563, %v1562
          %v1646 = vpack.c.b16 %v1565, %v1564
          %v1647 = vpack.c.b16 %v1567, %v1566
          %v1648 = vpack.c.b16 %v1569, %v1568
          %v1649 = vpack.c.b16 %v1571, %v1570
          %v1650 = vpack.c.b16 %v1573, %v1572
          %v1651 = vpack.c.b16 %v1575, %v1574
          %v1652 = vpack.c.b16 %v1577, %v1576
          %v1653 = vpack.c.b16 %v1579, %v1578
          %v1654 = vpack.c.b16 %v1581, %v1580
          %v1655 = vpack.c.b16 %v1583, %v1582
          %v1656 = vpack.c.b16 %v1585, %v1584
          %v1657 = vpack.c.b16 %v1587, %v1586
          %v1658 = vpack.c.b16 %v1589, %v1588
          %v1659 = vpack.c.b16 %v1591, %v1590
          %v1660 = vpack.c.b16 %v1593, %v1592
          %v1661 = vpack.c.b16 %v1595, %v1594
          %v1662 = vpack.c.b16 %v1597, %v1596
          %v1663 = vpack.c.b16 %v1599, %v1598
          %v1664 = vpack.c.b16 %v1601, %v1600
          %v1665 = vpack.c.b16 %v1603, %v1602
          %v1666 = vpack.c.b16 %v1605, %v1604
          %v1667 = vpack.c.b16 %v1607, %v1606
          %v1668 = vpack.c.b16 %v1609, %v1608
          %v1669 = vpack.c.b16 %v1611, %v1610
          %v1670 = vpack.c.b16 %v1613, %v1612
          %v1671 = vpack.c.b16 %v1615, %v1614
          %v1672 = vpack.c.b16 %v1617, %v1616
          %v1673 = vpack.c.b16 %v1619, %v1618
          %v1674 = vpack.c.b16 %v1621, %v1620
          %v1675 = vpack.c.b16 %v1623, %v1622
          %v1676 = vpack.c.b16 %v1625, %v1624
          %v1677 = vpack.c.b16 %v1627, %v1626
          %v1678 = vpack.c.b16 %v1629, %v1628
          %v1679 = vpack.c.b16 %v1631, %v1630
          %1728 = vst [vmem:[#allocation2] sm:$0xff] %v1632
          %1729 = vst [vmem:[#allocation2 + $0x8] sm:$0xff] %v1633
          %1730 = vst [vmem:[#allocation2 + $0x10] sm:$0xff] %v1634
          %1731 = vst [vmem:[#allocation2 + $0x18] sm:$0xff] %v1635
          %1732 = vst [vmem:[#allocation2 + $0x20] sm:$0xff] %v1636
          %1733 = vst [vmem:[#allocation2 + $0x28] sm:$0xff] %v1637
          %1734 = vst [vmem:[#allocation2 + $0x30] sm:$0xff] %v1638
          %1735 = vst [vmem:[#allocation2 + $0x38] sm:$0xff] %v1639
          %1736 = vst [vmem:[#allocation2 + $0x40] sm:$0xff] %v1640
          %1737 = vst [vmem:[#allocation2 + $0x48] sm:$0xff] %v1641
          %1738 = vst [vmem:[#allocation2 + $0x50] sm:$0xff] %v1642
          %1739 = vst [vmem:[#allocation2 + $0x58] sm:$0xff] %v1643
          %1740 = vst [vmem:[#allocation2 + $0x60] sm:$0xff] %v1644
          %1741 = vst [vmem:[#allocation2 + $0x68] sm:$0xff] %v1645
          %1742 = vst [vmem:[#allocation2 + $0x70] sm:$0xff] %v1646
          %1743 = vst [vmem:[#allocation2 + $0x78] sm:$0xff] %v1647
          %1744 = vst [vmem:[#allocation2 + $0x80] sm:$0xff] %v1648
          %1745 = vst [vmem:[#allocation2 + $0x88] sm:$0xff] %v1649
          %1746 = vst [vmem:[#allocation2 + $0x90] sm:$0xff] %v1650
          %1747 = vst [vmem:[#allocation2 + $0x98] sm:$0xff] %v1651
          %1748 = vst [vmem:[#allocation2 + $0xa0] sm:$0xff] %v1652
          %1749 = vst [vmem:[#allocation2 + $0xa8] sm:$0xff] %v1653
          %1750 = vst [vmem:[#allocation2 + $0xb0] sm:$0xff] %v1654
          %1751 = vst [vmem:[#allocation2 + $0xb8] sm:$0xff] %v1655
          %1752 = vst [vmem:[#allocation2 + $0xc0] sm:$0xff] %v1656
          %1753 = vst [vmem:[#allocation2 + $0xc8] sm:$0xff] %v1657
          %1754 = vst [vmem:[#allocation2 + $0xd0] sm:$0xff] %v1658
          %1755 = vst [vmem:[#allocation2 + $0xd8] sm:$0xff] %v1659
          %1756 = vst [vmem:[#allocation2 + $0xe0] sm:$0xff] %v1660
          %1757 = vst [vmem:[#allocation2 + $0xe8] sm:$0xff] %v1661
          %1758 = vst [vmem:[#allocation2 + $0xf0] sm:$0xff] %v1662
          %1759 = vst [vmem:[#allocation2 + $0xf8] sm:$0xff] %v1663
          %1760 = vst [vmem:[#allocation2 + $0x100] sm:$0xff] %v1664
          %1761 = vst [vmem:[#allocation2 + $0x108] sm:$0xff] %v1665
          %1762 = vst [vmem:[#allocation2 + $0x110] sm:$0xff] %v1666
          %1763 = vst [vmem:[#allocation2 + $0x118] sm:$0xff] %v1667
          %1764 = vst [vmem:[#allocation2 + $0x120] sm:$0xff] %v1668
          %1765 = vst [vmem:[#allocation2 + $0x128] sm:$0xff] %v1669
          %1766 = vst [vmem:[#allocation2 + $0x130] sm:$0xff] %v1670
          %1767 = vst [vmem:[#allocation2 + $0x138] sm:$0xff] %v1671
          %1768 = vst [vmem:[#allocation2 + $0x140] sm:$0xff] %v1672
          %1769 = vst [vmem:[#allocation2 + $0x148] sm:$0xff] %v1673
          %1770 = vst [vmem:[#allocation2 + $0x150] sm:$0xff] %v1674
          %1771 = vst [vmem:[#allocation2 + $0x158] sm:$0xff] %v1675
          %1772 = vst [vmem:[#allocation2 + $0x160] sm:$0xff] %v1676
          %1773 = vst [vmem:[#allocation2 + $0x168] sm:$0xff] %v1677
          %1774 = vst [vmem:[#allocation2 + $0x170] sm:$0xff] %v1678
          %1775 = vst [vmem:[#allocation2 + $0x178] sm:$0xff] %v1679
        $region80: #{_fused_forward.1} parent=47 // pred_fallthru
          _
        %p1776 = scmp.eq.s32.totalorder %s33, 1
        // Predicated region
        $region81: #{_fused_forward.1} parent=47 // pred_check
          %p1777 = pneg %p1776
        $region82: #{_fused_forward.1} parent=47 // pred_check_branch
          %1779 = sbr.rel (%p1777) target = $region84
        $region83: #{_fused_forward.1} parent=47 // pred_region
          %v1780 = vld [vmem:[%s397] sm:$0xff]
          %v1781 = vld [vmem:[%s397 + $0x8] sm:$0xff]
          %v1782 = vld [vmem:[%s397 + $0x10] sm:$0xff]
          %v1783 = vld [vmem:[%s397 + $0x18] sm:$0xff]
          %v1784 = vld [vmem:[%s397 + $0x20] sm:$0xff]
          %v1785 = vld [vmem:[%s397 + $0x28] sm:$0xff]
          %v1786 = vld [vmem:[%s397 + $0x30] sm:$0xff]
          %v1787 = vld [vmem:[%s397 + $0x38] sm:$0xff]
          %v1788 = vld [vmem:[%s397 + $0x40] sm:$0xff]
          %v1789 = vld [vmem:[%s397 + $0x48] sm:$0xff]
          %v1790 = vld [vmem:[%s397 + $0x50] sm:$0xff]
          %v1791 = vld [vmem:[%s397 + $0x58] sm:$0xff]
          %v1792 = vld [vmem:[%s397 + $0x60] sm:$0xff]
          %v1793 = vld [vmem:[%s397 + $0x68] sm:$0xff]
          %v1794 = vld [vmem:[%s397 + $0x70] sm:$0xff]
          %v1795 = vld [vmem:[%s397 + $0x78] sm:$0xff]
          %v1796 = vld [vmem:[%s397 + $0x80] sm:$0xff]
          %v1797 = vld [vmem:[%s397 + $0x88] sm:$0xff]
          %v1798 = vld [vmem:[%s397 + $0x90] sm:$0xff]
          %v1799 = vld [vmem:[%s397 + $0x98] sm:$0xff]
          %v1800 = vld [vmem:[%s397 + $0xa0] sm:$0xff]
          %v1801 = vld [vmem:[%s397 + $0xa8] sm:$0xff]
          %v1802 = vld [vmem:[%s397 + $0xb0] sm:$0xff]
          %v1803 = vld [vmem:[%s397 + $0xb8] sm:$0xff]
          %v1804 = vld [vmem:[%s397 + $0xc0] sm:$0xff]
          %v1805 = vld [vmem:[%s397 + $0xc8] sm:$0xff]
          %v1806 = vld [vmem:[%s397 + $0xd0] sm:$0xff]
          %v1807 = vld [vmem:[%s397 + $0xd8] sm:$0xff]
          %v1808 = vld [vmem:[%s397 + $0xe0] sm:$0xff]
          %v1809 = vld [vmem:[%s397 + $0xe8] sm:$0xff]
          %v1810 = vld [vmem:[%s397 + $0xf0] sm:$0xff]
          %v1811 = vld [vmem:[%s397 + $0xf8] sm:$0xff]
          %v1812 = vld [vmem:[%s397 + $0x100] sm:$0xff]
          %v1813 = vld [vmem:[%s397 + $0x108] sm:$0xff]
          %v1814 = vld [vmem:[%s397 + $0x110] sm:$0xff]
          %v1815 = vld [vmem:[%s397 + $0x118] sm:$0xff]
          %v1816 = vld [vmem:[%s397 + $0x120] sm:$0xff]
          %v1817 = vld [vmem:[%s397 + $0x128] sm:$0xff]
          %v1818 = vld [vmem:[%s397 + $0x130] sm:$0xff]
          %v1819 = vld [vmem:[%s397 + $0x138] sm:$0xff]
          %v1820 = vld [vmem:[%s397 + $0x140] sm:$0xff]
          %v1821 = vld [vmem:[%s397 + $0x148] sm:$0xff]
          %v1822 = vld [vmem:[%s397 + $0x150] sm:$0xff]
          %v1823 = vld [vmem:[%s397 + $0x158] sm:$0xff]
          %v1824 = vld [vmem:[%s397 + $0x160] sm:$0xff]
          %v1825 = vld [vmem:[%s397 + $0x168] sm:$0xff]
          %v1826 = vld [vmem:[%s397 + $0x170] sm:$0xff]
          %v1827 = vld [vmem:[%s397 + $0x178] sm:$0xff]
          %1828 = vst [vmem:[#allocation2] sm:$0xff] %v1780
          %1829 = vst [vmem:[#allocation2 + $0x8] sm:$0xff] %v1781
          %1830 = vst [vmem:[#allocation2 + $0x10] sm:$0xff] %v1782
          %1831 = vst [vmem:[#allocation2 + $0x18] sm:$0xff] %v1783
          %1832 = vst [vmem:[#allocation2 + $0x20] sm:$0xff] %v1784
          %1833 = vst [vmem:[#allocation2 + $0x28] sm:$0xff] %v1785
          %1834 = vst [vmem:[#allocation2 + $0x30] sm:$0xff] %v1786
          %1835 = vst [vmem:[#allocation2 + $0x38] sm:$0xff] %v1787
          %1836 = vst [vmem:[#allocation2 + $0x40] sm:$0xff] %v1788
          %1837 = vst [vmem:[#allocation2 + $0x48] sm:$0xff] %v1789
          %1838 = vst [vmem:[#allocation2 + $0x50] sm:$0xff] %v1790
          %1839 = vst [vmem:[#allocation2 + $0x58] sm:$0xff] %v1791
          %1840 = vst [vmem:[#allocation2 + $0x60] sm:$0xff] %v1792
          %1841 = vst [vmem:[#allocation2 + $0x68] sm:$0xff] %v1793
          %1842 = vst [vmem:[#allocation2 + $0x70] sm:$0xff] %v1794
          %1843 = vst [vmem:[#allocation2 + $0x78] sm:$0xff] %v1795
          %1844 = vst [vmem:[#allocation2 + $0x80] sm:$0xff] %v1796
          %1845 = vst [vmem:[#allocation2 + $0x88] sm:$0xff] %v1797
          %1846 = vst [vmem:[#allocation2 + $0x90] sm:$0xff] %v1798
          %1847 = vst [vmem:[#allocation2 + $0x98] sm:$0xff] %v1799
          %1848 = vst [vmem:[#allocation2 + $0xa0] sm:$0xff] %v1800
          %1849 = vst [vmem:[#allocation2 + $0xa8] sm:$0xff] %v1801
          %1850 = vst [vmem:[#allocation2 + $0xb0] sm:$0xff] %v1802
          %1851 = vst [vmem:[#allocation2 + $0xb8] sm:$0xff] %v1803
          %1852 = vst [vmem:[#allocation2 + $0xc0] sm:$0xff] %v1804
          %1853 = vst [vmem:[#allocation2 + $0xc8] sm:$0xff] %v1805
          %1854 = vst [vmem:[#allocation2 + $0xd0] sm:$0xff] %v1806
          %1855 = vst [vmem:[#allocation2 + $0xd8] sm:$0xff] %v1807
          %1856 = vst [vmem:[#allocation2 + $0xe0] sm:$0xff] %v1808
          %1857 = vst [vmem:[#allocation2 + $0xe8] sm:$0xff] %v1809
          %1858 = vst [vmem:[#allocation2 + $0xf0] sm:$0xff] %v1810
          %1859 = vst [vmem:[#allocation2 + $0xf8] sm:$0xff] %v1811
          %1860 = vst [vmem:[#allocation2 + $0x100] sm:$0xff] %v1812
          %1861 = vst [vmem:[#allocation2 + $0x108] sm:$0xff] %v1813
          %1862 = vst [vmem:[#allocation2 + $0x110] sm:$0xff] %v1814
          %1863 = vst [vmem:[#allocation2 + $0x118] sm:$0xff] %v1815
          %1864 = vst [vmem:[#allocation2 + $0x120] sm:$0xff] %v1816
          %1865 = vst [vmem:[#allocation2 + $0x128] sm:$0xff] %v1817
          %1866 = vst [vmem:[#allocation2 + $0x130] sm:$0xff] %v1818
          %1867 = vst [vmem:[#allocation2 + $0x138] sm:$0xff] %v1819
          %1868 = vst [vmem:[#allocation2 + $0x140] sm:$0xff] %v1820
          %1869 = vst [vmem:[#allocation2 + $0x148] sm:$0xff] %v1821
          %1870 = vst [vmem:[#allocation2 + $0x150] sm:$0xff] %v1822
          %1871 = vst [vmem:[#allocation2 + $0x158] sm:$0xff] %v1823
          %1872 = vst [vmem:[#allocation2 + $0x160] sm:$0xff] %v1824
          %1873 = vst [vmem:[#allocation2 + $0x168] sm:$0xff] %v1825
          %1874 = vst [vmem:[#allocation2 + $0x170] sm:$0xff] %v1826
          %1875 = vst [vmem:[#allocation2 + $0x178] sm:$0xff] %v1827
        $region84: #{_fused_forward.1} parent=47 // pred_fallthru
          _
        %v1876 = vld [vmem:[#allocation2] sm:$0xff]
        %v1877 = vld [vmem:[#allocation2 + $0x8] sm:$0xff]
        %v1878 = vld [vmem:[#allocation2 + $0x10] sm:$0xff]
        %v1879 = vld [vmem:[#allocation2 + $0x18] sm:$0xff]
        %v1880 = vld [vmem:[#allocation2 + $0x20] sm:$0xff]
        %v1881 = vld [vmem:[#allocation2 + $0x28] sm:$0xff]
        %v1882 = vld [vmem:[#allocation2 + $0x30] sm:$0xff]
        %v1883 = vld [vmem:[#allocation2 + $0x38] sm:$0xff]
        %v1884 = vld [vmem:[#allocation2 + $0x40] sm:$0xff]
        %v1885 = vld [vmem:[#allocation2 + $0x48] sm:$0xff]
        %v1886 = vld [vmem:[#allocation2 + $0x50] sm:$0xff]
        %v1887 = vld [vmem:[#allocation2 + $0x58] sm:$0xff]
        %v1888 = vld [vmem:[#allocation2 + $0x60] sm:$0xff]
        %v1889 = vld [vmem:[#allocation2 + $0x68] sm:$0xff]
        %v1890 = vld [vmem:[#allocation2 + $0x70] sm:$0xff]
        %v1891 = vld [vmem:[#allocation2 + $0x78] sm:$0xff]
        %v1892 = vld [vmem:[#allocation2 + $0x80] sm:$0xff]
        %v1893 = vld [vmem:[#allocation2 + $0x88] sm:$0xff]
        %v1894 = vld [vmem:[#allocation2 + $0x90] sm:$0xff]
        %v1895 = vld [vmem:[#allocation2 + $0x98] sm:$0xff]
        %v1896 = vld [vmem:[#allocation2 + $0xa0] sm:$0xff]
        %v1897 = vld [vmem:[#allocation2 + $0xa8] sm:$0xff]
        %v1898 = vld [vmem:[#allocation2 + $0xb0] sm:$0xff]
        %v1899 = vld [vmem:[#allocation2 + $0xb8] sm:$0xff]
        %v1900 = vld [vmem:[#allocation2 + $0xc0] sm:$0xff]
        %v1901 = vld [vmem:[#allocation2 + $0xc8] sm:$0xff]
        %v1902 = vld [vmem:[#allocation2 + $0xd0] sm:$0xff]
        %v1903 = vld [vmem:[#allocation2 + $0xd8] sm:$0xff]
        %v1904 = vld [vmem:[#allocation2 + $0xe0] sm:$0xff]
        %v1905 = vld [vmem:[#allocation2 + $0xe8] sm:$0xff]
        %v1906 = vld [vmem:[#allocation2 + $0xf0] sm:$0xff]
        %v1907 = vld [vmem:[#allocation2 + $0xf8] sm:$0xff]
        %v1908 = vld [vmem:[#allocation2 + $0x100] sm:$0xff]
        %v1909 = vld [vmem:[#allocation2 + $0x108] sm:$0xff]
        %v1910 = vld [vmem:[#allocation2 + $0x110] sm:$0xff]
        %v1911 = vld [vmem:[#allocation2 + $0x118] sm:$0xff]
        %v1912 = vld [vmem:[#allocation2 + $0x120] sm:$0xff]
        %v1913 = vld [vmem:[#allocation2 + $0x128] sm:$0xff]
        %v1914 = vld [vmem:[#allocation2 + $0x130] sm:$0xff]
        %v1915 = vld [vmem:[#allocation2 + $0x138] sm:$0xff]
        %v1916 = vld [vmem:[#allocation2 + $0x140] sm:$0xff]
        %v1917 = vld [vmem:[#allocation2 + $0x148] sm:$0xff]
        %v1918 = vld [vmem:[#allocation2 + $0x150] sm:$0xff]
        %v1919 = vld [vmem:[#allocation2 + $0x158] sm:$0xff]
        %v1920 = vld [vmem:[#allocation2 + $0x160] sm:$0xff]
        %v1921 = vld [vmem:[#allocation2 + $0x168] sm:$0xff]
        %v1922 = vld [vmem:[#allocation2 + $0x170] sm:$0xff]
        %v1923 = vld [vmem:[#allocation2 + $0x178] sm:$0xff]
        %v1924 = vld [vmem:[#allocation11] sm:$0xff]
        %v1925 = vld [vmem:[#allocation11 + $0x8] sm:$0xff]
        %v1926 = vld [vmem:[#allocation11 + $0x10] sm:$0xff]
        %v1927 = vld [vmem:[#allocation11 + $0x18] sm:$0xff]
        %v1928 = vld [vmem:[#allocation11 + $0x20] sm:$0xff]
        %v1929 = vld [vmem:[#allocation11 + $0x28] sm:$0xff]
        %v1930 = vld [vmem:[#allocation11 + $0x30] sm:$0xff]
        %v1931 = vld [vmem:[#allocation11 + $0x38] sm:$0xff]
        %v1932 = vld [vmem:[#allocation11 + $0x40] sm:$0xff]
        %v1933 = vld [vmem:[#allocation11 + $0x48] sm:$0xff]
        %v1934 = vld [vmem:[#allocation11 + $0x50] sm:$0xff]
        %v1935 = vld [vmem:[#allocation11 + $0x58] sm:$0xff]
        %v1936 = vld [vmem:[#allocation11 + $0x60] sm:$0xff]
        %v1937 = vld [vmem:[#allocation11 + $0x68] sm:$0xff]
        %v1938 = vld [vmem:[#allocation11 + $0x70] sm:$0xff]
        %v1939 = vld [vmem:[#allocation11 + $0x78] sm:$0xff]
        %v1940 = vld [vmem:[#allocation11 + $0x80] sm:$0xff]
        %v1941 = vld [vmem:[#allocation11 + $0x88] sm:$0xff]
        %v1942 = vld [vmem:[#allocation11 + $0x90] sm:$0xff]
        %v1943 = vld [vmem:[#allocation11 + $0x98] sm:$0xff]
        %v1944 = vld [vmem:[#allocation11 + $0xa0] sm:$0xff]
        %v1945 = vld [vmem:[#allocation11 + $0xa8] sm:$0xff]
        %v1946 = vld [vmem:[#allocation11 + $0xb0] sm:$0xff]
        %v1947 = vld [vmem:[#allocation11 + $0xb8] sm:$0xff]
        %v1948 = vld [vmem:[#allocation11 + $0xc0] sm:$0xff]
        %v1949 = vld [vmem:[#allocation11 + $0xc8] sm:$0xff]
        %v1950 = vld [vmem:[#allocation11 + $0xd0] sm:$0xff]
        %v1951 = vld [vmem:[#allocation11 + $0xd8] sm:$0xff]
        %v1952 = vld [vmem:[#allocation11 + $0xe0] sm:$0xff]
        %v1953 = vld [vmem:[#allocation11 + $0xe8] sm:$0xff]
        %v1954 = vld [vmem:[#allocation11 + $0xf0] sm:$0xff]
        %v1955 = vld [vmem:[#allocation11 + $0xf8] sm:$0xff]
        %v1956 = vld [vmem:[#allocation11 + $0x100] sm:$0xff]
        %v1957 = vld [vmem:[#allocation11 + $0x108] sm:$0xff]
        %v1958 = vld [vmem:[#allocation11 + $0x110] sm:$0xff]
        %v1959 = vld [vmem:[#allocation11 + $0x118] sm:$0xff]
        %v1960 = vld [vmem:[#allocation11 + $0x120] sm:$0xff]
        %v1961 = vld [vmem:[#allocation11 + $0x128] sm:$0xff]
        %v1962 = vld [vmem:[#allocation11 + $0x130] sm:$0xff]
        %v1963 = vld [vmem:[#allocation11 + $0x138] sm:$0xff]
        %v1964 = vld [vmem:[#allocation11 + $0x140] sm:$0xff]
        %v1965 = vld [vmem:[#allocation11 + $0x148] sm:$0xff]
        %v1966 = vld [vmem:[#allocation11 + $0x150] sm:$0xff]
        %v1967 = vld [vmem:[#allocation11 + $0x158] sm:$0xff]
        %v1968 = vld [vmem:[#allocation11 + $0x160] sm:$0xff]
        %v1969 = vld [vmem:[#allocation11 + $0x168] sm:$0xff]
        %v1970 = vld [vmem:[#allocation11 + $0x170] sm:$0xff]
        %v1971 = vld [vmem:[#allocation11 + $0x178] sm:$0xff]
        %v1972 = vld [vmem:[#allocation11 + $0x180] sm:$0xff]
        %v1973 = vld [vmem:[#allocation11 + $0x188] sm:$0xff]
        %v1974 = vld [vmem:[#allocation11 + $0x190] sm:$0xff]
        %v1975 = vld [vmem:[#allocation11 + $0x198] sm:$0xff]
        %v1976 = vld [vmem:[#allocation11 + $0x1a0] sm:$0xff]
        %v1977 = vld [vmem:[#allocation11 + $0x1a8] sm:$0xff]
        %v1978 = vld [vmem:[#allocation11 + $0x1b0] sm:$0xff]
        %v1979 = vld [vmem:[#allocation11 + $0x1b8] sm:$0xff]
        %v1980 = vld [vmem:[#allocation11 + $0x1c0] sm:$0xff]
        %v1981 = vld [vmem:[#allocation11 + $0x1c8] sm:$0xff]
        %v1982 = vld [vmem:[#allocation11 + $0x1d0] sm:$0xff]
        %v1983 = vld [vmem:[#allocation11 + $0x1d8] sm:$0xff]
        %v1984 = vld [vmem:[#allocation11 + $0x1e0] sm:$0xff]
        %v1985 = vld [vmem:[#allocation11 + $0x1e8] sm:$0xff]
        %v1986 = vld [vmem:[#allocation11 + $0x1f0] sm:$0xff]
        %v1987 = vld [vmem:[#allocation11 + $0x1f8] sm:$0xff]
        %v1988 = vld [vmem:[#allocation11 + $0x200] sm:$0xff]
        %v1989 = vld [vmem:[#allocation11 + $0x208] sm:$0xff]
        %v1990 = vld [vmem:[#allocation11 + $0x210] sm:$0xff]
        %v1991 = vld [vmem:[#allocation11 + $0x218] sm:$0xff]
        %v1992 = vld [vmem:[#allocation11 + $0x220] sm:$0xff]
        %v1993 = vld [vmem:[#allocation11 + $0x228] sm:$0xff]
        %v1994 = vld [vmem:[#allocation11 + $0x230] sm:$0xff]
        %v1995 = vld [vmem:[#allocation11 + $0x238] sm:$0xff]
        %v1996 = vld [vmem:[#allocation11 + $0x240] sm:$0xff]
        %v1997 = vld [vmem:[#allocation11 + $0x248] sm:$0xff]
        %v1998 = vld [vmem:[#allocation11 + $0x250] sm:$0xff]
        %v1999 = vld [vmem:[#allocation11 + $0x258] sm:$0xff]
        %v2000 = vld [vmem:[#allocation11 + $0x260] sm:$0xff]
        %v2001 = vld [vmem:[#allocation11 + $0x268] sm:$0xff]
        %v2002 = vld [vmem:[#allocation11 + $0x270] sm:$0xff]
        %v2003 = vld [vmem:[#allocation11 + $0x278] sm:$0xff]
        %v2004 = vld [vmem:[#allocation11 + $0x280] sm:$0xff]
        %v2005 = vld [vmem:[#allocation11 + $0x288] sm:$0xff]
        %v2006 = vld [vmem:[#allocation11 + $0x290] sm:$0xff]
        %v2007 = vld [vmem:[#allocation11 + $0x298] sm:$0xff]
        %v2008 = vld [vmem:[#allocation11 + $0x2a0] sm:$0xff]
        %v2009 = vld [vmem:[#allocation11 + $0x2a8] sm:$0xff]
        %v2010 = vld [vmem:[#allocation11 + $0x2b0] sm:$0xff]
        %v2011 = vld [vmem:[#allocation11 + $0x2b8] sm:$0xff]
        %v2012 = vld [vmem:[#allocation11 + $0x2c0] sm:$0xff]
        %v2013 = vld [vmem:[#allocation11 + $0x2c8] sm:$0xff]
        %v2014 = vld [vmem:[#allocation11 + $0x2d0] sm:$0xff]
        %v2015 = vld [vmem:[#allocation11 + $0x2d8] sm:$0xff]
        %v2016 = vld [vmem:[#allocation11 + $0x2e0] sm:$0xff]
        %v2017 = vld [vmem:[#allocation11 + $0x2e8] sm:$0xff]
        %v2018 = vld [vmem:[#allocation11 + $0x2f0] sm:$0xff]
        %v2019 = vld [vmem:[#allocation11 + $0x2f8] sm:$0xff]
        %v2020 = vld [vmem:[#allocation11 + $0x300] sm:$0xff]
        %v2021 = vld [vmem:[#allocation11 + $0x308] sm:$0xff]
        %v2022 = vld [vmem:[#allocation11 + $0x310] sm:$0xff]
        %v2023 = vld [vmem:[#allocation11 + $0x318] sm:$0xff]
        %v2024 = vld [vmem:[#allocation11 + $0x320] sm:$0xff]
        %v2025 = vld [vmem:[#allocation11 + $0x328] sm:$0xff]
        %v2026 = vld [vmem:[#allocation11 + $0x330] sm:$0xff]
        %v2027 = vld [vmem:[#allocation11 + $0x338] sm:$0xff]
        %v2028 = vld [vmem:[#allocation11 + $0x340] sm:$0xff]
        %v2029 = vld [vmem:[#allocation11 + $0x348] sm:$0xff]
        %v2030 = vld [vmem:[#allocation11 + $0x350] sm:$0xff]
        %v2031 = vld [vmem:[#allocation11 + $0x358] sm:$0xff]
        %v2032 = vld [vmem:[#allocation11 + $0x360] sm:$0xff]
        %v2033 = vld [vmem:[#allocation11 + $0x368] sm:$0xff]
        %v2034 = vld [vmem:[#allocation11 + $0x370] sm:$0xff]
        %v2035 = vld [vmem:[#allocation11 + $0x378] sm:$0xff]
        %v2036 = vld [vmem:[#allocation11 + $0x380] sm:$0xff]
        %v2037 = vld [vmem:[#allocation11 + $0x388] sm:$0xff]
        %v2038 = vld [vmem:[#allocation11 + $0x390] sm:$0xff]
        %v2039 = vld [vmem:[#allocation11 + $0x398] sm:$0xff]
        %v2040 = vld [vmem:[#allocation11 + $0x3a0] sm:$0xff]
        %v2041 = vld [vmem:[#allocation11 + $0x3a8] sm:$0xff]
        %v2042 = vld [vmem:[#allocation11 + $0x3b0] sm:$0xff]
        %v2043 = vld [vmem:[#allocation11 + $0x3b8] sm:$0xff]
        %v2044 = vld [vmem:[#allocation11 + $0x3c0] sm:$0xff]
        %v2045 = vld [vmem:[#allocation11 + $0x3c8] sm:$0xff]
        %v2046 = vld [vmem:[#allocation11 + $0x3d0] sm:$0xff]
        %v2047 = vld [vmem:[#allocation11 + $0x3d8] sm:$0xff]
        %v2048 = vld [vmem:[#allocation11 + $0x3e0] sm:$0xff]
        %v2049 = vld [vmem:[#allocation11 + $0x3e8] sm:$0xff]
        %v2050 = vld [vmem:[#allocation11 + $0x3f0] sm:$0xff]
        %v2051 = vld [vmem:[#allocation11 + $0x3f8] sm:$0xff]
        %v2052 = vld [vmem:[#allocation11 + $0x400] sm:$0xff]
        %v2053 = vld [vmem:[#allocation11 + $0x408] sm:$0xff]
        %v2054 = vld [vmem:[#allocation11 + $0x410] sm:$0xff]
        %v2055 = vld [vmem:[#allocation11 + $0x418] sm:$0xff]
        %v2056 = vld [vmem:[#allocation11 + $0x420] sm:$0xff]
        %v2057 = vld [vmem:[#allocation11 + $0x428] sm:$0xff]
        %v2058 = vld [vmem:[#allocation11 + $0x430] sm:$0xff]
        %v2059 = vld [vmem:[#allocation11 + $0x438] sm:$0xff]
        %v2060 = vld [vmem:[#allocation11 + $0x440] sm:$0xff]
        %v2061 = vld [vmem:[#allocation11 + $0x448] sm:$0xff]
        %v2062 = vld [vmem:[#allocation11 + $0x450] sm:$0xff]
        %v2063 = vld [vmem:[#allocation11 + $0x458] sm:$0xff]
        %v2064 = vld [vmem:[#allocation11 + $0x460] sm:$0xff]
        %v2065 = vld [vmem:[#allocation11 + $0x468] sm:$0xff]
        %v2066 = vld [vmem:[#allocation11 + $0x470] sm:$0xff]
        %v2067 = vld [vmem:[#allocation11 + $0x478] sm:$0xff]
        %v2068 = vld [vmem:[#allocation11 + $0x480] sm:$0xff]
        %v2069 = vld [vmem:[#allocation11 + $0x488] sm:$0xff]
        %v2070 = vld [vmem:[#allocation11 + $0x490] sm:$0xff]
        %v2071 = vld [vmem:[#allocation11 + $0x498] sm:$0xff]
        %v2072 = vld [vmem:[#allocation11 + $0x4a0] sm:$0xff]
        %v2073 = vld [vmem:[#allocation11 + $0x4a8] sm:$0xff]
        %v2074 = vld [vmem:[#allocation11 + $0x4b0] sm:$0xff]
        %v2075 = vld [vmem:[#allocation11 + $0x4b8] sm:$0xff]
        %v2076 = vld [vmem:[#allocation11 + $0x4c0] sm:$0xff]
        %v2077 = vld [vmem:[#allocation11 + $0x4c8] sm:$0xff]
        %v2078 = vld [vmem:[#allocation11 + $0x4d0] sm:$0xff]
        %v2079 = vld [vmem:[#allocation11 + $0x4d8] sm:$0xff]
        %v2080 = vld [vmem:[#allocation11 + $0x4e0] sm:$0xff]
        %v2081 = vld [vmem:[#allocation11 + $0x4e8] sm:$0xff]
        %v2082 = vld [vmem:[#allocation11 + $0x4f0] sm:$0xff]
        %v2083 = vld [vmem:[#allocation11 + $0x4f8] sm:$0xff]
        %v2084 = vld [vmem:[#allocation11 + $0x500] sm:$0xff]
        %v2085 = vld [vmem:[#allocation11 + $0x508] sm:$0xff]
        %v2086 = vld [vmem:[#allocation11 + $0x510] sm:$0xff]
        %v2087 = vld [vmem:[#allocation11 + $0x518] sm:$0xff]
        %v2088 = vld [vmem:[#allocation11 + $0x520] sm:$0xff]
        %v2089 = vld [vmem:[#allocation11 + $0x528] sm:$0xff]
        %v2090 = vld [vmem:[#allocation11 + $0x530] sm:$0xff]
        %v2091 = vld [vmem:[#allocation11 + $0x538] sm:$0xff]
        %v2092 = vld [vmem:[#allocation11 + $0x540] sm:$0xff]
        %v2093 = vld [vmem:[#allocation11 + $0x548] sm:$0xff]
        %v2094 = vld [vmem:[#allocation11 + $0x550] sm:$0xff]
        %v2095 = vld [vmem:[#allocation11 + $0x558] sm:$0xff]
        %v2096 = vld [vmem:[#allocation11 + $0x560] sm:$0xff]
        %v2097 = vld [vmem:[#allocation11 + $0x568] sm:$0xff]
        %v2098 = vld [vmem:[#allocation11 + $0x570] sm:$0xff]
        %v2099 = vld [vmem:[#allocation11 + $0x578] sm:$0xff]
        %v2100 = vld [vmem:[#allocation11 + $0x580] sm:$0xff]
        %v2101 = vld [vmem:[#allocation11 + $0x588] sm:$0xff]
        %v2102 = vld [vmem:[#allocation11 + $0x590] sm:$0xff]
        %v2103 = vld [vmem:[#allocation11 + $0x598] sm:$0xff]
        %v2104 = vld [vmem:[#allocation11 + $0x5a0] sm:$0xff]
        %v2105 = vld [vmem:[#allocation11 + $0x5a8] sm:$0xff]
        %v2106 = vld [vmem:[#allocation11 + $0x5b0] sm:$0xff]
        %v2107 = vld [vmem:[#allocation11 + $0x5b8] sm:$0xff]
        %v2108 = vld [vmem:[#allocation11 + $0x5c0] sm:$0xff]
        %v2109 = vld [vmem:[#allocation11 + $0x5c8] sm:$0xff]
        %v2110 = vld [vmem:[#allocation11 + $0x5d0] sm:$0xff]
        %v2111 = vld [vmem:[#allocation11 + $0x5d8] sm:$0xff]
        %v2112 = vld [vmem:[#allocation11 + $0x5e0] sm:$0xff]
        %v2113 = vld [vmem:[#allocation11 + $0x5e8] sm:$0xff]
        %v2114 = vld [vmem:[#allocation11 + $0x5f0] sm:$0xff]
        %v2115 = vld [vmem:[#allocation11 + $0x5f8] sm:$0xff]
        %v2116 = vld [vmem:[#allocation11 + $0x600] sm:$0xff]
        %v2117 = vld [vmem:[#allocation11 + $0x608] sm:$0xff]
        %v2118 = vld [vmem:[#allocation11 + $0x610] sm:$0xff]
        %v2119 = vld [vmem:[#allocation11 + $0x618] sm:$0xff]
        %v2120 = vld [vmem:[#allocation11 + $0x620] sm:$0xff]
        %v2121 = vld [vmem:[#allocation11 + $0x628] sm:$0xff]
        %v2122 = vld [vmem:[#allocation11 + $0x630] sm:$0xff]
        %v2123 = vld [vmem:[#allocation11 + $0x638] sm:$0xff]
        %v2124 = vld [vmem:[#allocation11 + $0x640] sm:$0xff]
        %v2125 = vld [vmem:[#allocation11 + $0x648] sm:$0xff]
        %v2126 = vld [vmem:[#allocation11 + $0x650] sm:$0xff]
        %v2127 = vld [vmem:[#allocation11 + $0x658] sm:$0xff]
        %v2128 = vld [vmem:[#allocation11 + $0x660] sm:$0xff]
        %v2129 = vld [vmem:[#allocation11 + $0x668] sm:$0xff]
        %v2130 = vld [vmem:[#allocation11 + $0x670] sm:$0xff]
        %v2131 = vld [vmem:[#allocation11 + $0x678] sm:$0xff]
        %v2132 = vld [vmem:[#allocation11 + $0x680] sm:$0xff]
        %v2133 = vld [vmem:[#allocation11 + $0x688] sm:$0xff]
        %v2134 = vld [vmem:[#allocation11 + $0x690] sm:$0xff]
        %v2135 = vld [vmem:[#allocation11 + $0x698] sm:$0xff]
        %v2136 = vld [vmem:[#allocation11 + $0x6a0] sm:$0xff]
        %v2137 = vld [vmem:[#allocation11 + $0x6a8] sm:$0xff]
        %v2138 = vld [vmem:[#allocation11 + $0x6b0] sm:$0xff]
        %v2139 = vld [vmem:[#allocation11 + $0x6b8] sm:$0xff]
        %v2140 = vld [vmem:[#allocation11 + $0x6c0] sm:$0xff]
        %v2141 = vld [vmem:[#allocation11 + $0x6c8] sm:$0xff]
        %v2142 = vld [vmem:[#allocation11 + $0x6d0] sm:$0xff]
        %v2143 = vld [vmem:[#allocation11 + $0x6d8] sm:$0xff]
        %v2144 = vld [vmem:[#allocation11 + $0x6e0] sm:$0xff]
        %v2145 = vld [vmem:[#allocation11 + $0x6e8] sm:$0xff]
        %v2146 = vld [vmem:[#allocation11 + $0x6f0] sm:$0xff]
        %v2147 = vld [vmem:[#allocation11 + $0x6f8] sm:$0xff]
        %v2148 = vld [vmem:[#allocation11 + $0x700] sm:$0xff]
        %v2149 = vld [vmem:[#allocation11 + $0x708] sm:$0xff]
        %v2150 = vld [vmem:[#allocation11 + $0x710] sm:$0xff]
        %v2151 = vld [vmem:[#allocation11 + $0x718] sm:$0xff]
        %v2152 = vld [vmem:[#allocation11 + $0x720] sm:$0xff]
        %v2153 = vld [vmem:[#allocation11 + $0x728] sm:$0xff]
        %v2154 = vld [vmem:[#allocation11 + $0x730] sm:$0xff]
        %v2155 = vld [vmem:[#allocation11 + $0x738] sm:$0xff]
        %v2156 = vld [vmem:[#allocation11 + $0x740] sm:$0xff]
        %v2157 = vld [vmem:[#allocation11 + $0x748] sm:$0xff]
        %v2158 = vld [vmem:[#allocation11 + $0x750] sm:$0xff]
        %v2159 = vld [vmem:[#allocation11 + $0x758] sm:$0xff]
        %v2160 = vld [vmem:[#allocation11 + $0x760] sm:$0xff]
        %v2161 = vld [vmem:[#allocation11 + $0x768] sm:$0xff]
        %v2162 = vld [vmem:[#allocation11 + $0x770] sm:$0xff]
        %v2163 = vld [vmem:[#allocation11 + $0x778] sm:$0xff]
        %v2164 = vld [vmem:[#allocation11 + $0x780] sm:$0xff]
        %v2165 = vld [vmem:[#allocation11 + $0x788] sm:$0xff]
        %v2166 = vld [vmem:[#allocation11 + $0x790] sm:$0xff]
        %v2167 = vld [vmem:[#allocation11 + $0x798] sm:$0xff]
        %v2168 = vld [vmem:[#allocation11 + $0x7a0] sm:$0xff]
        %v2169 = vld [vmem:[#allocation11 + $0x7a8] sm:$0xff]
        %v2170 = vld [vmem:[#allocation11 + $0x7b0] sm:$0xff]
        %v2171 = vld [vmem:[#allocation11 + $0x7b8] sm:$0xff]
        %v2172 = vld [vmem:[#allocation11 + $0x7c0] sm:$0xff]
        %v2173 = vld [vmem:[#allocation11 + $0x7c8] sm:$0xff]
        %v2174 = vld [vmem:[#allocation11 + $0x7d0] sm:$0xff]
        %v2175 = vld [vmem:[#allocation11 + $0x7d8] sm:$0xff]
        %v2176 = vld [vmem:[#allocation11 + $0x7e0] sm:$0xff]
        %v2177 = vld [vmem:[#allocation11 + $0x7e8] sm:$0xff]
        %v2178 = vld [vmem:[#allocation11 + $0x7f0] sm:$0xff]
        %v2179 = vld [vmem:[#allocation11 + $0x7f8] sm:$0xff]
        %v2180 = vld [vmem:[#allocation11 + $0x800] sm:$0xff]
        %v2181 = vld [vmem:[#allocation11 + $0x808] sm:$0xff]
        %v2182 = vld [vmem:[#allocation11 + $0x810] sm:$0xff]
        %v2183 = vld [vmem:[#allocation11 + $0x818] sm:$0xff]
        %v2184 = vld [vmem:[#allocation11 + $0x820] sm:$0xff]
        %v2185 = vld [vmem:[#allocation11 + $0x828] sm:$0xff]
        %v2186 = vld [vmem:[#allocation11 + $0x830] sm:$0xff]
        %v2187 = vld [vmem:[#allocation11 + $0x838] sm:$0xff]
        %v2188 = vld [vmem:[#allocation11 + $0x840] sm:$0xff]
        %v2189 = vld [vmem:[#allocation11 + $0x848] sm:$0xff]
        %v2190 = vld [vmem:[#allocation11 + $0x850] sm:$0xff]
        %v2191 = vld [vmem:[#allocation11 + $0x858] sm:$0xff]
        %v2192 = vld [vmem:[#allocation11 + $0x860] sm:$0xff]
        %v2193 = vld [vmem:[#allocation11 + $0x868] sm:$0xff]
        %v2194 = vld [vmem:[#allocation11 + $0x870] sm:$0xff]
        %v2195 = vld [vmem:[#allocation11 + $0x878] sm:$0xff]
        %v2196 = vld [vmem:[#allocation11 + $0x880] sm:$0xff]
        %v2197 = vld [vmem:[#allocation11 + $0x888] sm:$0xff]
        %v2198 = vld [vmem:[#allocation11 + $0x890] sm:$0xff]
        %v2199 = vld [vmem:[#allocation11 + $0x898] sm:$0xff]
        %v2200 = vld [vmem:[#allocation11 + $0x8a0] sm:$0xff]
        %v2201 = vld [vmem:[#allocation11 + $0x8a8] sm:$0xff]
        %v2202 = vld [vmem:[#allocation11 + $0x8b0] sm:$0xff]
        %v2203 = vld [vmem:[#allocation11 + $0x8b8] sm:$0xff]
        %v2204 = vld [vmem:[#allocation11 + $0x8c0] sm:$0xff]
        %v2205 = vld [vmem:[#allocation11 + $0x8c8] sm:$0xff]
        %v2206 = vld [vmem:[#allocation11 + $0x8d0] sm:$0xff]
        %v2207 = vld [vmem:[#allocation11 + $0x8d8] sm:$0xff]
        %v2208 = vld [vmem:[#allocation11 + $0x8e0] sm:$0xff]
        %v2209 = vld [vmem:[#allocation11 + $0x8e8] sm:$0xff]
        %v2210 = vld [vmem:[#allocation11 + $0x8f0] sm:$0xff]
        %v2211 = vld [vmem:[#allocation11 + $0x8f8] sm:$0xff]
        %v2212 = vld [vmem:[#allocation11 + $0x900] sm:$0xff]
        %v2213 = vld [vmem:[#allocation11 + $0x908] sm:$0xff]
        %v2214 = vld [vmem:[#allocation11 + $0x910] sm:$0xff]
        %v2215 = vld [vmem:[#allocation11 + $0x918] sm:$0xff]
        %v2216 = vld [vmem:[#allocation11 + $0x920] sm:$0xff]
        %v2217 = vld [vmem:[#allocation11 + $0x928] sm:$0xff]
        %v2218 = vld [vmem:[#allocation11 + $0x930] sm:$0xff]
        %v2219 = vld [vmem:[#allocation11 + $0x938] sm:$0xff]
        %v2220 = vld [vmem:[#allocation11 + $0x940] sm:$0xff]
        %v2221 = vld [vmem:[#allocation11 + $0x948] sm:$0xff]
        %v2222 = vld [vmem:[#allocation11 + $0x950] sm:$0xff]
        %v2223 = vld [vmem:[#allocation11 + $0x958] sm:$0xff]
        %v2224 = vld [vmem:[#allocation11 + $0x960] sm:$0xff]
        %v2225 = vld [vmem:[#allocation11 + $0x968] sm:$0xff]
        %v2226 = vld [vmem:[#allocation11 + $0x970] sm:$0xff]
        %v2227 = vld [vmem:[#allocation11 + $0x978] sm:$0xff]
        %v2228 = vld [vmem:[#allocation11 + $0x980] sm:$0xff]
        %v2229 = vld [vmem:[#allocation11 + $0x988] sm:$0xff]
        %v2230 = vld [vmem:[#allocation11 + $0x990] sm:$0xff]
        %v2231 = vld [vmem:[#allocation11 + $0x998] sm:$0xff]
        %v2232 = vld [vmem:[#allocation11 + $0x9a0] sm:$0xff]
        %v2233 = vld [vmem:[#allocation11 + $0x9a8] sm:$0xff]
        %v2234 = vld [vmem:[#allocation11 + $0x9b0] sm:$0xff]
        %v2235 = vld [vmem:[#allocation11 + $0x9b8] sm:$0xff]
        %v2236 = vld [vmem:[#allocation11 + $0x9c0] sm:$0xff]
        %v2237 = vld [vmem:[#allocation11 + $0x9c8] sm:$0xff]
        %v2238 = vld [vmem:[#allocation11 + $0x9d0] sm:$0xff]
        %v2239 = vld [vmem:[#allocation11 + $0x9d8] sm:$0xff]
        %v2240 = vld [vmem:[#allocation11 + $0x9e0] sm:$0xff]
        %v2241 = vld [vmem:[#allocation11 + $0x9e8] sm:$0xff]
        %v2242 = vld [vmem:[#allocation11 + $0x9f0] sm:$0xff]
        %v2243 = vld [vmem:[#allocation11 + $0x9f8] sm:$0xff]
        %v2244 = vld [vmem:[#allocation11 + $0xa00] sm:$0xff]
        %v2245 = vld [vmem:[#allocation11 + $0xa08] sm:$0xff]
        %v2246 = vld [vmem:[#allocation11 + $0xa10] sm:$0xff]
        %v2247 = vld [vmem:[#allocation11 + $0xa18] sm:$0xff]
        %v2248 = vld [vmem:[#allocation11 + $0xa20] sm:$0xff]
        %v2249 = vld [vmem:[#allocation11 + $0xa28] sm:$0xff]
        %v2250 = vld [vmem:[#allocation11 + $0xa30] sm:$0xff]
        %v2251 = vld [vmem:[#allocation11 + $0xa38] sm:$0xff]
        %v2252 = vld [vmem:[#allocation11 + $0xa40] sm:$0xff]
        %v2253 = vld [vmem:[#allocation11 + $0xa48] sm:$0xff]
        %v2254 = vld [vmem:[#allocation11 + $0xa50] sm:$0xff]
        %v2255 = vld [vmem:[#allocation11 + $0xa58] sm:$0xff]
        %v2256 = vld [vmem:[#allocation11 + $0xa60] sm:$0xff]
        %v2257 = vld [vmem:[#allocation11 + $0xa68] sm:$0xff]
        %v2258 = vld [vmem:[#allocation11 + $0xa70] sm:$0xff]
        %v2259 = vld [vmem:[#allocation11 + $0xa78] sm:$0xff]
        %v2260 = vld [vmem:[#allocation11 + $0xa80] sm:$0xff]
        %v2261 = vld [vmem:[#allocation11 + $0xa88] sm:$0xff]
        %v2262 = vld [vmem:[#allocation11 + $0xa90] sm:$0xff]
        %v2263 = vld [vmem:[#allocation11 + $0xa98] sm:$0xff]
        %v2264 = vld [vmem:[#allocation11 + $0xaa0] sm:$0xff]
        %v2265 = vld [vmem:[#allocation11 + $0xaa8] sm:$0xff]
        %v2266 = vld [vmem:[#allocation11 + $0xab0] sm:$0xff]
        %v2267 = vld [vmem:[#allocation11 + $0xab8] sm:$0xff]
        %v2268 = vld [vmem:[#allocation11 + $0xac0] sm:$0xff]
        %v2269 = vld [vmem:[#allocation11 + $0xac8] sm:$0xff]
        %v2270 = vld [vmem:[#allocation11 + $0xad0] sm:$0xff]
        %v2271 = vld [vmem:[#allocation11 + $0xad8] sm:$0xff]
        %v2272 = vld [vmem:[#allocation11 + $0xae0] sm:$0xff]
        %v2273 = vld [vmem:[#allocation11 + $0xae8] sm:$0xff]
        %v2274 = vld [vmem:[#allocation11 + $0xaf0] sm:$0xff]
        %v2275 = vld [vmem:[#allocation11 + $0xaf8] sm:$0xff]
        %v2276 = vld [vmem:[#allocation11 + $0xb00] sm:$0xff]
        %v2277 = vld [vmem:[#allocation11 + $0xb08] sm:$0xff]
        %v2278 = vld [vmem:[#allocation11 + $0xb10] sm:$0xff]
        %v2279 = vld [vmem:[#allocation11 + $0xb18] sm:$0xff]
        %v2280 = vld [vmem:[#allocation11 + $0xb20] sm:$0xff]
        %v2281 = vld [vmem:[#allocation11 + $0xb28] sm:$0xff]
        %v2282 = vld [vmem:[#allocation11 + $0xb30] sm:$0xff]
        %v2283 = vld [vmem:[#allocation11 + $0xb38] sm:$0xff]
        %v2284 = vld [vmem:[#allocation11 + $0xb40] sm:$0xff]
        %v2285 = vld [vmem:[#allocation11 + $0xb48] sm:$0xff]
        %v2286 = vld [vmem:[#allocation11 + $0xb50] sm:$0xff]
        %v2287 = vld [vmem:[#allocation11 + $0xb58] sm:$0xff]
        %v2288 = vld [vmem:[#allocation11 + $0xb60] sm:$0xff]
        %v2289 = vld [vmem:[#allocation11 + $0xb68] sm:$0xff]
        %v2290 = vld [vmem:[#allocation11 + $0xb70] sm:$0xff]
        %v2291 = vld [vmem:[#allocation11 + $0xb78] sm:$0xff]
        %v2292 = vld [vmem:[#allocation11 + $0xb80] sm:$0xff]
        %v2293 = vld [vmem:[#allocation11 + $0xb88] sm:$0xff]
        %v2294 = vld [vmem:[#allocation11 + $0xb90] sm:$0xff]
        %v2295 = vld [vmem:[#allocation11 + $0xb98] sm:$0xff]
        %v2296 = vld [vmem:[#allocation11 + $0xba0] sm:$0xff]
        %v2297 = vld [vmem:[#allocation11 + $0xba8] sm:$0xff]
        %v2298 = vld [vmem:[#allocation11 + $0xbb0] sm:$0xff]
        %v2299 = vld [vmem:[#allocation11 + $0xbb8] sm:$0xff]
        %v2300 = vld [vmem:[#allocation11 + $0xbc0] sm:$0xff]
        %v2301 = vld [vmem:[#allocation11 + $0xbc8] sm:$0xff]
        %v2302 = vld [vmem:[#allocation11 + $0xbd0] sm:$0xff]
        %v2303 = vld [vmem:[#allocation11 + $0xbd8] sm:$0xff]
        %v2304 = vld [vmem:[#allocation11 + $0xbe0] sm:$0xff]
        %v2305 = vld [vmem:[#allocation11 + $0xbe8] sm:$0xff]
        %v2306 = vld [vmem:[#allocation11 + $0xbf0] sm:$0xff]
        %v2307 = vld [vmem:[#allocation11 + $0xbf8] sm:$0xff]
        %v2308 = vld [vmem:[#allocation12] sm:$0xff]
        %v2310 = vlaneseq
        %v2311 = vshrl.u32 %v2310, 7
        %v2312 = vsub.s32 0, %v2311
        %v2313 = vrot.slane %v2308, %v2312
        %v2314 = vlaneseq
        %v2315 = vshrl.u32 %v2314, 7
        %v2316 = vsub.s32 1, %v2315
        %v2317 = vrot.slane %v2308, %v2316
        %v2318 = vlaneseq
        %v2319 = vshrl.u32 %v2318, 7
        %v2320 = vsub.s32 2, %v2319
        %v2321 = vrot.slane %v2308, %v2320
        %v2322 = vlaneseq
        %v2323 = vshrl.u32 %v2322, 7
        %v2324 = vsub.s32 3, %v2323
        %v2325 = vrot.slane %v2308, %v2324
        %v2326 = vlaneseq
        %v2327 = vshrl.u32 %v2326, 7
        %v2328 = vsub.s32 4, %v2327
        %v2329 = vrot.slane %v2308, %v2328
        %v2330 = vlaneseq
        %v2331 = vshrl.u32 %v2330, 7
        %v2332 = vsub.s32 5, %v2331
        %v2333 = vrot.slane %v2308, %v2332
        %v2334 = vlaneseq
        %v2335 = vshrl.u32 %v2334, 7
        %v2336 = vsub.s32 6, %v2335
        %v2337 = vrot.slane %v2308, %v2336
        %v2338 = vlaneseq
        %v2339 = vshrl.u32 %v2338, 7
        %v2340 = vsub.s32 7, %v2339
        %v2341 = vrot.slane %v2308, %v2340
        %v2398 = vunpack.c.l.b16 %v1876
        %v2399 = vunpack.c.h.b16 %v1876
        %v2400 = vunpack.c.l.b16 %v1877
        %v2401 = vunpack.c.h.b16 %v1877
        %v2402 = vunpack.c.l.b16 %v1878
        %v2403 = vunpack.c.h.b16 %v1878
        %v2404 = vunpack.c.l.b16 %v1879
        %v2405 = vunpack.c.h.b16 %v1879
        %v2406 = vunpack.c.l.b16 %v1880
        %v2407 = vunpack.c.h.b16 %v1880
        %v2408 = vunpack.c.l.b16 %v1881
        %v2409 = vunpack.c.h.b16 %v1881
        %v2410 = vunpack.c.l.b16 %v1882
        %v2411 = vunpack.c.h.b16 %v1882
        %v2412 = vunpack.c.l.b16 %v1883
        %v2413 = vunpack.c.h.b16 %v1883
        %v2414 = vunpack.c.l.b16 %v1884
        %v2415 = vunpack.c.h.b16 %v1884
        %v2416 = vunpack.c.l.b16 %v1885
        %v2417 = vunpack.c.h.b16 %v1885
        %v2418 = vunpack.c.l.b16 %v1886
        %v2419 = vunpack.c.h.b16 %v1886
        %v2420 = vunpack.c.l.b16 %v1887
        %v2421 = vunpack.c.h.b16 %v1887
        %v2422 = vunpack.c.l.b16 %v1888
        %v2423 = vunpack.c.h.b16 %v1888
        %v2424 = vunpack.c.l.b16 %v1889
        %v2425 = vunpack.c.h.b16 %v1889
        %v2426 = vunpack.c.l.b16 %v1890
        %v2427 = vunpack.c.h.b16 %v1890
        %v2428 = vunpack.c.l.b16 %v1891
        %v2429 = vunpack.c.h.b16 %v1891
        %v2430 = vunpack.c.l.b16 %v1892
        %v2431 = vunpack.c.h.b16 %v1892
        %v2432 = vunpack.c.l.b16 %v1893
        %v2433 = vunpack.c.h.b16 %v1893
        %v2434 = vunpack.c.l.b16 %v1894
        %v2435 = vunpack.c.h.b16 %v1894
        %v2436 = vunpack.c.l.b16 %v1895
        %v2437 = vunpack.c.h.b16 %v1895
        %v2438 = vunpack.c.l.b16 %v1896
        %v2439 = vunpack.c.h.b16 %v1896
        %v2440 = vunpack.c.l.b16 %v1897
        %v2441 = vunpack.c.h.b16 %v1897
        %v2442 = vunpack.c.l.b16 %v1898
        %v2443 = vunpack.c.h.b16 %v1898
        %v2444 = vunpack.c.l.b16 %v1899
        %v2445 = vunpack.c.h.b16 %v1899
        %v2446 = vunpack.c.l.b16 %v1900
        %v2447 = vunpack.c.h.b16 %v1900
        %v2448 = vunpack.c.l.b16 %v1901
        %v2449 = vunpack.c.h.b16 %v1901
        %v2450 = vunpack.c.l.b16 %v1902
        %v2451 = vunpack.c.h.b16 %v1902
        %v2452 = vunpack.c.l.b16 %v1903
        %v2453 = vunpack.c.h.b16 %v1903
        %v2454 = vunpack.c.l.b16 %v1904
        %v2455 = vunpack.c.h.b16 %v1904
        %v2456 = vunpack.c.l.b16 %v1905
        %v2457 = vunpack.c.h.b16 %v1905
        %v2458 = vunpack.c.l.b16 %v1906
        %v2459 = vunpack.c.h.b16 %v1906
        %v2460 = vunpack.c.l.b16 %v1907
        %v2461 = vunpack.c.h.b16 %v1907
        %v2462 = vunpack.c.l.b16 %v1908
        %v2463 = vunpack.c.h.b16 %v1908
        %v2464 = vunpack.c.l.b16 %v1909
        %v2465 = vunpack.c.h.b16 %v1909
        %v2466 = vunpack.c.l.b16 %v1910
        %v2467 = vunpack.c.h.b16 %v1910
        %v2468 = vunpack.c.l.b16 %v1911
        %v2469 = vunpack.c.h.b16 %v1911
        %v2470 = vunpack.c.l.b16 %v1912
        %v2471 = vunpack.c.h.b16 %v1912
        %v2472 = vunpack.c.l.b16 %v1913
        %v2473 = vunpack.c.h.b16 %v1913
        %v2474 = vunpack.c.l.b16 %v1914
        %v2475 = vunpack.c.h.b16 %v1914
        %v2476 = vunpack.c.l.b16 %v1915
        %v2477 = vunpack.c.h.b16 %v1915
        %v2478 = vunpack.c.l.b16 %v1916
        %v2479 = vunpack.c.h.b16 %v1916
        %v2480 = vunpack.c.l.b16 %v1917
        %v2481 = vunpack.c.h.b16 %v1917
        %v2482 = vunpack.c.l.b16 %v1918
        %v2483 = vunpack.c.h.b16 %v1918
        %v2484 = vunpack.c.l.b16 %v1919
        %v2485 = vunpack.c.h.b16 %v1919
        %v2486 = vunpack.c.l.b16 %v1920
        %v2487 = vunpack.c.h.b16 %v1920
        %v2488 = vunpack.c.l.b16 %v1921
        %v2489 = vunpack.c.h.b16 %v1921
        %v2490 = vunpack.c.l.b16 %v1922
        %v2491 = vunpack.c.h.b16 %v1922
        %v2492 = vunpack.c.l.b16 %v1923
        %v2493 = vunpack.c.h.b16 %v1923
        %v2494 = vpack.c.b16 %v2404, %v2398
        %v2495 = vpack.c.b16 %v2405, %v2399
        %v2496 = vpack.c.b16 %v2406, %v2400
        %v2497 = vpack.c.b16 %v2407, %v2401
        %v2498 = vpack.c.b16 %v2408, %v2402
        %v2499 = vpack.c.b16 %v2409, %v2403
        %v2500 = vpack.c.b16 %v2416, %v2410
        %v2501 = vpack.c.b16 %v2417, %v2411
        %v2502 = vpack.c.b16 %v2418, %v2412
        %v2503 = vpack.c.b16 %v2419, %v2413
        %v2504 = vpack.c.b16 %v2420, %v2414
        %v2505 = vpack.c.b16 %v2421, %v2415
        %v2506 = vpack.c.b16 %v2428, %v2422
        %v2507 = vpack.c.b16 %v2429, %v2423
        %v2508 = vpack.c.b16 %v2430, %v2424
        %v2509 = vpack.c.b16 %v2431, %v2425
        %v2510 = vpack.c.b16 %v2432, %v2426
        %v2511 = vpack.c.b16 %v2433, %v2427
        %v2512 = vpack.c.b16 %v2440, %v2434
        %v2513 = vpack.c.b16 %v2441, %v2435
        %v2514 = vpack.c.b16 %v2442, %v2436
        %v2515 = vpack.c.b16 %v2443, %v2437
        %v2516 = vpack.c.b16 %v2444, %v2438
        %v2517 = vpack.c.b16 %v2445, %v2439
        %v2518 = vpack.c.b16 %v2452, %v2446
        %v2519 = vpack.c.b16 %v2453, %v2447
        %v2520 = vpack.c.b16 %v2454, %v2448
        %v2521 = vpack.c.b16 %v2455, %v2449
        %v2522 = vpack.c.b16 %v2456, %v2450
        %v2523 = vpack.c.b16 %v2457, %v2451
        %v2524 = vpack.c.b16 %v2464, %v2458
        %v2525 = vpack.c.b16 %v2465, %v2459
        %v2526 = vpack.c.b16 %v2466, %v2460
        %v2527 = vpack.c.b16 %v2467, %v2461
        %v2528 = vpack.c.b16 %v2468, %v2462
        %v2529 = vpack.c.b16 %v2469, %v2463
        %v2530 = vpack.c.b16 %v2476, %v2470
        %v2531 = vpack.c.b16 %v2477, %v2471
        %v2532 = vpack.c.b16 %v2478, %v2472
        %v2533 = vpack.c.b16 %v2479, %v2473
        %v2534 = vpack.c.b16 %v2480, %v2474
        %v2535 = vpack.c.b16 %v2481, %v2475
        %v2536 = vpack.c.b16 %v2488, %v2482
        %v2537 = vpack.c.b16 %v2489, %v2483
        %v2538 = vpack.c.b16 %v2490, %v2484
        %v2539 = vpack.c.b16 %v2491, %v2485
        %v2540 = vpack.c.b16 %v2492, %v2486
        %v2541 = vpack.c.b16 %v2493, %v2487
        %v2974 = vunpack.c.l.b16 %v1924
        %v2975 = vunpack.c.h.b16 %v1924
        %v2976 = vunpack.c.l.b16 %v1925
        %v2977 = vunpack.c.h.b16 %v1925
        %v2978 = vunpack.c.l.b16 %v1926
        %v2979 = vunpack.c.h.b16 %v1926
        %v2980 = vunpack.c.l.b16 %v1927
        %v2981 = vunpack.c.h.b16 %v1927
        %v2982 = vunpack.c.l.b16 %v1928
        %v2983 = vunpack.c.h.b16 %v1928
        %v2984 = vunpack.c.l.b16 %v1929
        %v2985 = vunpack.c.h.b16 %v1929
        %v2986 = vunpack.c.l.b16 %v1930
        %v2987 = vunpack.c.h.b16 %v1930
        %v2988 = vunpack.c.l.b16 %v1931
        %v2989 = vunpack.c.h.b16 %v1931
        %v2990 = vunpack.c.l.b16 %v1932
        %v2991 = vunpack.c.h.b16 %v1932
        %v2992 = vunpack.c.l.b16 %v1933
        %v2993 = vunpack.c.h.b16 %v1933
        %v2994 = vunpack.c.l.b16 %v1934
        %v2995 = vunpack.c.h.b16 %v1934
        %v2996 = vunpack.c.l.b16 %v1935
        %v2997 = vunpack.c.h.b16 %v1935
        %v2998 = vunpack.c.l.b16 %v1936
        %v2999 = vunpack.c.h.b16 %v1936
        %v3000 = vunpack.c.l.b16 %v1937
        %v3001 = vunpack.c.h.b16 %v1937
        %v3002 = vunpack.c.l.b16 %v1938
        %v3003 = vunpack.c.h.b16 %v1938
        %v3004 = vunpack.c.l.b16 %v1939
        %v3005 = vunpack.c.h.b16 %v1939
        %v3006 = vunpack.c.l.b16 %v1940
        %v3007 = vunpack.c.h.b16 %v1940
        %v3008 = vunpack.c.l.b16 %v1941
        %v3009 = vunpack.c.h.b16 %v1941
        %v3010 = vunpack.c.l.b16 %v1942
        %v3011 = vunpack.c.h.b16 %v1942
        %v3012 = vunpack.c.l.b16 %v1943
        %v3013 = vunpack.c.h.b16 %v1943
        %v3014 = vunpack.c.l.b16 %v1944
        %v3015 = vunpack.c.h.b16 %v1944
        %v3016 = vunpack.c.l.b16 %v1945
        %v3017 = vunpack.c.h.b16 %v1945
        %v3018 = vunpack.c.l.b16 %v1946
        %v3019 = vunpack.c.h.b16 %v1946
        %v3020 = vunpack.c.l.b16 %v1947
        %v3021 = vunpack.c.h.b16 %v1947
        %v3022 = vunpack.c.l.b16 %v1948
        %v3023 = vunpack.c.h.b16 %v1948
        %v3024 = vunpack.c.l.b16 %v1949
        %v3025 = vunpack.c.h.b16 %v1949
        %v3026 = vunpack.c.l.b16 %v1950
        %v3027 = vunpack.c.h.b16 %v1950
        %v3028 = vunpack.c.l.b16 %v1951
        %v3029 = vunpack.c.h.b16 %v1951
        %v3030 = vunpack.c.l.b16 %v1952
        %v3031 = vunpack.c.h.b16 %v1952
        %v3032 = vunpack.c.l.b16 %v1953
        %v3033 = vunpack.c.h.b16 %v1953
        %v3034 = vunpack.c.l.b16 %v1954
        %v3035 = vunpack.c.h.b16 %v1954
        %v3036 = vunpack.c.l.b16 %v1955
        %v3037 = vunpack.c.h.b16 %v1955
        %v3038 = vunpack.c.l.b16 %v1956
        %v3039 = vunpack.c.h.b16 %v1956
        %v3040 = vunpack.c.l.b16 %v1957
        %v3041 = vunpack.c.h.b16 %v1957
        %v3042 = vunpack.c.l.b16 %v1958
        %v3043 = vunpack.c.h.b16 %v1958
        %v3044 = vunpack.c.l.b16 %v1959
        %v3045 = vunpack.c.h.b16 %v1959
        %v3046 = vunpack.c.l.b16 %v1960
        %v3047 = vunpack.c.h.b16 %v1960
        %v3048 = vunpack.c.l.b16 %v1961
        %v3049 = vunpack.c.h.b16 %v1961
        %v3050 = vunpack.c.l.b16 %v1962
        %v3051 = vunpack.c.h.b16 %v1962
        %v3052 = vunpack.c.l.b16 %v1963
        %v3053 = vunpack.c.h.b16 %v1963
        %v3054 = vunpack.c.l.b16 %v1964
        %v3055 = vunpack.c.h.b16 %v1964
        %v3056 = vunpack.c.l.b16 %v1965
        %v3057 = vunpack.c.h.b16 %v1965
        %v3058 = vunpack.c.l.b16 %v1966
        %v3059 = vunpack.c.h.b16 %v1966
        %v3060 = vunpack.c.l.b16 %v1967
        %v3061 = vunpack.c.h.b16 %v1967
        %v3062 = vunpack.c.l.b16 %v1968
        %v3063 = vunpack.c.h.b16 %v1968
        %v3064 = vunpack.c.l.b16 %v1969
        %v3065 = vunpack.c.h.b16 %v1969
        %v3066 = vunpack.c.l.b16 %v1970
        %v3067 = vunpack.c.h.b16 %v1970
        %v3068 = vunpack.c.l.b16 %v1971
        %v3069 = vunpack.c.h.b16 %v1971
        %v3070 = vunpack.c.l.b16 %v1972
        %v3071 = vunpack.c.h.b16 %v1972
        %v3072 = vunpack.c.l.b16 %v1973
        %v3073 = vunpack.c.h.b16 %v1973
        %v3074 = vunpack.c.l.b16 %v1974
        %v3075 = vunpack.c.h.b16 %v1974
        %v3076 = vunpack.c.l.b16 %v1975
        %v3077 = vunpack.c.h.b16 %v1975
        %v3078 = vunpack.c.l.b16 %v1976
        %v3079 = vunpack.c.h.b16 %v1976
        %v3080 = vunpack.c.l.b16 %v1977
        %v3081 = vunpack.c.h.b16 %v1977
        %v3082 = vunpack.c.l.b16 %v1978
        %v3083 = vunpack.c.h.b16 %v1978
        %v3084 = vunpack.c.l.b16 %v1979
        %v3085 = vunpack.c.h.b16 %v1979
        %v3086 = vunpack.c.l.b16 %v1980
        %v3087 = vunpack.c.h.b16 %v1980
        %v3088 = vunpack.c.l.b16 %v1981
        %v3089 = vunpack.c.h.b16 %v1981
        %v3090 = vunpack.c.l.b16 %v1982
        %v3091 = vunpack.c.h.b16 %v1982
        %v3092 = vunpack.c.l.b16 %v1983
        %v3093 = vunpack.c.h.b16 %v1983
        %v3094 = vunpack.c.l.b16 %v1984
        %v3095 = vunpack.c.h.b16 %v1984
        %v3096 = vunpack.c.l.b16 %v1985
        %v3097 = vunpack.c.h.b16 %v1985
        %v3098 = vunpack.c.l.b16 %v1986
        %v3099 = vunpack.c.h.b16 %v1986
        %v3100 = vunpack.c.l.b16 %v1987
        %v3101 = vunpack.c.h.b16 %v1987
        %v3102 = vunpack.c.l.b16 %v1988
        %v3103 = vunpack.c.h.b16 %v1988
        %v3104 = vunpack.c.l.b16 %v1989
        %v3105 = vunpack.c.h.b16 %v1989
        %v3106 = vunpack.c.l.b16 %v1990
        %v3107 = vunpack.c.h.b16 %v1990
        %v3108 = vunpack.c.l.b16 %v1991
        %v3109 = vunpack.c.h.b16 %v1991
        %v3110 = vunpack.c.l.b16 %v1992
        %v3111 = vunpack.c.h.b16 %v1992
        %v3112 = vunpack.c.l.b16 %v1993
        %v3113 = vunpack.c.h.b16 %v1993
        %v3114 = vunpack.c.l.b16 %v1994
        %v3115 = vunpack.c.h.b16 %v1994
        %v3116 = vunpack.c.l.b16 %v1995
        %v3117 = vunpack.c.h.b16 %v1995
        %v3118 = vunpack.c.l.b16 %v1996
        %v3119 = vunpack.c.h.b16 %v1996
        %v3120 = vunpack.c.l.b16 %v1997
        %v3121 = vunpack.c.h.b16 %v1997
        %v3122 = vunpack.c.l.b16 %v1998
        %v3123 = vunpack.c.h.b16 %v1998
        %v3124 = vunpack.c.l.b16 %v1999
        %v3125 = vunpack.c.h.b16 %v1999
        %v3126 = vunpack.c.l.b16 %v2000
        %v3127 = vunpack.c.h.b16 %v2000
        %v3128 = vunpack.c.l.b16 %v2001
        %v3129 = vunpack.c.h.b16 %v2001
        %v3130 = vunpack.c.l.b16 %v2002
        %v3131 = vunpack.c.h.b16 %v2002
        %v3132 = vunpack.c.l.b16 %v2003
        %v3133 = vunpack.c.h.b16 %v2003
        %v3134 = vunpack.c.l.b16 %v2004
        %v3135 = vunpack.c.h.b16 %v2004
        %v3136 = vunpack.c.l.b16 %v2005
        %v3137 = vunpack.c.h.b16 %v2005
        %v3138 = vunpack.c.l.b16 %v2006
        %v3139 = vunpack.c.h.b16 %v2006
        %v3140 = vunpack.c.l.b16 %v2007
        %v3141 = vunpack.c.h.b16 %v2007
        %v3142 = vunpack.c.l.b16 %v2008
        %v3143 = vunpack.c.h.b16 %v2008
        %v3144 = vunpack.c.l.b16 %v2009
        %v3145 = vunpack.c.h.b16 %v2009
        %v3146 = vunpack.c.l.b16 %v2010
        %v3147 = vunpack.c.h.b16 %v2010
        %v3148 = vunpack.c.l.b16 %v2011
        %v3149 = vunpack.c.h.b16 %v2011
        %v3150 = vunpack.c.l.b16 %v2012
        %v3151 = vunpack.c.h.b16 %v2012
        %v3152 = vunpack.c.l.b16 %v2013
        %v3153 = vunpack.c.h.b16 %v2013
        %v3154 = vunpack.c.l.b16 %v2014
        %v3155 = vunpack.c.h.b16 %v2014
        %v3156 = vunpack.c.l.b16 %v2015
        %v3157 = vunpack.c.h.b16 %v2015
        %v3158 = vunpack.c.l.b16 %v2016
        %v3159 = vunpack.c.h.b16 %v2016
        %v3160 = vunpack.c.l.b16 %v2017
        %v3161 = vunpack.c.h.b16 %v2017
        %v3162 = vunpack.c.l.b16 %v2018
        %v3163 = vunpack.c.h.b16 %v2018
        %v3164 = vunpack.c.l.b16 %v2019
        %v3165 = vunpack.c.h.b16 %v2019
        %v3166 = vunpack.c.l.b16 %v2020
        %v3167 = vunpack.c.h.b16 %v2020
        %v3168 = vunpack.c.l.b16 %v2021
        %v3169 = vunpack.c.h.b16 %v2021
        %v3170 = vunpack.c.l.b16 %v2022
        %v3171 = vunpack.c.h.b16 %v2022
        %v3172 = vunpack.c.l.b16 %v2023
        %v3173 = vunpack.c.h.b16 %v2023
        %v3174 = vunpack.c.l.b16 %v2024
        %v3175 = vunpack.c.h.b16 %v2024
        %v3176 = vunpack.c.l.b16 %v2025
        %v3177 = vunpack.c.h.b16 %v2025
        %v3178 = vunpack.c.l.b16 %v2026
        %v3179 = vunpack.c.h.b16 %v2026
        %v3180 = vunpack.c.l.b16 %v2027
        %v3181 = vunpack.c.h.b16 %v2027
        %v3182 = vunpack.c.l.b16 %v2028
        %v3183 = vunpack.c.h.b16 %v2028
        %v3184 = vunpack.c.l.b16 %v2029
        %v3185 = vunpack.c.h.b16 %v2029
        %v3186 = vunpack.c.l.b16 %v2030
        %v3187 = vunpack.c.h.b16 %v2030
        %v3188 = vunpack.c.l.b16 %v2031
        %v3189 = vunpack.c.h.b16 %v2031
        %v3190 = vunpack.c.l.b16 %v2032
        %v3191 = vunpack.c.h.b16 %v2032
        %v3192 = vunpack.c.l.b16 %v2033
        %v3193 = vunpack.c.h.b16 %v2033
        %v3194 = vunpack.c.l.b16 %v2034
        %v3195 = vunpack.c.h.b16 %v2034
        %v3196 = vunpack.c.l.b16 %v2035
        %v3197 = vunpack.c.h.b16 %v2035
        %v3198 = vunpack.c.l.b16 %v2036
        %v3199 = vunpack.c.h.b16 %v2036
        %v3200 = vunpack.c.l.b16 %v2037
        %v3201 = vunpack.c.h.b16 %v2037
        %v3202 = vunpack.c.l.b16 %v2038
        %v3203 = vunpack.c.h.b16 %v2038
        %v3204 = vunpack.c.l.b16 %v2039
        %v3205 = vunpack.c.h.b16 %v2039
        %v3206 = vunpack.c.l.b16 %v2040
        %v3207 = vunpack.c.h.b16 %v2040
        %v3208 = vunpack.c.l.b16 %v2041
        %v3209 = vunpack.c.h.b16 %v2041
        %v3210 = vunpack.c.l.b16 %v2042
        %v3211 = vunpack.c.h.b16 %v2042
        %v3212 = vunpack.c.l.b16 %v2043
        %v3213 = vunpack.c.h.b16 %v2043
        %v3214 = vunpack.c.l.b16 %v2044
        %v3215 = vunpack.c.h.b16 %v2044
        %v3216 = vunpack.c.l.b16 %v2045
        %v3217 = vunpack.c.h.b16 %v2045
        %v3218 = vunpack.c.l.b16 %v2046
        %v3219 = vunpack.c.h.b16 %v2046
        %v3220 = vunpack.c.l.b16 %v2047
        %v3221 = vunpack.c.h.b16 %v2047
        %v3222 = vunpack.c.l.b16 %v2048
        %v3223 = vunpack.c.h.b16 %v2048
        %v3224 = vunpack.c.l.b16 %v2049
        %v3225 = vunpack.c.h.b16 %v2049
        %v3226 = vunpack.c.l.b16 %v2050
        %v3227 = vunpack.c.h.b16 %v2050
        %v3228 = vunpack.c.l.b16 %v2051
        %v3229 = vunpack.c.h.b16 %v2051
        %v3230 = vunpack.c.l.b16 %v2052
        %v3231 = vunpack.c.h.b16 %v2052
        %v3232 = vunpack.c.l.b16 %v2053
        %v3233 = vunpack.c.h.b16 %v2053
        %v3234 = vunpack.c.l.b16 %v2054
        %v3235 = vunpack.c.h.b16 %v2054
        %v3236 = vunpack.c.l.b16 %v2055
        %v3237 = vunpack.c.h.b16 %v2055
        %v3238 = vunpack.c.l.b16 %v2056
        %v3239 = vunpack.c.h.b16 %v2056
        %v3240 = vunpack.c.l.b16 %v2057
        %v3241 = vunpack.c.h.b16 %v2057
        %v3242 = vunpack.c.l.b16 %v2058
        %v3243 = vunpack.c.h.b16 %v2058
        %v3244 = vunpack.c.l.b16 %v2059
        %v3245 = vunpack.c.h.b16 %v2059
        %v3246 = vunpack.c.l.b16 %v2060
        %v3247 = vunpack.c.h.b16 %v2060
        %v3248 = vunpack.c.l.b16 %v2061
        %v3249 = vunpack.c.h.b16 %v2061
        %v3250 = vunpack.c.l.b16 %v2062
        %v3251 = vunpack.c.h.b16 %v2062
        %v3252 = vunpack.c.l.b16 %v2063
        %v3253 = vunpack.c.h.b16 %v2063
        %v3254 = vunpack.c.l.b16 %v2064
        %v3255 = vunpack.c.h.b16 %v2064
        %v3256 = vunpack.c.l.b16 %v2065
        %v3257 = vunpack.c.h.b16 %v2065
        %v3258 = vunpack.c.l.b16 %v2066
        %v3259 = vunpack.c.h.b16 %v2066
        %v3260 = vunpack.c.l.b16 %v2067
        %v3261 = vunpack.c.h.b16 %v2067
        %v3262 = vunpack.c.l.b16 %v2068
        %v3263 = vunpack.c.h.b16 %v2068
        %v3264 = vunpack.c.l.b16 %v2069
        %v3265 = vunpack.c.h.b16 %v2069
        %v3266 = vunpack.c.l.b16 %v2070
        %v3267 = vunpack.c.h.b16 %v2070
        %v3268 = vunpack.c.l.b16 %v2071
        %v3269 = vunpack.c.h.b16 %v2071
        %v3270 = vunpack.c.l.b16 %v2072
        %v3271 = vunpack.c.h.b16 %v2072
        %v3272 = vunpack.c.l.b16 %v2073
        %v3273 = vunpack.c.h.b16 %v2073
        %v3274 = vunpack.c.l.b16 %v2074
        %v3275 = vunpack.c.h.b16 %v2074
        %v3276 = vunpack.c.l.b16 %v2075
        %v3277 = vunpack.c.h.b16 %v2075
        %v3278 = vunpack.c.l.b16 %v2076
        %v3279 = vunpack.c.h.b16 %v2076
        %v3280 = vunpack.c.l.b16 %v2077
        %v3281 = vunpack.c.h.b16 %v2077
        %v3282 = vunpack.c.l.b16 %v2078
        %v3283 = vunpack.c.h.b16 %v2078
        %v3284 = vunpack.c.l.b16 %v2079
        %v3285 = vunpack.c.h.b16 %v2079
        %v3286 = vunpack.c.l.b16 %v2080
        %v3287 = vunpack.c.h.b16 %v2080
        %v3288 = vunpack.c.l.b16 %v2081
        %v3289 = vunpack.c.h.b16 %v2081
        %v3290 = vunpack.c.l.b16 %v2082
        %v3291 = vunpack.c.h.b16 %v2082
        %v3292 = vunpack.c.l.b16 %v2083
        %v3293 = vunpack.c.h.b16 %v2083
        %v3294 = vunpack.c.l.b16 %v2084
        %v3295 = vunpack.c.h.b16 %v2084
        %v3296 = vunpack.c.l.b16 %v2085
        %v3297 = vunpack.c.h.b16 %v2085
        %v3298 = vunpack.c.l.b16 %v2086
        %v3299 = vunpack.c.h.b16 %v2086
        %v3300 = vunpack.c.l.b16 %v2087
        %v3301 = vunpack.c.h.b16 %v2087
        %v3302 = vunpack.c.l.b16 %v2088
        %v3303 = vunpack.c.h.b16 %v2088
        %v3304 = vunpack.c.l.b16 %v2089
        %v3305 = vunpack.c.h.b16 %v2089
        %v3306 = vunpack.c.l.b16 %v2090
        %v3307 = vunpack.c.h.b16 %v2090
        %v3308 = vunpack.c.l.b16 %v2091
        %v3309 = vunpack.c.h.b16 %v2091
        %v3310 = vunpack.c.l.b16 %v2092
        %v3311 = vunpack.c.h.b16 %v2092
        %v3312 = vunpack.c.l.b16 %v2093
        %v3313 = vunpack.c.h.b16 %v2093
        %v3314 = vunpack.c.l.b16 %v2094
        %v3315 = vunpack.c.h.b16 %v2094
        %v3316 = vunpack.c.l.b16 %v2095
        %v3317 = vunpack.c.h.b16 %v2095
        %v3318 = vunpack.c.l.b16 %v2096
        %v3319 = vunpack.c.h.b16 %v2096
        %v3320 = vunpack.c.l.b16 %v2097
        %v3321 = vunpack.c.h.b16 %v2097
        %v3322 = vunpack.c.l.b16 %v2098
        %v3323 = vunpack.c.h.b16 %v2098
        %v3324 = vunpack.c.l.b16 %v2099
        %v3325 = vunpack.c.h.b16 %v2099
        %v3326 = vunpack.c.l.b16 %v2100
        %v3327 = vunpack.c.h.b16 %v2100
        %v3328 = vunpack.c.l.b16 %v2101
        %v3329 = vunpack.c.h.b16 %v2101
        %v3330 = vunpack.c.l.b16 %v2102
        %v3331 = vunpack.c.h.b16 %v2102
        %v3332 = vunpack.c.l.b16 %v2103
        %v3333 = vunpack.c.h.b16 %v2103
        %v3334 = vunpack.c.l.b16 %v2104
        %v3335 = vunpack.c.h.b16 %v2104
        %v3336 = vunpack.c.l.b16 %v2105
        %v3337 = vunpack.c.h.b16 %v2105
        %v3338 = vunpack.c.l.b16 %v2106
        %v3339 = vunpack.c.h.b16 %v2106
        %v3340 = vunpack.c.l.b16 %v2107
        %v3341 = vunpack.c.h.b16 %v2107
        %v3342 = vunpack.c.l.b16 %v2108
        %v3343 = vunpack.c.h.b16 %v2108
        %v3344 = vunpack.c.l.b16 %v2109
        %v3345 = vunpack.c.h.b16 %v2109
        %v3346 = vunpack.c.l.b16 %v2110
        %v3347 = vunpack.c.h.b16 %v2110
        %v3348 = vunpack.c.l.b16 %v2111
        %v3349 = vunpack.c.h.b16 %v2111
        %v3350 = vunpack.c.l.b16 %v2112
        %v3351 = vunpack.c.h.b16 %v2112
        %v3352 = vunpack.c.l.b16 %v2113
        %v3353 = vunpack.c.h.b16 %v2113
        %v3354 = vunpack.c.l.b16 %v2114
        %v3355 = vunpack.c.h.b16 %v2114
        %v3356 = vunpack.c.l.b16 %v2115
        %v3357 = vunpack.c.h.b16 %v2115
        %v3358 = vunpack.c.l.b16 %v2116
        %v3359 = vunpack.c.h.b16 %v2116
        %v3360 = vunpack.c.l.b16 %v2117
        %v3361 = vunpack.c.h.b16 %v2117
        %v3362 = vunpack.c.l.b16 %v2118
        %v3363 = vunpack.c.h.b16 %v2118
        %v3364 = vunpack.c.l.b16 %v2119
        %v3365 = vunpack.c.h.b16 %v2119
        %v3366 = vunpack.c.l.b16 %v2120
        %v3367 = vunpack.c.h.b16 %v2120
        %v3368 = vunpack.c.l.b16 %v2121
        %v3369 = vunpack.c.h.b16 %v2121
        %v3370 = vunpack.c.l.b16 %v2122
        %v3371 = vunpack.c.h.b16 %v2122
        %v3372 = vunpack.c.l.b16 %v2123
        %v3373 = vunpack.c.h.b16 %v2123
        %v3374 = vunpack.c.l.b16 %v2124
        %v3375 = vunpack.c.h.b16 %v2124
        %v3376 = vunpack.c.l.b16 %v2125
        %v3377 = vunpack.c.h.b16 %v2125
        %v3378 = vunpack.c.l.b16 %v2126
        %v3379 = vunpack.c.h.b16 %v2126
        %v3380 = vunpack.c.l.b16 %v2127
        %v3381 = vunpack.c.h.b16 %v2127
        %v3382 = vunpack.c.l.b16 %v2128
        %v3383 = vunpack.c.h.b16 %v2128
        %v3384 = vunpack.c.l.b16 %v2129
        %v3385 = vunpack.c.h.b16 %v2129
        %v3386 = vunpack.c.l.b16 %v2130
        %v3387 = vunpack.c.h.b16 %v2130
        %v3388 = vunpack.c.l.b16 %v2131
        %v3389 = vunpack.c.h.b16 %v2131
        %v3390 = vunpack.c.l.b16 %v2132
        %v3391 = vunpack.c.h.b16 %v2132
        %v3392 = vunpack.c.l.b16 %v2133
        %v3393 = vunpack.c.h.b16 %v2133
        %v3394 = vunpack.c.l.b16 %v2134
        %v3395 = vunpack.c.h.b16 %v2134
        %v3396 = vunpack.c.l.b16 %v2135
        %v3397 = vunpack.c.h.b16 %v2135
        %v3398 = vunpack.c.l.b16 %v2136
        %v3399 = vunpack.c.h.b16 %v2136
        %v3400 = vunpack.c.l.b16 %v2137
        %v3401 = vunpack.c.h.b16 %v2137
        %v3402 = vunpack.c.l.b16 %v2138
        %v3403 = vunpack.c.h.b16 %v2138
        %v3404 = vunpack.c.l.b16 %v2139
        %v3405 = vunpack.c.h.b16 %v2139
        %v3406 = vunpack.c.l.b16 %v2140
        %v3407 = vunpack.c.h.b16 %v2140
        %v3408 = vunpack.c.l.b16 %v2141
        %v3409 = vunpack.c.h.b16 %v2141
        %v3410 = vunpack.c.l.b16 %v2142
        %v3411 = vunpack.c.h.b16 %v2142
        %v3412 = vunpack.c.l.b16 %v2143
        %v3413 = vunpack.c.h.b16 %v2143
        %v3414 = vunpack.c.l.b16 %v2144
        %v3415 = vunpack.c.h.b16 %v2144
        %v3416 = vunpack.c.l.b16 %v2145
        %v3417 = vunpack.c.h.b16 %v2145
        %v3418 = vunpack.c.l.b16 %v2146
        %v3419 = vunpack.c.h.b16 %v2146
        %v3420 = vunpack.c.l.b16 %v2147
        %v3421 = vunpack.c.h.b16 %v2147
        %v3422 = vunpack.c.l.b16 %v2148
        %v3423 = vunpack.c.h.b16 %v2148
        %v3424 = vunpack.c.l.b16 %v2149
        %v3425 = vunpack.c.h.b16 %v2149
        %v3426 = vunpack.c.l.b16 %v2150
        %v3427 = vunpack.c.h.b16 %v2150
        %v3428 = vunpack.c.l.b16 %v2151
        %v3429 = vunpack.c.h.b16 %v2151
        %v3430 = vunpack.c.l.b16 %v2152
        %v3431 = vunpack.c.h.b16 %v2152
        %v3432 = vunpack.c.l.b16 %v2153
        %v3433 = vunpack.c.h.b16 %v2153
        %v3434 = vunpack.c.l.b16 %v2154
        %v3435 = vunpack.c.h.b16 %v2154
        %v3436 = vunpack.c.l.b16 %v2155
        %v3437 = vunpack.c.h.b16 %v2155
        %v3438 = vunpack.c.l.b16 %v2156
        %v3439 = vunpack.c.h.b16 %v2156
        %v3440 = vunpack.c.l.b16 %v2157
        %v3441 = vunpack.c.h.b16 %v2157
        %v3442 = vunpack.c.l.b16 %v2158
        %v3443 = vunpack.c.h.b16 %v2158
        %v3444 = vunpack.c.l.b16 %v2159
        %v3445 = vunpack.c.h.b16 %v2159
        %v3446 = vunpack.c.l.b16 %v2160
        %v3447 = vunpack.c.h.b16 %v2160
        %v3448 = vunpack.c.l.b16 %v2161
        %v3449 = vunpack.c.h.b16 %v2161
        %v3450 = vunpack.c.l.b16 %v2162
        %v3451 = vunpack.c.h.b16 %v2162
        %v3452 = vunpack.c.l.b16 %v2163
        %v3453 = vunpack.c.h.b16 %v2163
        %v3454 = vunpack.c.l.b16 %v2164
        %v3455 = vunpack.c.h.b16 %v2164
        %v3456 = vunpack.c.l.b16 %v2165
        %v3457 = vunpack.c.h.b16 %v2165
        %v3458 = vunpack.c.l.b16 %v2166
        %v3459 = vunpack.c.h.b16 %v2166
        %v3460 = vunpack.c.l.b16 %v2167
        %v3461 = vunpack.c.h.b16 %v2167
        %v3462 = vunpack.c.l.b16 %v2168
        %v3463 = vunpack.c.h.b16 %v2168
        %v3464 = vunpack.c.l.b16 %v2169
        %v3465 = vunpack.c.h.b16 %v2169
        %v3466 = vunpack.c.l.b16 %v2170
        %v3467 = vunpack.c.h.b16 %v2170
        %v3468 = vunpack.c.l.b16 %v2171
        %v3469 = vunpack.c.h.b16 %v2171
        %v3470 = vunpack.c.l.b16 %v2172
        %v3471 = vunpack.c.h.b16 %v2172
        %v3472 = vunpack.c.l.b16 %v2173
        %v3473 = vunpack.c.h.b16 %v2173
        %v3474 = vunpack.c.l.b16 %v2174
        %v3475 = vunpack.c.h.b16 %v2174
        %v3476 = vunpack.c.l.b16 %v2175
        %v3477 = vunpack.c.h.b16 %v2175
        %v3478 = vunpack.c.l.b16 %v2176
        %v3479 = vunpack.c.h.b16 %v2176
        %v3480 = vunpack.c.l.b16 %v2177
        %v3481 = vunpack.c.h.b16 %v2177
        %v3482 = vunpack.c.l.b16 %v2178
        %v3483 = vunpack.c.h.b16 %v2178
        %v3484 = vunpack.c.l.b16 %v2179
        %v3485 = vunpack.c.h.b16 %v2179
        %v3486 = vunpack.c.l.b16 %v2180
        %v3487 = vunpack.c.h.b16 %v2180
        %v3488 = vunpack.c.l.b16 %v2181
        %v3489 = vunpack.c.h.b16 %v2181
        %v3490 = vunpack.c.l.b16 %v2182
        %v3491 = vunpack.c.h.b16 %v2182
        %v3492 = vunpack.c.l.b16 %v2183
        %v3493 = vunpack.c.h.b16 %v2183
        %v3494 = vunpack.c.l.b16 %v2184
        %v3495 = vunpack.c.h.b16 %v2184
        %v3496 = vunpack.c.l.b16 %v2185
        %v3497 = vunpack.c.h.b16 %v2185
        %v3498 = vunpack.c.l.b16 %v2186
        %v3499 = vunpack.c.h.b16 %v2186
        %v3500 = vunpack.c.l.b16 %v2187
        %v3501 = vunpack.c.h.b16 %v2187
        %v3502 = vunpack.c.l.b16 %v2188
        %v3503 = vunpack.c.h.b16 %v2188
        %v3504 = vunpack.c.l.b16 %v2189
        %v3505 = vunpack.c.h.b16 %v2189
        %v3506 = vunpack.c.l.b16 %v2190
        %v3507 = vunpack.c.h.b16 %v2190
        %v3508 = vunpack.c.l.b16 %v2191
        %v3509 = vunpack.c.h.b16 %v2191
        %v3510 = vunpack.c.l.b16 %v2192
        %v3511 = vunpack.c.h.b16 %v2192
        %v3512 = vunpack.c.l.b16 %v2193
        %v3513 = vunpack.c.h.b16 %v2193
        %v3514 = vunpack.c.l.b16 %v2194
        %v3515 = vunpack.c.h.b16 %v2194
        %v3516 = vunpack.c.l.b16 %v2195
        %v3517 = vunpack.c.h.b16 %v2195
        %v3518 = vunpack.c.l.b16 %v2196
        %v3519 = vunpack.c.h.b16 %v2196
        %v3520 = vunpack.c.l.b16 %v2197
        %v3521 = vunpack.c.h.b16 %v2197
        %v3522 = vunpack.c.l.b16 %v2198
        %v3523 = vunpack.c.h.b16 %v2198
        %v3524 = vunpack.c.l.b16 %v2199
        %v3525 = vunpack.c.h.b16 %v2199
        %v3526 = vunpack.c.l.b16 %v2200
        %v3527 = vunpack.c.h.b16 %v2200
        %v3528 = vunpack.c.l.b16 %v2201
        %v3529 = vunpack.c.h.b16 %v2201
        %v3530 = vunpack.c.l.b16 %v2202
        %v3531 = vunpack.c.h.b16 %v2202
        %v3532 = vunpack.c.l.b16 %v2203
        %v3533 = vunpack.c.h.b16 %v2203
        %v3534 = vunpack.c.l.b16 %v2204
        %v3535 = vunpack.c.h.b16 %v2204
        %v3536 = vunpack.c.l.b16 %v2205
        %v3537 = vunpack.c.h.b16 %v2205
        %v3538 = vunpack.c.l.b16 %v2206
        %v3539 = vunpack.c.h.b16 %v2206
        %v3540 = vunpack.c.l.b16 %v2207
        %v3541 = vunpack.c.h.b16 %v2207
        %v3542 = vunpack.c.l.b16 %v2208
        %v3543 = vunpack.c.h.b16 %v2208
        %v3544 = vunpack.c.l.b16 %v2209
        %v3545 = vunpack.c.h.b16 %v2209
        %v3546 = vunpack.c.l.b16 %v2210
        %v3547 = vunpack.c.h.b16 %v2210
        %v3548 = vunpack.c.l.b16 %v2211
        %v3549 = vunpack.c.h.b16 %v2211
        %v3550 = vunpack.c.l.b16 %v2212
        %v3551 = vunpack.c.h.b16 %v2212
        %v3552 = vunpack.c.l.b16 %v2213
        %v3553 = vunpack.c.h.b16 %v2213
        %v3554 = vunpack.c.l.b16 %v2214
        %v3555 = vunpack.c.h.b16 %v2214
        %v3556 = vunpack.c.l.b16 %v2215
        %v3557 = vunpack.c.h.b16 %v2215
        %v3558 = vunpack.c.l.b16 %v2216
        %v3559 = vunpack.c.h.b16 %v2216
        %v3560 = vunpack.c.l.b16 %v2217
        %v3561 = vunpack.c.h.b16 %v2217
        %v3562 = vunpack.c.l.b16 %v2218
        %v3563 = vunpack.c.h.b16 %v2218
        %v3564 = vunpack.c.l.b16 %v2219
        %v3565 = vunpack.c.h.b16 %v2219
        %v3566 = vunpack.c.l.b16 %v2220
        %v3567 = vunpack.c.h.b16 %v2220
        %v3568 = vunpack.c.l.b16 %v2221
        %v3569 = vunpack.c.h.b16 %v2221
        %v3570 = vunpack.c.l.b16 %v2222
        %v3571 = vunpack.c.h.b16 %v2222
        %v3572 = vunpack.c.l.b16 %v2223
        %v3573 = vunpack.c.h.b16 %v2223
        %v3574 = vunpack.c.l.b16 %v2224
        %v3575 = vunpack.c.h.b16 %v2224
        %v3576 = vunpack.c.l.b16 %v2225
        %v3577 = vunpack.c.h.b16 %v2225
        %v3578 = vunpack.c.l.b16 %v2226
        %v3579 = vunpack.c.h.b16 %v2226
        %v3580 = vunpack.c.l.b16 %v2227
        %v3581 = vunpack.c.h.b16 %v2227
        %v3582 = vunpack.c.l.b16 %v2228
        %v3583 = vunpack.c.h.b16 %v2228
        %v3584 = vunpack.c.l.b16 %v2229
        %v3585 = vunpack.c.h.b16 %v2229
        %v3586 = vunpack.c.l.b16 %v2230
        %v3587 = vunpack.c.h.b16 %v2230
        %v3588 = vunpack.c.l.b16 %v2231
        %v3589 = vunpack.c.h.b16 %v2231
        %v3590 = vunpack.c.l.b16 %v2232
        %v3591 = vunpack.c.h.b16 %v2232
        %v3592 = vunpack.c.l.b16 %v2233
        %v3593 = vunpack.c.h.b16 %v2233
        %v3594 = vunpack.c.l.b16 %v2234
        %v3595 = vunpack.c.h.b16 %v2234
        %v3596 = vunpack.c.l.b16 %v2235
        %v3597 = vunpack.c.h.b16 %v2235
        %v3598 = vunpack.c.l.b16 %v2236
        %v3599 = vunpack.c.h.b16 %v2236
        %v3600 = vunpack.c.l.b16 %v2237
        %v3601 = vunpack.c.h.b16 %v2237
        %v3602 = vunpack.c.l.b16 %v2238
        %v3603 = vunpack.c.h.b16 %v2238
        %v3604 = vunpack.c.l.b16 %v2239
        %v3605 = vunpack.c.h.b16 %v2239
        %v3606 = vunpack.c.l.b16 %v2240
        %v3607 = vunpack.c.h.b16 %v2240
        %v3608 = vunpack.c.l.b16 %v2241
        %v3609 = vunpack.c.h.b16 %v2241
        %v3610 = vunpack.c.l.b16 %v2242
        %v3611 = vunpack.c.h.b16 %v2242
        %v3612 = vunpack.c.l.b16 %v2243
        %v3613 = vunpack.c.h.b16 %v2243
        %v3614 = vunpack.c.l.b16 %v2244
        %v3615 = vunpack.c.h.b16 %v2244
        %v3616 = vunpack.c.l.b16 %v2245
        %v3617 = vunpack.c.h.b16 %v2245
        %v3618 = vunpack.c.l.b16 %v2246
        %v3619 = vunpack.c.h.b16 %v2246
        %v3620 = vunpack.c.l.b16 %v2247
        %v3621 = vunpack.c.h.b16 %v2247
        %v3622 = vunpack.c.l.b16 %v2248
        %v3623 = vunpack.c.h.b16 %v2248
        %v3624 = vunpack.c.l.b16 %v2249
        %v3625 = vunpack.c.h.b16 %v2249
        %v3626 = vunpack.c.l.b16 %v2250
        %v3627 = vunpack.c.h.b16 %v2250
        %v3628 = vunpack.c.l.b16 %v2251
        %v3629 = vunpack.c.h.b16 %v2251
        %v3630 = vunpack.c.l.b16 %v2252
        %v3631 = vunpack.c.h.b16 %v2252
        %v3632 = vunpack.c.l.b16 %v2253
        %v3633 = vunpack.c.h.b16 %v2253
        %v3634 = vunpack.c.l.b16 %v2254
        %v3635 = vunpack.c.h.b16 %v2254
        %v3636 = vunpack.c.l.b16 %v2255
        %v3637 = vunpack.c.h.b16 %v2255
        %v3638 = vunpack.c.l.b16 %v2256
        %v3639 = vunpack.c.h.b16 %v2256
        %v3640 = vunpack.c.l.b16 %v2257
        %v3641 = vunpack.c.h.b16 %v2257
        %v3642 = vunpack.c.l.b16 %v2258
        %v3643 = vunpack.c.h.b16 %v2258
        %v3644 = vunpack.c.l.b16 %v2259
        %v3645 = vunpack.c.h.b16 %v2259
        %v3646 = vunpack.c.l.b16 %v2260
        %v3647 = vunpack.c.h.b16 %v2260
        %v3648 = vunpack.c.l.b16 %v2261
        %v3649 = vunpack.c.h.b16 %v2261
        %v3650 = vunpack.c.l.b16 %v2262
        %v3651 = vunpack.c.h.b16 %v2262
        %v3652 = vunpack.c.l.b16 %v2263
        %v3653 = vunpack.c.h.b16 %v2263
        %v3654 = vunpack.c.l.b16 %v2264
        %v3655 = vunpack.c.h.b16 %v2264
        %v3656 = vunpack.c.l.b16 %v2265
        %v3657 = vunpack.c.h.b16 %v2265
        %v3658 = vunpack.c.l.b16 %v2266
        %v3659 = vunpack.c.h.b16 %v2266
        %v3660 = vunpack.c.l.b16 %v2267
        %v3661 = vunpack.c.h.b16 %v2267
        %v3662 = vunpack.c.l.b16 %v2268
        %v3663 = vunpack.c.h.b16 %v2268
        %v3664 = vunpack.c.l.b16 %v2269
        %v3665 = vunpack.c.h.b16 %v2269
        %v3666 = vunpack.c.l.b16 %v2270
        %v3667 = vunpack.c.h.b16 %v2270
        %v3668 = vunpack.c.l.b16 %v2271
        %v3669 = vunpack.c.h.b16 %v2271
        %v3670 = vunpack.c.l.b16 %v2272
        %v3671 = vunpack.c.h.b16 %v2272
        %v3672 = vunpack.c.l.b16 %v2273
        %v3673 = vunpack.c.h.b16 %v2273
        %v3674 = vunpack.c.l.b16 %v2274
        %v3675 = vunpack.c.h.b16 %v2274
        %v3676 = vunpack.c.l.b16 %v2275
        %v3677 = vunpack.c.h.b16 %v2275
        %v3678 = vunpack.c.l.b16 %v2276
        %v3679 = vunpack.c.h.b16 %v2276
        %v3680 = vunpack.c.l.b16 %v2277
        %v3681 = vunpack.c.h.b16 %v2277
        %v3682 = vunpack.c.l.b16 %v2278
        %v3683 = vunpack.c.h.b16 %v2278
        %v3684 = vunpack.c.l.b16 %v2279
        %v3685 = vunpack.c.h.b16 %v2279
        %v3686 = vunpack.c.l.b16 %v2280
        %v3687 = vunpack.c.h.b16 %v2280
        %v3688 = vunpack.c.l.b16 %v2281
        %v3689 = vunpack.c.h.b16 %v2281
        %v3690 = vunpack.c.l.b16 %v2282
        %v3691 = vunpack.c.h.b16 %v2282
        %v3692 = vunpack.c.l.b16 %v2283
        %v3693 = vunpack.c.h.b16 %v2283
        %v3694 = vunpack.c.l.b16 %v2284
        %v3695 = vunpack.c.h.b16 %v2284
        %v3696 = vunpack.c.l.b16 %v2285
        %v3697 = vunpack.c.h.b16 %v2285
        %v3698 = vunpack.c.l.b16 %v2286
        %v3699 = vunpack.c.h.b16 %v2286
        %v3700 = vunpack.c.l.b16 %v2287
        %v3701 = vunpack.c.h.b16 %v2287
        %v3702 = vunpack.c.l.b16 %v2288
        %v3703 = vunpack.c.h.b16 %v2288
        %v3704 = vunpack.c.l.b16 %v2289
        %v3705 = vunpack.c.h.b16 %v2289
        %v3706 = vunpack.c.l.b16 %v2290
        %v3707 = vunpack.c.h.b16 %v2290
        %v3708 = vunpack.c.l.b16 %v2291
        %v3709 = vunpack.c.h.b16 %v2291
        %v3710 = vunpack.c.l.b16 %v2292
        %v3711 = vunpack.c.h.b16 %v2292
        %v3712 = vunpack.c.l.b16 %v2293
        %v3713 = vunpack.c.h.b16 %v2293
        %v3714 = vunpack.c.l.b16 %v2294
        %v3715 = vunpack.c.h.b16 %v2294
        %v3716 = vunpack.c.l.b16 %v2295
        %v3717 = vunpack.c.h.b16 %v2295
        %v3718 = vunpack.c.l.b16 %v2296
        %v3719 = vunpack.c.h.b16 %v2296
        %v3720 = vunpack.c.l.b16 %v2297
        %v3721 = vunpack.c.h.b16 %v2297
        %v3722 = vunpack.c.l.b16 %v2298
        %v3723 = vunpack.c.h.b16 %v2298
        %v3724 = vunpack.c.l.b16 %v2299
        %v3725 = vunpack.c.h.b16 %v2299
        %v3726 = vunpack.c.l.b16 %v2300
        %v3727 = vunpack.c.h.b16 %v2300
        %v3728 = vunpack.c.l.b16 %v2301
        %v3729 = vunpack.c.h.b16 %v2301
        %v3730 = vunpack.c.l.b16 %v2302
        %v3731 = vunpack.c.h.b16 %v2302
        %v3732 = vunpack.c.l.b16 %v2303
        %v3733 = vunpack.c.h.b16 %v2303
        %v3734 = vunpack.c.l.b16 %v2304
        %v3735 = vunpack.c.h.b16 %v2304
        %v3736 = vunpack.c.l.b16 %v2305
        %v3737 = vunpack.c.h.b16 %v2305
        %v3738 = vunpack.c.l.b16 %v2306
        %v3739 = vunpack.c.h.b16 %v2306
        %v3740 = vunpack.c.l.b16 %v2307
        %v3741 = vunpack.c.h.b16 %v2307
        %v3742 = vpack.c.b16 %v2982, %v2974
        %v3743 = vpack.c.b16 %v2983, %v2975
        %v3744 = vpack.c.b16 %v2984, %v2976
        %v3745 = vpack.c.b16 %v2985, %v2977
        %v3746 = vpack.c.b16 %v2986, %v2978
        %v3747 = vpack.c.b16 %v2987, %v2979
        %v3748 = vpack.c.b16 %v2988, %v2980
        %v3749 = vpack.c.b16 %v2989, %v2981
        %v3750 = vpack.c.b16 %v2998, %v2990
        %v3751 = vpack.c.b16 %v2999, %v2991
        %v3752 = vpack.c.b16 %v3000, %v2992
        %v3753 = vpack.c.b16 %v3001, %v2993
        %v3754 = vpack.c.b16 %v3002, %v2994
        %v3755 = vpack.c.b16 %v3003, %v2995
        %v3756 = vpack.c.b16 %v3004, %v2996
        %v3757 = vpack.c.b16 %v3005, %v2997
        %v3758 = vpack.c.b16 %v3014, %v3006
        %v3759 = vpack.c.b16 %v3015, %v3007
        %v3760 = vpack.c.b16 %v3016, %v3008
        %v3761 = vpack.c.b16 %v3017, %v3009
        %v3762 = vpack.c.b16 %v3018, %v3010
        %v3763 = vpack.c.b16 %v3019, %v3011
        %v3764 = vpack.c.b16 %v3020, %v3012
        %v3765 = vpack.c.b16 %v3021, %v3013
        %v3766 = vpack.c.b16 %v3030, %v3022
        %v3767 = vpack.c.b16 %v3031, %v3023
        %v3768 = vpack.c.b16 %v3032, %v3024
        %v3769 = vpack.c.b16 %v3033, %v3025
        %v3770 = vpack.c.b16 %v3034, %v3026
        %v3771 = vpack.c.b16 %v3035, %v3027
        %v3772 = vpack.c.b16 %v3036, %v3028
        %v3773 = vpack.c.b16 %v3037, %v3029
        %v3774 = vpack.c.b16 %v3046, %v3038
        %v3775 = vpack.c.b16 %v3047, %v3039
        %v3776 = vpack.c.b16 %v3048, %v3040
        %v3777 = vpack.c.b16 %v3049, %v3041
        %v3778 = vpack.c.b16 %v3050, %v3042
        %v3779 = vpack.c.b16 %v3051, %v3043
        %v3780 = vpack.c.b16 %v3052, %v3044
        %v3781 = vpack.c.b16 %v3053, %v3045
        %v3782 = vpack.c.b16 %v3062, %v3054
        %v3783 = vpack.c.b16 %v3063, %v3055
        %v3784 = vpack.c.b16 %v3064, %v3056
        %v3785 = vpack.c.b16 %v3065, %v3057
        %v3786 = vpack.c.b16 %v3066, %v3058
        %v3787 = vpack.c.b16 %v3067, %v3059
        %v3788 = vpack.c.b16 %v3068, %v3060
        %v3789 = vpack.c.b16 %v3069, %v3061
        %v3790 = vpack.c.b16 %v3078, %v3070
        %v3791 = vpack.c.b16 %v3079, %v3071
        %v3792 = vpack.c.b16 %v3080, %v3072
        %v3793 = vpack.c.b16 %v3081, %v3073
        %v3794 = vpack.c.b16 %v3082, %v3074
        %v3795 = vpack.c.b16 %v3083, %v3075
        %v3796 = vpack.c.b16 %v3084, %v3076
        %v3797 = vpack.c.b16 %v3085, %v3077
        %v3798 = vpack.c.b16 %v3094, %v3086
        %v3799 = vpack.c.b16 %v3095, %v3087
        %v3800 = vpack.c.b16 %v3096, %v3088
        %v3801 = vpack.c.b16 %v3097, %v3089
        %v3802 = vpack.c.b16 %v3098, %v3090
        %v3803 = vpack.c.b16 %v3099, %v3091
        %v3804 = vpack.c.b16 %v3100, %v3092
        %v3805 = vpack.c.b16 %v3101, %v3093
        %v3806 = vpack.c.b16 %v3110, %v3102
        %v3807 = vpack.c.b16 %v3111, %v3103
        %v3808 = vpack.c.b16 %v3112, %v3104
        %v3809 = vpack.c.b16 %v3113, %v3105
        %v3810 = vpack.c.b16 %v3114, %v3106
        %v3811 = vpack.c.b16 %v3115, %v3107
        %v3812 = vpack.c.b16 %v3116, %v3108
        %v3813 = vpack.c.b16 %v3117, %v3109
        %v3814 = vpack.c.b16 %v3126, %v3118
        %v3815 = vpack.c.b16 %v3127, %v3119
        %v3816 = vpack.c.b16 %v3128, %v3120
        %v3817 = vpack.c.b16 %v3129, %v3121
        %v3818 = vpack.c.b16 %v3130, %v3122
        %v3819 = vpack.c.b16 %v3131, %v3123
        %v3820 = vpack.c.b16 %v3132, %v3124
        %v3821 = vpack.c.b16 %v3133, %v3125
        %v3822 = vpack.c.b16 %v3142, %v3134
        %v3823 = vpack.c.b16 %v3143, %v3135
        %v3824 = vpack.c.b16 %v3144, %v3136
        %v3825 = vpack.c.b16 %v3145, %v3137
        %v3826 = vpack.c.b16 %v3146, %v3138
        %v3827 = vpack.c.b16 %v3147, %v3139
        %v3828 = vpack.c.b16 %v3148, %v3140
        %v3829 = vpack.c.b16 %v3149, %v3141
        %v3830 = vpack.c.b16 %v3158, %v3150
        %v3831 = vpack.c.b16 %v3159, %v3151
        %v3832 = vpack.c.b16 %v3160, %v3152
        %v3833 = vpack.c.b16 %v3161, %v3153
        %v3834 = vpack.c.b16 %v3162, %v3154
        %v3835 = vpack.c.b16 %v3163, %v3155
        %v3836 = vpack.c.b16 %v3164, %v3156
        %v3837 = vpack.c.b16 %v3165, %v3157
        %v3838 = vpack.c.b16 %v3174, %v3166
        %v3839 = vpack.c.b16 %v3175, %v3167
        %v3840 = vpack.c.b16 %v3176, %v3168
        %v3841 = vpack.c.b16 %v3177, %v3169
        %v3842 = vpack.c.b16 %v3178, %v3170
        %v3843 = vpack.c.b16 %v3179, %v3171
        %v3844 = vpack.c.b16 %v3180, %v3172
        %v3845 = vpack.c.b16 %v3181, %v3173
        %v3846 = vpack.c.b16 %v3190, %v3182
        %v3847 = vpack.c.b16 %v3191, %v3183
        %v3848 = vpack.c.b16 %v3192, %v3184
        %v3849 = vpack.c.b16 %v3193, %v3185
        %v3850 = vpack.c.b16 %v3194, %v3186
        %v3851 = vpack.c.b16 %v3195, %v3187
        %v3852 = vpack.c.b16 %v3196, %v3188
        %v3853 = vpack.c.b16 %v3197, %v3189
        %v3854 = vpack.c.b16 %v3206, %v3198
        %v3855 = vpack.c.b16 %v3207, %v3199
        %v3856 = vpack.c.b16 %v3208, %v3200
        %v3857 = vpack.c.b16 %v3209, %v3201
        %v3858 = vpack.c.b16 %v3210, %v3202
        %v3859 = vpack.c.b16 %v3211, %v3203
        %v3860 = vpack.c.b16 %v3212, %v3204
        %v3861 = vpack.c.b16 %v3213, %v3205
        %v3862 = vpack.c.b16 %v3222, %v3214
        %v3863 = vpack.c.b16 %v3223, %v3215
        %v3864 = vpack.c.b16 %v3224, %v3216
        %v3865 = vpack.c.b16 %v3225, %v3217
        %v3866 = vpack.c.b16 %v3226, %v3218
        %v3867 = vpack.c.b16 %v3227, %v3219
        %v3868 = vpack.c.b16 %v3228, %v3220
        %v3869 = vpack.c.b16 %v3229, %v3221
        %v3870 = vpack.c.b16 %v3238, %v3230
        %v3871 = vpack.c.b16 %v3239, %v3231
        %v3872 = vpack.c.b16 %v3240, %v3232
        %v3873 = vpack.c.b16 %v3241, %v3233
        %v3874 = vpack.c.b16 %v3242, %v3234
        %v3875 = vpack.c.b16 %v3243, %v3235
        %v3876 = vpack.c.b16 %v3244, %v3236
        %v3877 = vpack.c.b16 %v3245, %v3237
        %v3878 = vpack.c.b16 %v3254, %v3246
        %v3879 = vpack.c.b16 %v3255, %v3247
        %v3880 = vpack.c.b16 %v3256, %v3248
        %v3881 = vpack.c.b16 %v3257, %v3249
        %v3882 = vpack.c.b16 %v3258, %v3250
        %v3883 = vpack.c.b16 %v3259, %v3251
        %v3884 = vpack.c.b16 %v3260, %v3252
        %v3885 = vpack.c.b16 %v3261, %v3253
        %v3886 = vpack.c.b16 %v3270, %v3262
        %v3887 = vpack.c.b16 %v3271, %v3263
        %v3888 = vpack.c.b16 %v3272, %v3264
        %v3889 = vpack.c.b16 %v3273, %v3265
        %v3890 = vpack.c.b16 %v3274, %v3266
        %v3891 = vpack.c.b16 %v3275, %v3267
        %v3892 = vpack.c.b16 %v3276, %v3268
        %v3893 = vpack.c.b16 %v3277, %v3269
        %v3894 = vpack.c.b16 %v3286, %v3278
        %v3895 = vpack.c.b16 %v3287, %v3279
        %v3896 = vpack.c.b16 %v3288, %v3280
        %v3897 = vpack.c.b16 %v3289, %v3281
        %v3898 = vpack.c.b16 %v3290, %v3282
        %v3899 = vpack.c.b16 %v3291, %v3283
        %v3900 = vpack.c.b16 %v3292, %v3284
        %v3901 = vpack.c.b16 %v3293, %v3285
        %v3902 = vpack.c.b16 %v3302, %v3294
        %v3903 = vpack.c.b16 %v3303, %v3295
        %v3904 = vpack.c.b16 %v3304, %v3296
        %v3905 = vpack.c.b16 %v3305, %v3297
        %v3906 = vpack.c.b16 %v3306, %v3298
        %v3907 = vpack.c.b16 %v3307, %v3299
        %v3908 = vpack.c.b16 %v3308, %v3300
        %v3909 = vpack.c.b16 %v3309, %v3301
        %v3910 = vpack.c.b16 %v3318, %v3310
        %v3911 = vpack.c.b16 %v3319, %v3311
        %v3912 = vpack.c.b16 %v3320, %v3312
        %v3913 = vpack.c.b16 %v3321, %v3313
        %v3914 = vpack.c.b16 %v3322, %v3314
        %v3915 = vpack.c.b16 %v3323, %v3315
        %v3916 = vpack.c.b16 %v3324, %v3316
        %v3917 = vpack.c.b16 %v3325, %v3317
        %v3918 = vpack.c.b16 %v3334, %v3326
        %v3919 = vpack.c.b16 %v3335, %v3327
        %v3920 = vpack.c.b16 %v3336, %v3328
        %v3921 = vpack.c.b16 %v3337, %v3329
        %v3922 = vpack.c.b16 %v3338, %v3330
        %v3923 = vpack.c.b16 %v3339, %v3331
        %v3924 = vpack.c.b16 %v3340, %v3332
        %v3925 = vpack.c.b16 %v3341, %v3333
        %v3926 = vpack.c.b16 %v3350, %v3342
        %v3927 = vpack.c.b16 %v3351, %v3343
        %v3928 = vpack.c.b16 %v3352, %v3344
        %v3929 = vpack.c.b16 %v3353, %v3345
        %v3930 = vpack.c.b16 %v3354, %v3346
        %v3931 = vpack.c.b16 %v3355, %v3347
        %v3932 = vpack.c.b16 %v3356, %v3348
        %v3933 = vpack.c.b16 %v3357, %v3349
        %v3934 = vpack.c.b16 %v3366, %v3358
        %v3935 = vpack.c.b16 %v3367, %v3359
        %v3936 = vpack.c.b16 %v3368, %v3360
        %v3937 = vpack.c.b16 %v3369, %v3361
        %v3938 = vpack.c.b16 %v3370, %v3362
        %v3939 = vpack.c.b16 %v3371, %v3363
        %v3940 = vpack.c.b16 %v3372, %v3364
        %v3941 = vpack.c.b16 %v3373, %v3365
        %v3942 = vpack.c.b16 %v3382, %v3374
        %v3943 = vpack.c.b16 %v3383, %v3375
        %v3944 = vpack.c.b16 %v3384, %v3376
        %v3945 = vpack.c.b16 %v3385, %v3377
        %v3946 = vpack.c.b16 %v3386, %v3378
        %v3947 = vpack.c.b16 %v3387, %v3379
        %v3948 = vpack.c.b16 %v3388, %v3380
        %v3949 = vpack.c.b16 %v3389, %v3381
        %v3950 = vpack.c.b16 %v3398, %v3390
        %v3951 = vpack.c.b16 %v3399, %v3391
        %v3952 = vpack.c.b16 %v3400, %v3392
        %v3953 = vpack.c.b16 %v3401, %v3393
        %v3954 = vpack.c.b16 %v3402, %v3394
        %v3955 = vpack.c.b16 %v3403, %v3395
        %v3956 = vpack.c.b16 %v3404, %v3396
        %v3957 = vpack.c.b16 %v3405, %v3397
        %v3958 = vpack.c.b16 %v3414, %v3406
        %v3959 = vpack.c.b16 %v3415, %v3407
        %v3960 = vpack.c.b16 %v3416, %v3408
        %v3961 = vpack.c.b16 %v3417, %v3409
        %v3962 = vpack.c.b16 %v3418, %v3410
        %v3963 = vpack.c.b16 %v3419, %v3411
        %v3964 = vpack.c.b16 %v3420, %v3412
        %v3965 = vpack.c.b16 %v3421, %v3413
        %v3966 = vpack.c.b16 %v3430, %v3422
        %v3967 = vpack.c.b16 %v3431, %v3423
        %v3968 = vpack.c.b16 %v3432, %v3424
        %v3969 = vpack.c.b16 %v3433, %v3425
        %v3970 = vpack.c.b16 %v3434, %v3426
        %v3971 = vpack.c.b16 %v3435, %v3427
        %v3972 = vpack.c.b16 %v3436, %v3428
        %v3973 = vpack.c.b16 %v3437, %v3429
        %v3974 = vpack.c.b16 %v3446, %v3438
        %v3975 = vpack.c.b16 %v3447, %v3439
        %v3976 = vpack.c.b16 %v3448, %v3440
        %v3977 = vpack.c.b16 %v3449, %v3441
        %v3978 = vpack.c.b16 %v3450, %v3442
        %v3979 = vpack.c.b16 %v3451, %v3443
        %v3980 = vpack.c.b16 %v3452, %v3444
        %v3981 = vpack.c.b16 %v3453, %v3445
        %v3982 = vpack.c.b16 %v3462, %v3454
        %v3983 = vpack.c.b16 %v3463, %v3455
        %v3984 = vpack.c.b16 %v3464, %v3456
        %v3985 = vpack.c.b16 %v3465, %v3457
        %v3986 = vpack.c.b16 %v3466, %v3458
        %v3987 = vpack.c.b16 %v3467, %v3459
        %v3988 = vpack.c.b16 %v3468, %v3460
        %v3989 = vpack.c.b16 %v3469, %v3461
        %v3990 = vpack.c.b16 %v3478, %v3470
        %v3991 = vpack.c.b16 %v3479, %v3471
        %v3992 = vpack.c.b16 %v3480, %v3472
        %v3993 = vpack.c.b16 %v3481, %v3473
        %v3994 = vpack.c.b16 %v3482, %v3474
        %v3995 = vpack.c.b16 %v3483, %v3475
        %v3996 = vpack.c.b16 %v3484, %v3476
        %v3997 = vpack.c.b16 %v3485, %v3477
        %v3998 = vpack.c.b16 %v3494, %v3486
        %v3999 = vpack.c.b16 %v3495, %v3487
        %v4000 = vpack.c.b16 %v3496, %v3488
        %v4001 = vpack.c.b16 %v3497, %v3489
        %v4002 = vpack.c.b16 %v3498, %v3490
        %v4003 = vpack.c.b16 %v3499, %v3491
        %v4004 = vpack.c.b16 %v3500, %v3492
        %v4005 = vpack.c.b16 %v3501, %v3493
        %v4006 = vpack.c.b16 %v3510, %v3502
        %v4007 = vpack.c.b16 %v3511, %v3503
        %v4008 = vpack.c.b16 %v3512, %v3504
        %v4009 = vpack.c.b16 %v3513, %v3505
        %v4010 = vpack.c.b16 %v3514, %v3506
        %v4011 = vpack.c.b16 %v3515, %v3507
        %v4012 = vpack.c.b16 %v3516, %v3508
        %v4013 = vpack.c.b16 %v3517, %v3509
        %v4014 = vpack.c.b16 %v3526, %v3518
        %v4015 = vpack.c.b16 %v3527, %v3519
        %v4016 = vpack.c.b16 %v3528, %v3520
        %v4017 = vpack.c.b16 %v3529, %v3521
        %v4018 = vpack.c.b16 %v3530, %v3522
        %v4019 = vpack.c.b16 %v3531, %v3523
        %v4020 = vpack.c.b16 %v3532, %v3524
        %v4021 = vpack.c.b16 %v3533, %v3525
        %v4022 = vpack.c.b16 %v3542, %v3534
        %v4023 = vpack.c.b16 %v3543, %v3535
        %v4024 = vpack.c.b16 %v3544, %v3536
        %v4025 = vpack.c.b16 %v3545, %v3537
        %v4026 = vpack.c.b16 %v3546, %v3538
        %v4027 = vpack.c.b16 %v3547, %v3539
        %v4028 = vpack.c.b16 %v3548, %v3540
        %v4029 = vpack.c.b16 %v3549, %v3541
        %v4030 = vpack.c.b16 %v3558, %v3550
        %v4031 = vpack.c.b16 %v3559, %v3551
        %v4032 = vpack.c.b16 %v3560, %v3552
        %v4033 = vpack.c.b16 %v3561, %v3553
        %v4034 = vpack.c.b16 %v3562, %v3554
        %v4035 = vpack.c.b16 %v3563, %v3555
        %v4036 = vpack.c.b16 %v3564, %v3556
        %v4037 = vpack.c.b16 %v3565, %v3557
        %v4038 = vpack.c.b16 %v3574, %v3566
        %v4039 = vpack.c.b16 %v3575, %v3567
        %v4040 = vpack.c.b16 %v3576, %v3568
        %v4041 = vpack.c.b16 %v3577, %v3569
        %v4042 = vpack.c.b16 %v3578, %v3570
        %v4043 = vpack.c.b16 %v3579, %v3571
        %v4044 = vpack.c.b16 %v3580, %v3572
        %v4045 = vpack.c.b16 %v3581, %v3573
        %v4046 = vpack.c.b16 %v3590, %v3582
        %v4047 = vpack.c.b16 %v3591, %v3583
        %v4048 = vpack.c.b16 %v3592, %v3584
        %v4049 = vpack.c.b16 %v3593, %v3585
        %v4050 = vpack.c.b16 %v3594, %v3586
        %v4051 = vpack.c.b16 %v3595, %v3587
        %v4052 = vpack.c.b16 %v3596, %v3588
        %v4053 = vpack.c.b16 %v3597, %v3589
        %v4054 = vpack.c.b16 %v3606, %v3598
        %v4055 = vpack.c.b16 %v3607, %v3599
        %v4056 = vpack.c.b16 %v3608, %v3600
        %v4057 = vpack.c.b16 %v3609, %v3601
        %v4058 = vpack.c.b16 %v3610, %v3602
        %v4059 = vpack.c.b16 %v3611, %v3603
        %v4060 = vpack.c.b16 %v3612, %v3604
        %v4061 = vpack.c.b16 %v3613, %v3605
        %v4062 = vpack.c.b16 %v3622, %v3614
        %v4063 = vpack.c.b16 %v3623, %v3615
        %v4064 = vpack.c.b16 %v3624, %v3616
        %v4065 = vpack.c.b16 %v3625, %v3617
        %v4066 = vpack.c.b16 %v3626, %v3618
        %v4067 = vpack.c.b16 %v3627, %v3619
        %v4068 = vpack.c.b16 %v3628, %v3620
        %v4069 = vpack.c.b16 %v3629, %v3621
        %v4070 = vpack.c.b16 %v3638, %v3630
        %v4071 = vpack.c.b16 %v3639, %v3631
        %v4072 = vpack.c.b16 %v3640, %v3632
        %v4073 = vpack.c.b16 %v3641, %v3633
        %v4074 = vpack.c.b16 %v3642, %v3634
        %v4075 = vpack.c.b16 %v3643, %v3635
        %v4076 = vpack.c.b16 %v3644, %v3636
        %v4077 = vpack.c.b16 %v3645, %v3637
        %v4078 = vpack.c.b16 %v3654, %v3646
        %v4079 = vpack.c.b16 %v3655, %v3647
        %v4080 = vpack.c.b16 %v3656, %v3648
        %v4081 = vpack.c.b16 %v3657, %v3649
        %v4082 = vpack.c.b16 %v3658, %v3650
        %v4083 = vpack.c.b16 %v3659, %v3651
        %v4084 = vpack.c.b16 %v3660, %v3652
        %v4085 = vpack.c.b16 %v3661, %v3653
        %v4086 = vpack.c.b16 %v3670, %v3662
        %v4087 = vpack.c.b16 %v3671, %v3663
        %v4088 = vpack.c.b16 %v3672, %v3664
        %v4089 = vpack.c.b16 %v3673, %v3665
        %v4090 = vpack.c.b16 %v3674, %v3666
        %v4091 = vpack.c.b16 %v3675, %v3667
        %v4092 = vpack.c.b16 %v3676, %v3668
        %v4093 = vpack.c.b16 %v3677, %v3669
        %v4094 = vpack.c.b16 %v3686, %v3678
        %v4095 = vpack.c.b16 %v3687, %v3679
        %v4096 = vpack.c.b16 %v3688, %v3680
        %v4097 = vpack.c.b16 %v3689, %v3681
        %v4098 = vpack.c.b16 %v3690, %v3682
        %v4099 = vpack.c.b16 %v3691, %v3683
        %v4100 = vpack.c.b16 %v3692, %v3684
        %v4101 = vpack.c.b16 %v3693, %v3685
        %v4102 = vpack.c.b16 %v3702, %v3694
        %v4103 = vpack.c.b16 %v3703, %v3695
        %v4104 = vpack.c.b16 %v3704, %v3696
        %v4105 = vpack.c.b16 %v3705, %v3697
        %v4106 = vpack.c.b16 %v3706, %v3698
        %v4107 = vpack.c.b16 %v3707, %v3699
        %v4108 = vpack.c.b16 %v3708, %v3700
        %v4109 = vpack.c.b16 %v3709, %v3701
        %v4110 = vpack.c.b16 %v3718, %v3710
        %v4111 = vpack.c.b16 %v3719, %v3711
        %v4112 = vpack.c.b16 %v3720, %v3712
        %v4113 = vpack.c.b16 %v3721, %v3713
        %v4114 = vpack.c.b16 %v3722, %v3714
        %v4115 = vpack.c.b16 %v3723, %v3715
        %v4116 = vpack.c.b16 %v3724, %v3716
        %v4117 = vpack.c.b16 %v3725, %v3717
        %v4118 = vpack.c.b16 %v3734, %v3726
        %v4119 = vpack.c.b16 %v3735, %v3727
        %v4120 = vpack.c.b16 %v3736, %v3728
        %v4121 = vpack.c.b16 %v3737, %v3729
        %v4122 = vpack.c.b16 %v3738, %v3730
        %v4123 = vpack.c.b16 %v3739, %v3731
        %v4124 = vpack.c.b16 %v3740, %v3732
        %v4125 = vpack.c.b16 %v3741, %v3733
        %4510 = vmatprep.subr.bf16.mxu0 %v3799
        %4511 = vmatpush1.bf16.msra.mxu0 %v3798
        %4512 = vmatprep.subr.bf16.mxu0 %v3791
        %4513 = vmatpush1.bf16.msra.mxu0 %v3790
        %4514 = vmatprep.subr.bf16.mxu0 %v3783
        %4515 = vmatpush1.bf16.msra.mxu0 %v3782
        %4516 = vmatprep.subr.bf16.mxu0 %v3775
        %4517 = vmatpush1.bf16.msra.mxu0 %v3774
        %4518 = vmatprep.subr.bf16.mxu0 %v3767
        %4519 = vmatpush1.bf16.msra.mxu0 %v3766
        %4520 = vmatprep.subr.bf16.mxu0 %v3759
        %4521 = vmatpush1.bf16.msra.mxu0 %v3758
        %4522 = vmatprep.subr.bf16.mxu0 %v3751
        %4523 = vmatpush1.bf16.msra.mxu0 %v3750
        %4524 = vmatprep.subr.bf16.mxu0 %v3743
        %4525 = vmatpush1.bf16.msra.mxu0 %v3742
        %4526 = vmatprep.subr.bf16.mxu0 %v3863
        %4527 = vmatpush2.bf16.msra.mxu0 %v3862
        %4528 = vmatprep.subr.bf16.mxu0 %v3855
        %4529 = vmatpush2.bf16.msra.mxu0 %v3854
        %4530 = vmatprep.subr.bf16.mxu0 %v3847
        %4531 = vmatpush2.bf16.msra.mxu0 %v3846
        %4532 = vmatprep.subr.bf16.mxu0 %v3839
        %4533 = vmatpush2.bf16.msra.mxu0 %v3838
        %4534 = vmatprep.subr.bf16.mxu0 %v3831
        %4535 = vmatpush2.bf16.msra.mxu0 %v3830
        %4536 = vmatprep.subr.bf16.mxu0 %v3823
        %4537 = vmatpush2.bf16.msra.mxu0 %v3822
        %4538 = vmatprep.subr.bf16.mxu0 %v3815
        %4539 = vmatpush2.bf16.msra.mxu0 %v3814
        %4540 = vmatprep.subr.bf16.mxu0 %v3807
        %4541 = vmatpush2.bf16.msra.mxu0 %v3806
        %4542 = vmatprep.mubr.bf16.mxu0 %v2495
        %4543 = vmatmul.mubr.bf16.gmra.mxu0 %v2494
        %v4544 = vpop.f32.mrf.mxu0
        %v4545 = vadd.f32 %v2313, %v4544
        %v4546 = vpop.f32.mrf.mxu0
        %v4547 = vadd.f32 %v2317, %v4546
        %v4548 = vpop.f32.mrf.mxu0
        %v4549 = vadd.f32 %v2313, %v4548
        %v4550 = vpop.f32.mrf.mxu0
        %v4551 = vadd.f32 %v2317, %v4550
        %4552 = vmatprep.mubr.bf16.mxu0 %v2501
        %4553 = vmatmul.mubr.bf16.gmra.mxu0 %v2500
        %v4554 = vpop.f32.mrf.mxu0
        %v4555 = vadd.f32 %v2313, %v4554
        %v4556 = vpop.f32.mrf.mxu0
        %v4557 = vadd.f32 %v2317, %v4556
        %v4558 = vpop.f32.mrf.mxu0
        %v4559 = vadd.f32 %v2313, %v4558
        %v4560 = vpop.f32.mrf.mxu0
        %v4561 = vadd.f32 %v2317, %v4560
        %4562 = vmatprep.mubr.bf16.mxu0 %v2507
        %4563 = vmatmul.mubr.bf16.gmra.mxu0 %v2506
        %v4564 = vpop.f32.mrf.mxu0
        %v4565 = vadd.f32 %v2313, %v4564
        %v4566 = vpop.f32.mrf.mxu0
        %v4567 = vadd.f32 %v2317, %v4566
        %v4568 = vpop.f32.mrf.mxu0
        %v4569 = vadd.f32 %v2313, %v4568
        %v4570 = vpop.f32.mrf.mxu0
        %v4571 = vadd.f32 %v2317, %v4570
        %4572 = vmatprep.mubr.bf16.mxu0 %v2513
        %4573 = vmatmul.mubr.bf16.gmra.mxu0 %v2512
        %v4574 = vpop.f32.mrf.mxu0
        %v4575 = vadd.f32 %v2313, %v4574
        %v4576 = vpop.f32.mrf.mxu0
        %v4577 = vadd.f32 %v2317, %v4576
        %v4578 = vpop.f32.mrf.mxu0
        %v4579 = vadd.f32 %v2313, %v4578
        %v4580 = vpop.f32.mrf.mxu0
        %v4581 = vadd.f32 %v2317, %v4580
        %4582 = vmatprep.mubr.bf16.mxu0 %v2519
        %4583 = vmatmul.mubr.bf16.gmra.mxu0 %v2518
        %v4584 = vpop.f32.mrf.mxu0
        %v4585 = vadd.f32 %v2313, %v4584
        %v4586 = vpop.f32.mrf.mxu0
        %v4587 = vadd.f32 %v2317, %v4586
        %v4588 = vpop.f32.mrf.mxu0
        %v4589 = vadd.f32 %v2313, %v4588
        %v4590 = vpop.f32.mrf.mxu0
        %v4591 = vadd.f32 %v2317, %v4590
        %4592 = vmatprep.mubr.bf16.mxu0 %v2525
        %4593 = vmatmul.mubr.bf16.gmra.mxu0 %v2524
        %v4594 = vpop.f32.mrf.mxu0
        %v4595 = vadd.f32 %v2313, %v4594
        %v4596 = vpop.f32.mrf.mxu0
        %v4597 = vadd.f32 %v2317, %v4596
        %v4598 = vpop.f32.mrf.mxu0
        %v4599 = vadd.f32 %v2313, %v4598
        %v4600 = vpop.f32.mrf.mxu0
        %v4601 = vadd.f32 %v2317, %v4600
        %4602 = vmatprep.mubr.bf16.mxu0 %v2531
        %4603 = vmatmul.mubr.bf16.gmra.mxu0 %v2530
        %v4604 = vpop.f32.mrf.mxu0
        %v4605 = vadd.f32 %v2313, %v4604
        %v4606 = vpop.f32.mrf.mxu0
        %v4607 = vadd.f32 %v2317, %v4606
        %v4608 = vpop.f32.mrf.mxu0
        %v4609 = vadd.f32 %v2313, %v4608
        %v4610 = vpop.f32.mrf.mxu0
        %v4611 = vadd.f32 %v2317, %v4610
        %4612 = vmatprep.mubr.bf16.mxu0 %v2537
        %4613 = vmatmul.mubr.bf16.gmra.mxu0 %v2536
        %v4614 = vpop.f32.mrf.mxu0
        %v4615 = vadd.f32 %v2313, %v4614
        %v4616 = vpop.f32.mrf.mxu0
        %v4617 = vadd.f32 %v2317, %v4616
        %v4618 = vpop.f32.mrf.mxu0
        %v4619 = vadd.f32 %v2313, %v4618
        %v4620 = vpop.f32.mrf.mxu0
        %v4621 = vadd.f32 %v2317, %v4620
        %4622 = vdwg.mxu0
        %4623 = vmatprep.subr.bf16.mxu0 %v3927
        %4624 = vmatpush1.bf16.msra.mxu0 %v3926
        %4625 = vmatprep.subr.bf16.mxu0 %v3919
        %4626 = vmatpush1.bf16.msra.mxu0 %v3918
        %4627 = vmatprep.subr.bf16.mxu0 %v3911
        %4628 = vmatpush1.bf16.msra.mxu0 %v3910
        %4629 = vmatprep.subr.bf16.mxu0 %v3903
        %4630 = vmatpush1.bf16.msra.mxu0 %v3902
        %4631 = vmatprep.subr.bf16.mxu0 %v3895
        %4632 = vmatpush1.bf16.msra.mxu0 %v3894
        %4633 = vmatprep.subr.bf16.mxu0 %v3887
        %4634 = vmatpush1.bf16.msra.mxu0 %v3886
        %4635 = vmatprep.subr.bf16.mxu0 %v3879
        %4636 = vmatpush1.bf16.msra.mxu0 %v3878
        %4637 = vmatprep.subr.bf16.mxu0 %v3871
        %4638 = vmatpush1.bf16.msra.mxu0 %v3870
        %4639 = vmatprep.subr.bf16.mxu0 %v3991
        %4640 = vmatpush2.bf16.msra.mxu0 %v3990
        %4641 = vmatprep.subr.bf16.mxu0 %v3983
        %4642 = vmatpush2.bf16.msra.mxu0 %v3982
        %4643 = vmatprep.subr.bf16.mxu0 %v3975
        %4644 = vmatpush2.bf16.msra.mxu0 %v3974
        %4645 = vmatprep.subr.bf16.mxu0 %v3967
        %4646 = vmatpush2.bf16.msra.mxu0 %v3966
        %4647 = vmatprep.subr.bf16.mxu0 %v3959
        %4648 = vmatpush2.bf16.msra.mxu0 %v3958
        %4649 = vmatprep.subr.bf16.mxu0 %v3951
        %4650 = vmatpush2.bf16.msra.mxu0 %v3950
        %4651 = vmatprep.subr.bf16.mxu0 %v3943
        %4652 = vmatpush2.bf16.msra.mxu0 %v3942
        %4653 = vmatprep.subr.bf16.mxu0 %v3935
        %4654 = vmatpush2.bf16.msra.mxu0 %v3934
        %4655 = vmatprep.mubr.bf16.mxu0 %v2497
        %4656 = vmatmul.mubr.bf16.gmra.mxu0 %v2496
        %v4657 = vpop.f32.mrf.mxu0
        %v4658 = vadd.f32 %v4545, %v4657
        %v4659 = vpop.f32.mrf.mxu0
        %v4660 = vadd.f32 %v4547, %v4659
        %v4661 = vpop.f32.mrf.mxu0
        %v4662 = vadd.f32 %v4549, %v4661
        %v4663 = vpop.f32.mrf.mxu0
        %v4664 = vadd.f32 %v4551, %v4663
        %4665 = vmatprep.mubr.bf16.mxu0 %v2503
        %4666 = vmatmul.mubr.bf16.gmra.mxu0 %v2502
        %v4667 = vpop.f32.mrf.mxu0
        %v4668 = vadd.f32 %v4555, %v4667
        %v4669 = vpop.f32.mrf.mxu0
        %v4670 = vadd.f32 %v4557, %v4669
        %v4671 = vpop.f32.mrf.mxu0
        %v4672 = vadd.f32 %v4559, %v4671
        %v4673 = vpop.f32.mrf.mxu0
        %v4674 = vadd.f32 %v4561, %v4673
        %4675 = vmatprep.mubr.bf16.mxu0 %v2509
        %4676 = vmatmul.mubr.bf16.gmra.mxu0 %v2508
        %v4677 = vpop.f32.mrf.mxu0
        %v4678 = vadd.f32 %v4565, %v4677
        %v4679 = vpop.f32.mrf.mxu0
        %v4680 = vadd.f32 %v4567, %v4679
        %v4681 = vpop.f32.mrf.mxu0
        %v4682 = vadd.f32 %v4569, %v4681
        %v4683 = vpop.f32.mrf.mxu0
        %v4684 = vadd.f32 %v4571, %v4683
        %4685 = vmatprep.mubr.bf16.mxu0 %v2515
        %4686 = vmatmul.mubr.bf16.gmra.mxu0 %v2514
        %v4687 = vpop.f32.mrf.mxu0
        %v4688 = vadd.f32 %v4575, %v4687
        %v4689 = vpop.f32.mrf.mxu0
        %v4690 = vadd.f32 %v4577, %v4689
        %v4691 = vpop.f32.mrf.mxu0
        %v4692 = vadd.f32 %v4579, %v4691
        %v4693 = vpop.f32.mrf.mxu0
        %v4694 = vadd.f32 %v4581, %v4693
        %4695 = vmatprep.mubr.bf16.mxu0 %v2521
        %4696 = vmatmul.mubr.bf16.gmra.mxu0 %v2520
        %v4697 = vpop.f32.mrf.mxu0
        %v4698 = vadd.f32 %v4585, %v4697
        %v4699 = vpop.f32.mrf.mxu0
        %v4700 = vadd.f32 %v4587, %v4699
        %v4701 = vpop.f32.mrf.mxu0
        %v4702 = vadd.f32 %v4589, %v4701
        %v4703 = vpop.f32.mrf.mxu0
        %v4704 = vadd.f32 %v4591, %v4703
        %4705 = vmatprep.mubr.bf16.mxu0 %v2527
        %4706 = vmatmul.mubr.bf16.gmra.mxu0 %v2526
        %v4707 = vpop.f32.mrf.mxu0
        %v4708 = vadd.f32 %v4595, %v4707
        %v4709 = vpop.f32.mrf.mxu0
        %v4710 = vadd.f32 %v4597, %v4709
        %v4711 = vpop.f32.mrf.mxu0
        %v4712 = vadd.f32 %v4599, %v4711
        %v4713 = vpop.f32.mrf.mxu0
        %v4714 = vadd.f32 %v4601, %v4713
        %4715 = vmatprep.mubr.bf16.mxu0 %v2533
        %4716 = vmatmul.mubr.bf16.gmra.mxu0 %v2532
        %v4717 = vpop.f32.mrf.mxu0
        %v4718 = vadd.f32 %v4605, %v4717
        %v4719 = vpop.f32.mrf.mxu0
        %v4720 = vadd.f32 %v4607, %v4719
        %v4721 = vpop.f32.mrf.mxu0
        %v4722 = vadd.f32 %v4609, %v4721
        %v4723 = vpop.f32.mrf.mxu0
        %v4724 = vadd.f32 %v4611, %v4723
        %4725 = vmatprep.mubr.bf16.mxu0 %v2539
        %4726 = vmatmul.mubr.bf16.gmra.mxu0 %v2538
        %v4727 = vpop.f32.mrf.mxu0
        %v4728 = vadd.f32 %v4615, %v4727
        %v4729 = vpop.f32.mrf.mxu0
        %v4730 = vadd.f32 %v4617, %v4729
        %v4731 = vpop.f32.mrf.mxu0
        %v4732 = vadd.f32 %v4619, %v4731
        %v4733 = vpop.f32.mrf.mxu0
        %v4734 = vadd.f32 %v4621, %v4733
        %4735 = vdwg.mxu0
        %4736 = vmatprep.subr.bf16.mxu0 %v4055
        %4737 = vmatpush1.bf16.msra.mxu0 %v4054
        %4738 = vmatprep.subr.bf16.mxu0 %v4047
        %4739 = vmatpush1.bf16.msra.mxu0 %v4046
        %4740 = vmatprep.subr.bf16.mxu0 %v4039
        %4741 = vmatpush1.bf16.msra.mxu0 %v4038
        %4742 = vmatprep.subr.bf16.mxu0 %v4031
        %4743 = vmatpush1.bf16.msra.mxu0 %v4030
        %4744 = vmatprep.subr.bf16.mxu0 %v4023
        %4745 = vmatpush1.bf16.msra.mxu0 %v4022
        %4746 = vmatprep.subr.bf16.mxu0 %v4015
        %4747 = vmatpush1.bf16.msra.mxu0 %v4014
        %4748 = vmatprep.subr.bf16.mxu0 %v4007
        %4749 = vmatpush1.bf16.msra.mxu0 %v4006
        %4750 = vmatprep.subr.bf16.mxu0 %v3999
        %4751 = vmatpush1.bf16.msra.mxu0 %v3998
        %4752 = vmatprep.subr.bf16.mxu0 %v4119
        %4753 = vmatpush2.bf16.msra.mxu0 %v4118
        %4754 = vmatprep.subr.bf16.mxu0 %v4111
        %4755 = vmatpush2.bf16.msra.mxu0 %v4110
        %4756 = vmatprep.subr.bf16.mxu0 %v4103
        %4757 = vmatpush2.bf16.msra.mxu0 %v4102
        %4758 = vmatprep.subr.bf16.mxu0 %v4095
        %4759 = vmatpush2.bf16.msra.mxu0 %v4094
        %4760 = vmatprep.subr.bf16.mxu0 %v4087
        %4761 = vmatpush2.bf16.msra.mxu0 %v4086
        %4762 = vmatprep.subr.bf16.mxu0 %v4079
        %4763 = vmatpush2.bf16.msra.mxu0 %v4078
        %4764 = vmatprep.subr.bf16.mxu0 %v4071
        %4765 = vmatpush2.bf16.msra.mxu0 %v4070
        %4766 = vmatprep.subr.bf16.mxu0 %v4063
        %4767 = vmatpush2.bf16.msra.mxu0 %v4062
        %4768 = vmatprep.mubr.bf16.mxu0 %v2499
        %4769 = vmatmul.mubr.bf16.gmra.mxu0 %v2498
        %v4770 = vpop.f32.mrf.mxu0
        %v4771 = vadd.f32 %v4658, %v4770
        %v4772 = vpop.f32.mrf.mxu0
        %v4773 = vadd.f32 %v4660, %v4772
        %v4774 = vpop.f32.mrf.mxu0
        %v4775 = vadd.f32 %v4662, %v4774
        %v4776 = vpop.f32.mrf.mxu0
        %v4777 = vadd.f32 %v4664, %v4776
        %4778 = vmatprep.mubr.bf16.mxu0 %v2505
        %4779 = vmatmul.mubr.bf16.gmra.mxu0 %v2504
        %v4780 = vpop.f32.mrf.mxu0
        %v4781 = vadd.f32 %v4668, %v4780
        %v4782 = vpop.f32.mrf.mxu0
        %v4783 = vadd.f32 %v4670, %v4782
        %v4784 = vpop.f32.mrf.mxu0
        %v4785 = vadd.f32 %v4672, %v4784
        %v4786 = vpop.f32.mrf.mxu0
        %v4787 = vadd.f32 %v4674, %v4786
        %4788 = vmatprep.mubr.bf16.mxu0 %v2511
        %4789 = vmatmul.mubr.bf16.gmra.mxu0 %v2510
        %v4790 = vpop.f32.mrf.mxu0
        %v4791 = vadd.f32 %v4678, %v4790
        %v4792 = vpop.f32.mrf.mxu0
        %v4793 = vadd.f32 %v4680, %v4792
        %v4794 = vpop.f32.mrf.mxu0
        %v4795 = vadd.f32 %v4682, %v4794
        %v4796 = vpop.f32.mrf.mxu0
        %v4797 = vadd.f32 %v4684, %v4796
        %4798 = vmatprep.mubr.bf16.mxu0 %v2517
        %4799 = vmatmul.mubr.bf16.gmra.mxu0 %v2516
        %v4800 = vpop.f32.mrf.mxu0
        %v4801 = vadd.f32 %v4688, %v4800
        %v4802 = vpop.f32.mrf.mxu0
        %v4803 = vadd.f32 %v4690, %v4802
        %v4804 = vpop.f32.mrf.mxu0
        %v4805 = vadd.f32 %v4692, %v4804
        %v4806 = vpop.f32.mrf.mxu0
        %v4807 = vadd.f32 %v4694, %v4806
        %4808 = vmatprep.mubr.bf16.mxu0 %v2523
        %4809 = vmatmul.mubr.bf16.gmra.mxu0 %v2522
        %v4810 = vpop.f32.mrf.mxu0
        %v4811 = vadd.f32 %v4698, %v4810
        %v4812 = vpop.f32.mrf.mxu0
        %v4813 = vadd.f32 %v4700, %v4812
        %v4814 = vpop.f32.mrf.mxu0
        %v4815 = vadd.f32 %v4702, %v4814
        %v4816 = vpop.f32.mrf.mxu0
        %v4817 = vadd.f32 %v4704, %v4816
        %4818 = vmatprep.mubr.bf16.mxu0 %v2529
        %4819 = vmatmul.mubr.bf16.gmra.mxu0 %v2528
        %v4820 = vpop.f32.mrf.mxu0
        %v4821 = vadd.f32 %v4708, %v4820
        %v4822 = vpop.f32.mrf.mxu0
        %v4823 = vadd.f32 %v4710, %v4822
        %v4824 = vpop.f32.mrf.mxu0
        %v4825 = vadd.f32 %v4712, %v4824
        %v4826 = vpop.f32.mrf.mxu0
        %v4827 = vadd.f32 %v4714, %v4826
        %4828 = vmatprep.mubr.bf16.mxu0 %v2535
        %4829 = vmatmul.mubr.bf16.gmra.mxu0 %v2534
        %v4830 = vpop.f32.mrf.mxu0
        %v4831 = vadd.f32 %v4718, %v4830
        %v4832 = vpop.f32.mrf.mxu0
        %v4833 = vadd.f32 %v4720, %v4832
        %v4834 = vpop.f32.mrf.mxu0
        %v4835 = vadd.f32 %v4722, %v4834
        %v4836 = vpop.f32.mrf.mxu0
        %v4837 = vadd.f32 %v4724, %v4836
        %4838 = vmatprep.mubr.bf16.mxu0 %v2541
        %4839 = vmatmul.mubr.bf16.gmra.mxu0 %v2540
        %v4840 = vpop.f32.mrf.mxu0
        %v4841 = vadd.f32 %v4728, %v4840
        %v4842 = vpop.f32.mrf.mxu0
        %v4843 = vadd.f32 %v4730, %v4842
        %v4844 = vpop.f32.mrf.mxu0
        %v4845 = vadd.f32 %v4732, %v4844
        %v4846 = vpop.f32.mrf.mxu0
        %v4847 = vadd.f32 %v4734, %v4846
        %4848 = vdwg.mxu0
        %4849 = vmatprep.subr.bf16.mxu0 %v3801
        %4850 = vmatpush1.bf16.msra.mxu0 %v3800
        %4851 = vmatprep.subr.bf16.mxu0 %v3793
        %4852 = vmatpush1.bf16.msra.mxu0 %v3792
        %4853 = vmatprep.subr.bf16.mxu0 %v3785
        %4854 = vmatpush1.bf16.msra.mxu0 %v3784
        %4855 = vmatprep.subr.bf16.mxu0 %v3777
        %4856 = vmatpush1.bf16.msra.mxu0 %v3776
        %4857 = vmatprep.subr.bf16.mxu0 %v3769
        %4858 = vmatpush1.bf16.msra.mxu0 %v3768
        %4859 = vmatprep.subr.bf16.mxu0 %v3761
        %4860 = vmatpush1.bf16.msra.mxu0 %v3760
        %4861 = vmatprep.subr.bf16.mxu0 %v3753
        %4862 = vmatpush1.bf16.msra.mxu0 %v3752
        %4863 = vmatprep.subr.bf16.mxu0 %v3745
        %4864 = vmatpush1.bf16.msra.mxu0 %v3744
        %4865 = vmatprep.subr.bf16.mxu0 %v3865
        %4866 = vmatpush2.bf16.msra.mxu0 %v3864
        %4867 = vmatprep.subr.bf16.mxu0 %v3857
        %4868 = vmatpush2.bf16.msra.mxu0 %v3856
        %4869 = vmatprep.subr.bf16.mxu0 %v3849
        %4870 = vmatpush2.bf16.msra.mxu0 %v3848
        %4871 = vmatprep.subr.bf16.mxu0 %v3841
        %4872 = vmatpush2.bf16.msra.mxu0 %v3840
        %4873 = vmatprep.subr.bf16.mxu0 %v3833
        %4874 = vmatpush2.bf16.msra.mxu0 %v3832
        %4875 = vmatprep.subr.bf16.mxu0 %v3825
        %4876 = vmatpush2.bf16.msra.mxu0 %v3824
        %4877 = vmatprep.subr.bf16.mxu0 %v3817
        %4878 = vmatpush2.bf16.msra.mxu0 %v3816
        %4879 = vmatprep.subr.bf16.mxu0 %v3809
        %4880 = vmatpush2.bf16.msra.mxu0 %v3808
        %4881 = vmatprep.mubr.bf16.mxu0 %v2495
        %4882 = vmatmul.mubr.bf16.gmra.mxu0 %v2494
        %v4883 = vpop.f32.mrf.mxu0
        %v4884 = vadd.f32 %v2321, %v4883
        %v4885 = vpop.f32.mrf.mxu0
        %v4886 = vadd.f32 %v2325, %v4885
        %v4887 = vpop.f32.mrf.mxu0
        %v4888 = vadd.f32 %v2321, %v4887
        %v4889 = vpop.f32.mrf.mxu0
        %v4890 = vadd.f32 %v2325, %v4889
        %4891 = vmatprep.mubr.bf16.mxu0 %v2501
        %4892 = vmatmul.mubr.bf16.gmra.mxu0 %v2500
        %v4893 = vpop.f32.mrf.mxu0
        %v4894 = vadd.f32 %v2321, %v4893
        %v4895 = vpop.f32.mrf.mxu0
        %v4896 = vadd.f32 %v2325, %v4895
        %v4897 = vpop.f32.mrf.mxu0
        %v4898 = vadd.f32 %v2321, %v4897
        %v4899 = vpop.f32.mrf.mxu0
        %v4900 = vadd.f32 %v2325, %v4899
        %4901 = vmatprep.mubr.bf16.mxu0 %v2507
        %4902 = vmatmul.mubr.bf16.gmra.mxu0 %v2506
        %v4903 = vpop.f32.mrf.mxu0
        %v4904 = vadd.f32 %v2321, %v4903
        %v4905 = vpop.f32.mrf.mxu0
        %v4906 = vadd.f32 %v2325, %v4905
        %v4907 = vpop.f32.mrf.mxu0
        %v4908 = vadd.f32 %v2321, %v4907
        %v4909 = vpop.f32.mrf.mxu0
        %v4910 = vadd.f32 %v2325, %v4909
        %4911 = vmatprep.mubr.bf16.mxu0 %v2513
        %4912 = vmatmul.mubr.bf16.gmra.mxu0 %v2512
        %v4913 = vpop.f32.mrf.mxu0
        %v4914 = vadd.f32 %v2321, %v4913
        %v4915 = vpop.f32.mrf.mxu0
        %v4916 = vadd.f32 %v2325, %v4915
        %v4917 = vpop.f32.mrf.mxu0
        %v4918 = vadd.f32 %v2321, %v4917
        %v4919 = vpop.f32.mrf.mxu0
        %v4920 = vadd.f32 %v2325, %v4919
        %4921 = vmatprep.mubr.bf16.mxu0 %v2519
        %4922 = vmatmul.mubr.bf16.gmra.mxu0 %v2518
        %v4923 = vpop.f32.mrf.mxu0
        %v4924 = vadd.f32 %v2321, %v4923
        %v4925 = vpop.f32.mrf.mxu0
        %v4926 = vadd.f32 %v2325, %v4925
        %v4927 = vpop.f32.mrf.mxu0
        %v4928 = vadd.f32 %v2321, %v4927
        %v4929 = vpop.f32.mrf.mxu0
        %v4930 = vadd.f32 %v2325, %v4929
        %4931 = vmatprep.mubr.bf16.mxu0 %v2525
        %4932 = vmatmul.mubr.bf16.gmra.mxu0 %v2524
        %v4933 = vpop.f32.mrf.mxu0
        %v4934 = vadd.f32 %v2321, %v4933
        %v4935 = vpop.f32.mrf.mxu0
        %v4936 = vadd.f32 %v2325, %v4935
        %v4937 = vpop.f32.mrf.mxu0
        %v4938 = vadd.f32 %v2321, %v4937
        %v4939 = vpop.f32.mrf.mxu0
        %v4940 = vadd.f32 %v2325, %v4939
        %4941 = vmatprep.mubr.bf16.mxu0 %v2531
        %4942 = vmatmul.mubr.bf16.gmra.mxu0 %v2530
        %v4943 = vpop.f32.mrf.mxu0
        %v4944 = vadd.f32 %v2321, %v4943
        %v4945 = vpop.f32.mrf.mxu0
        %v4946 = vadd.f32 %v2325, %v4945
        %v4947 = vpop.f32.mrf.mxu0
        %v4948 = vadd.f32 %v2321, %v4947
        %v4949 = vpop.f32.mrf.mxu0
        %v4950 = vadd.f32 %v2325, %v4949
        %4951 = vmatprep.mubr.bf16.mxu0 %v2537
        %4952 = vmatmul.mubr.bf16.gmra.mxu0 %v2536
        %v4953 = vpop.f32.mrf.mxu0
        %v4954 = vadd.f32 %v2321, %v4953
        %v4955 = vpop.f32.mrf.mxu0
        %v4956 = vadd.f32 %v2325, %v4955
        %v4957 = vpop.f32.mrf.mxu0
        %v4958 = vadd.f32 %v2321, %v4957
        %v4959 = vpop.f32.mrf.mxu0
        %v4960 = vadd.f32 %v2325, %v4959
        %4961 = vdwg.mxu0
        %4962 = vmatprep.subr.bf16.mxu0 %v3929
        %4963 = vmatpush1.bf16.msra.mxu0 %v3928
        %4964 = vmatprep.subr.bf16.mxu0 %v3921
        %4965 = vmatpush1.bf16.msra.mxu0 %v3920
        %4966 = vmatprep.subr.bf16.mxu0 %v3913
        %4967 = vmatpush1.bf16.msra.mxu0 %v3912
        %4968 = vmatprep.subr.bf16.mxu0 %v3905
        %4969 = vmatpush1.bf16.msra.mxu0 %v3904
        %4970 = vmatprep.subr.bf16.mxu0 %v3897
        %4971 = vmatpush1.bf16.msra.mxu0 %v3896
        %4972 = vmatprep.subr.bf16.mxu0 %v3889
        %4973 = vmatpush1.bf16.msra.mxu0 %v3888
        %4974 = vmatprep.subr.bf16.mxu0 %v3881
        %4975 = vmatpush1.bf16.msra.mxu0 %v3880
        %4976 = vmatprep.subr.bf16.mxu0 %v3873
        %4977 = vmatpush1.bf16.msra.mxu0 %v3872
        %4978 = vmatprep.subr.bf16.mxu0 %v3993
        %4979 = vmatpush2.bf16.msra.mxu0 %v3992
        %4980 = vmatprep.subr.bf16.mxu0 %v3985
        %4981 = vmatpush2.bf16.msra.mxu0 %v3984
        %4982 = vmatprep.subr.bf16.mxu0 %v3977
        %4983 = vmatpush2.bf16.msra.mxu0 %v3976
        %4984 = vmatprep.subr.bf16.mxu0 %v3969
        %4985 = vmatpush2.bf16.msra.mxu0 %v3968
        %4986 = vmatprep.subr.bf16.mxu0 %v3961
        %4987 = vmatpush2.bf16.msra.mxu0 %v3960
        %4988 = vmatprep.subr.bf16.mxu0 %v3953
        %4989 = vmatpush2.bf16.msra.mxu0 %v3952
        %4990 = vmatprep.subr.bf16.mxu0 %v3945
        %4991 = vmatpush2.bf16.msra.mxu0 %v3944
        %4992 = vmatprep.subr.bf16.mxu0 %v3937
        %4993 = vmatpush2.bf16.msra.mxu0 %v3936
        %4994 = vmatprep.mubr.bf16.mxu0 %v2497
        %4995 = vmatmul.mubr.bf16.gmra.mxu0 %v2496
        %v4996 = vpop.f32.mrf.mxu0
        %v4997 = vadd.f32 %v4884, %v4996
        %v4998 = vpop.f32.mrf.mxu0
        %v4999 = vadd.f32 %v4886, %v4998
        %v5000 = vpop.f32.mrf.mxu0
        %v5001 = vadd.f32 %v4888, %v5000
        %v5002 = vpop.f32.mrf.mxu0
        %v5003 = vadd.f32 %v4890, %v5002
        %5004 = vmatprep.mubr.bf16.mxu0 %v2503
        %5005 = vmatmul.mubr.bf16.gmra.mxu0 %v2502
        %v5006 = vpop.f32.mrf.mxu0
        %v5007 = vadd.f32 %v4894, %v5006
        %v5008 = vpop.f32.mrf.mxu0
        %v5009 = vadd.f32 %v4896, %v5008
        %v5010 = vpop.f32.mrf.mxu0
        %v5011 = vadd.f32 %v4898, %v5010
        %v5012 = vpop.f32.mrf.mxu0
        %v5013 = vadd.f32 %v4900, %v5012
        %5014 = vmatprep.mubr.bf16.mxu0 %v2509
        %5015 = vmatmul.mubr.bf16.gmra.mxu0 %v2508
        %v5016 = vpop.f32.mrf.mxu0
        %v5017 = vadd.f32 %v4904, %v5016
        %v5018 = vpop.f32.mrf.mxu0
        %v5019 = vadd.f32 %v4906, %v5018
        %v5020 = vpop.f32.mrf.mxu0
        %v5021 = vadd.f32 %v4908, %v5020
        %v5022 = vpop.f32.mrf.mxu0
        %v5023 = vadd.f32 %v4910, %v5022
        %5024 = vmatprep.mubr.bf16.mxu0 %v2515
        %5025 = vmatmul.mubr.bf16.gmra.mxu0 %v2514
        %v5026 = vpop.f32.mrf.mxu0
        %v5027 = vadd.f32 %v4914, %v5026
        %v5028 = vpop.f32.mrf.mxu0
        %v5029 = vadd.f32 %v4916, %v5028
        %v5030 = vpop.f32.mrf.mxu0
        %v5031 = vadd.f32 %v4918, %v5030
        %v5032 = vpop.f32.mrf.mxu0
        %v5033 = vadd.f32 %v4920, %v5032
        %5034 = vmatprep.mubr.bf16.mxu0 %v2521
        %5035 = vmatmul.mubr.bf16.gmra.mxu0 %v2520
        %v5036 = vpop.f32.mrf.mxu0
        %v5037 = vadd.f32 %v4924, %v5036
        %v5038 = vpop.f32.mrf.mxu0
        %v5039 = vadd.f32 %v4926, %v5038
        %v5040 = vpop.f32.mrf.mxu0
        %v5041 = vadd.f32 %v4928, %v5040
        %v5042 = vpop.f32.mrf.mxu0
        %v5043 = vadd.f32 %v4930, %v5042
        %5044 = vmatprep.mubr.bf16.mxu0 %v2527
        %5045 = vmatmul.mubr.bf16.gmra.mxu0 %v2526
        %v5046 = vpop.f32.mrf.mxu0
        %v5047 = vadd.f32 %v4934, %v5046
        %v5048 = vpop.f32.mrf.mxu0
        %v5049 = vadd.f32 %v4936, %v5048
        %v5050 = vpop.f32.mrf.mxu0
        %v5051 = vadd.f32 %v4938, %v5050
        %v5052 = vpop.f32.mrf.mxu0
        %v5053 = vadd.f32 %v4940, %v5052
        %5054 = vmatprep.mubr.bf16.mxu0 %v2533
        %5055 = vmatmul.mubr.bf16.gmra.mxu0 %v2532
        %v5056 = vpop.f32.mrf.mxu0
        %v5057 = vadd.f32 %v4944, %v5056
        %v5058 = vpop.f32.mrf.mxu0
        %v5059 = vadd.f32 %v4946, %v5058
        %v5060 = vpop.f32.mrf.mxu0
        %v5061 = vadd.f32 %v4948, %v5060
        %v5062 = vpop.f32.mrf.mxu0
        %v5063 = vadd.f32 %v4950, %v5062
        %5064 = vmatprep.mubr.bf16.mxu0 %v2539
        %5065 = vmatmul.mubr.bf16.gmra.mxu0 %v2538
        %v5066 = vpop.f32.mrf.mxu0
        %v5067 = vadd.f32 %v4954, %v5066
        %v5068 = vpop.f32.mrf.mxu0
        %v5069 = vadd.f32 %v4956, %v5068
        %v5070 = vpop.f32.mrf.mxu0
        %v5071 = vadd.f32 %v4958, %v5070
        %v5072 = vpop.f32.mrf.mxu0
        %v5073 = vadd.f32 %v4960, %v5072
        %5074 = vdwg.mxu0
        %5075 = vmatprep.subr.bf16.mxu0 %v4057
        %5076 = vmatpush1.bf16.msra.mxu0 %v4056
        %5077 = vmatprep.subr.bf16.mxu0 %v4049
        %5078 = vmatpush1.bf16.msra.mxu0 %v4048
        %5079 = vmatprep.subr.bf16.mxu0 %v4041
        %5080 = vmatpush1.bf16.msra.mxu0 %v4040
        %5081 = vmatprep.subr.bf16.mxu0 %v4033
        %5082 = vmatpush1.bf16.msra.mxu0 %v4032
        %5083 = vmatprep.subr.bf16.mxu0 %v4025
        %5084 = vmatpush1.bf16.msra.mxu0 %v4024
        %5085 = vmatprep.subr.bf16.mxu0 %v4017
        %5086 = vmatpush1.bf16.msra.mxu0 %v4016
        %5087 = vmatprep.subr.bf16.mxu0 %v4009
        %5088 = vmatpush1.bf16.msra.mxu0 %v4008
        %5089 = vmatprep.subr.bf16.mxu0 %v4001
        %5090 = vmatpush1.bf16.msra.mxu0 %v4000
        %5091 = vmatprep.subr.bf16.mxu0 %v4121
        %5092 = vmatpush2.bf16.msra.mxu0 %v4120
        %5093 = vmatprep.subr.bf16.mxu0 %v4113
        %5094 = vmatpush2.bf16.msra.mxu0 %v4112
        %5095 = vmatprep.subr.bf16.mxu0 %v4105
        %5096 = vmatpush2.bf16.msra.mxu0 %v4104
        %5097 = vmatprep.subr.bf16.mxu0 %v4097
        %5098 = vmatpush2.bf16.msra.mxu0 %v4096
        %5099 = vmatprep.subr.bf16.mxu0 %v4089
        %5100 = vmatpush2.bf16.msra.mxu0 %v4088
        %5101 = vmatprep.subr.bf16.mxu0 %v4081
        %5102 = vmatpush2.bf16.msra.mxu0 %v4080
        %5103 = vmatprep.subr.bf16.mxu0 %v4073
        %5104 = vmatpush2.bf16.msra.mxu0 %v4072
        %5105 = vmatprep.subr.bf16.mxu0 %v4065
        %5106 = vmatpush2.bf16.msra.mxu0 %v4064
        %5107 = vmatprep.mubr.bf16.mxu0 %v2499
        %5108 = vmatmul.mubr.bf16.gmra.mxu0 %v2498
        %v5109 = vpop.f32.mrf.mxu0
        %v5110 = vadd.f32 %v4997, %v5109
        %v5111 = vpop.f32.mrf.mxu0
        %v5112 = vadd.f32 %v4999, %v5111
        %v5113 = vpop.f32.mrf.mxu0
        %v5114 = vadd.f32 %v5001, %v5113
        %v5115 = vpop.f32.mrf.mxu0
        %v5116 = vadd.f32 %v5003, %v5115
        %5117 = vmatprep.mubr.bf16.mxu0 %v2505
        %5118 = vmatmul.mubr.bf16.gmra.mxu0 %v2504
        %v5119 = vpop.f32.mrf.mxu0
        %v5120 = vadd.f32 %v5007, %v5119
        %v5121 = vpop.f32.mrf.mxu0
        %v5122 = vadd.f32 %v5009, %v5121
        %v5123 = vpop.f32.mrf.mxu0
        %v5124 = vadd.f32 %v5011, %v5123
        %v5125 = vpop.f32.mrf.mxu0
        %v5126 = vadd.f32 %v5013, %v5125
        %5127 = vmatprep.mubr.bf16.mxu0 %v2511
        %5128 = vmatmul.mubr.bf16.gmra.mxu0 %v2510
        %v5129 = vpop.f32.mrf.mxu0
        %v5130 = vadd.f32 %v5017, %v5129
        %v5131 = vpop.f32.mrf.mxu0
        %v5132 = vadd.f32 %v5019, %v5131
        %v5133 = vpop.f32.mrf.mxu0
        %v5134 = vadd.f32 %v5021, %v5133
        %v5135 = vpop.f32.mrf.mxu0
        %v5136 = vadd.f32 %v5023, %v5135
        %5137 = vmatprep.mubr.bf16.mxu0 %v2517
        %5138 = vmatmul.mubr.bf16.gmra.mxu0 %v2516
        %v5139 = vpop.f32.mrf.mxu0
        %v5140 = vadd.f32 %v5027, %v5139
        %v5141 = vpop.f32.mrf.mxu0
        %v5142 = vadd.f32 %v5029, %v5141
        %v5143 = vpop.f32.mrf.mxu0
        %v5144 = vadd.f32 %v5031, %v5143
        %v5145 = vpop.f32.mrf.mxu0
        %v5146 = vadd.f32 %v5033, %v5145
        %5147 = vmatprep.mubr.bf16.mxu0 %v2523
        %5148 = vmatmul.mubr.bf16.gmra.mxu0 %v2522
        %v5149 = vpop.f32.mrf.mxu0
        %v5150 = vadd.f32 %v5037, %v5149
        %v5151 = vpop.f32.mrf.mxu0
        %v5152 = vadd.f32 %v5039, %v5151
        %v5153 = vpop.f32.mrf.mxu0
        %v5154 = vadd.f32 %v5041, %v5153
        %v5155 = vpop.f32.mrf.mxu0
        %v5156 = vadd.f32 %v5043, %v5155
        %5157 = vmatprep.mubr.bf16.mxu0 %v2529
        %5158 = vmatmul.mubr.bf16.gmra.mxu0 %v2528
        %v5159 = vpop.f32.mrf.mxu0
        %v5160 = vadd.f32 %v5047, %v5159
        %v5161 = vpop.f32.mrf.mxu0
        %v5162 = vadd.f32 %v5049, %v5161
        %v5163 = vpop.f32.mrf.mxu0
        %v5164 = vadd.f32 %v5051, %v5163
        %v5165 = vpop.f32.mrf.mxu0
        %v5166 = vadd.f32 %v5053, %v5165
        %5167 = vmatprep.mubr.bf16.mxu0 %v2535
        %5168 = vmatmul.mubr.bf16.gmra.mxu0 %v2534
        %v5169 = vpop.f32.mrf.mxu0
        %v5170 = vadd.f32 %v5057, %v5169
        %v5171 = vpop.f32.mrf.mxu0
        %v5172 = vadd.f32 %v5059, %v5171
        %v5173 = vpop.f32.mrf.mxu0
        %v5174 = vadd.f32 %v5061, %v5173
        %v5175 = vpop.f32.mrf.mxu0
        %v5176 = vadd.f32 %v5063, %v5175
        %5177 = vmatprep.mubr.bf16.mxu0 %v2541
        %5178 = vmatmul.mubr.bf16.gmra.mxu0 %v2540
        %v5179 = vpop.f32.mrf.mxu0
        %v5180 = vadd.f32 %v5067, %v5179
        %v5181 = vpop.f32.mrf.mxu0
        %v5182 = vadd.f32 %v5069, %v5181
        %v5183 = vpop.f32.mrf.mxu0
        %v5184 = vadd.f32 %v5071, %v5183
        %v5185 = vpop.f32.mrf.mxu0
        %v5186 = vadd.f32 %v5073, %v5185
        %5187 = vdwg.mxu0
        %5188 = vmatprep.subr.bf16.mxu0 %v3803
        %5189 = vmatpush1.bf16.msra.mxu0 %v3802
        %5190 = vmatprep.subr.bf16.mxu0 %v3795
        %5191 = vmatpush1.bf16.msra.mxu0 %v3794
        %5192 = vmatprep.subr.bf16.mxu0 %v3787
        %5193 = vmatpush1.bf16.msra.mxu0 %v3786
        %5194 = vmatprep.subr.bf16.mxu0 %v3779
        %5195 = vmatpush1.bf16.msra.mxu0 %v3778
        %5196 = vmatprep.subr.bf16.mxu0 %v3771
        %5197 = vmatpush1.bf16.msra.mxu0 %v3770
        %5198 = vmatprep.subr.bf16.mxu0 %v3763
        %5199 = vmatpush1.bf16.msra.mxu0 %v3762
        %5200 = vmatprep.subr.bf16.mxu0 %v3755
        %5201 = vmatpush1.bf16.msra.mxu0 %v3754
        %5202 = vmatprep.subr.bf16.mxu0 %v3747
        %5203 = vmatpush1.bf16.msra.mxu0 %v3746
        %5204 = vmatprep.subr.bf16.mxu0 %v3867
        %5205 = vmatpush2.bf16.msra.mxu0 %v3866
        %5206 = vmatprep.subr.bf16.mxu0 %v3859
        %5207 = vmatpush2.bf16.msra.mxu0 %v3858
        %5208 = vmatprep.subr.bf16.mxu0 %v3851
        %5209 = vmatpush2.bf16.msra.mxu0 %v3850
        %5210 = vmatprep.subr.bf16.mxu0 %v3843
        %5211 = vmatpush2.bf16.msra.mxu0 %v3842
        %5212 = vmatprep.subr.bf16.mxu0 %v3835
        %5213 = vmatpush2.bf16.msra.mxu0 %v3834
        %5214 = vmatprep.subr.bf16.mxu0 %v3827
        %5215 = vmatpush2.bf16.msra.mxu0 %v3826
        %5216 = vmatprep.subr.bf16.mxu0 %v3819
        %5217 = vmatpush2.bf16.msra.mxu0 %v3818
        %5218 = vmatprep.subr.bf16.mxu0 %v3811
        %5219 = vmatpush2.bf16.msra.mxu0 %v3810
        %5220 = vmatprep.mubr.bf16.mxu0 %v2495
        %5221 = vmatmul.mubr.bf16.gmra.mxu0 %v2494
        %v5222 = vpop.f32.mrf.mxu0
        %v5223 = vadd.f32 %v2329, %v5222
        %v5224 = vpop.f32.mrf.mxu0
        %v5225 = vadd.f32 %v2333, %v5224
        %v5226 = vpop.f32.mrf.mxu0
        %v5227 = vadd.f32 %v2329, %v5226
        %v5228 = vpop.f32.mrf.mxu0
        %v5229 = vadd.f32 %v2333, %v5228
        %5230 = vmatprep.mubr.bf16.mxu0 %v2501
        %5231 = vmatmul.mubr.bf16.gmra.mxu0 %v2500
        %v5232 = vpop.f32.mrf.mxu0
        %v5233 = vadd.f32 %v2329, %v5232
        %v5234 = vpop.f32.mrf.mxu0
        %v5235 = vadd.f32 %v2333, %v5234
        %v5236 = vpop.f32.mrf.mxu0
        %v5237 = vadd.f32 %v2329, %v5236
        %v5238 = vpop.f32.mrf.mxu0
        %v5239 = vadd.f32 %v2333, %v5238
        %5240 = vmatprep.mubr.bf16.mxu0 %v2507
        %5241 = vmatmul.mubr.bf16.gmra.mxu0 %v2506
        %v5242 = vpop.f32.mrf.mxu0
        %v5243 = vadd.f32 %v2329, %v5242
        %v5244 = vpop.f32.mrf.mxu0
        %v5245 = vadd.f32 %v2333, %v5244
        %v5246 = vpop.f32.mrf.mxu0
        %v5247 = vadd.f32 %v2329, %v5246
        %v5248 = vpop.f32.mrf.mxu0
        %v5249 = vadd.f32 %v2333, %v5248
        %5250 = vmatprep.mubr.bf16.mxu0 %v2513
        %5251 = vmatmul.mubr.bf16.gmra.mxu0 %v2512
        %v5252 = vpop.f32.mrf.mxu0
        %v5253 = vadd.f32 %v2329, %v5252
        %v5254 = vpop.f32.mrf.mxu0
        %v5255 = vadd.f32 %v2333, %v5254
        %v5256 = vpop.f32.mrf.mxu0
        %v5257 = vadd.f32 %v2329, %v5256
        %v5258 = vpop.f32.mrf.mxu0
        %v5259 = vadd.f32 %v2333, %v5258
        %5260 = vmatprep.mubr.bf16.mxu0 %v2519
        %5261 = vmatmul.mubr.bf16.gmra.mxu0 %v2518
        %v5262 = vpop.f32.mrf.mxu0
        %v5263 = vadd.f32 %v2329, %v5262
        %v5264 = vpop.f32.mrf.mxu0
        %v5265 = vadd.f32 %v2333, %v5264
        %v5266 = vpop.f32.mrf.mxu0
        %v5267 = vadd.f32 %v2329, %v5266
        %v5268 = vpop.f32.mrf.mxu0
        %v5269 = vadd.f32 %v2333, %v5268
        %5270 = vmatprep.mubr.bf16.mxu0 %v2525
        %5271 = vmatmul.mubr.bf16.gmra.mxu0 %v2524
        %v5272 = vpop.f32.mrf.mxu0
        %v5273 = vadd.f32 %v2329, %v5272
        %v5274 = vpop.f32.mrf.mxu0
        %v5275 = vadd.f32 %v2333, %v5274
        %v5276 = vpop.f32.mrf.mxu0
        %v5277 = vadd.f32 %v2329, %v5276
        %v5278 = vpop.f32.mrf.mxu0
        %v5279 = vadd.f32 %v2333, %v5278
        %5280 = vmatprep.mubr.bf16.mxu0 %v2531
        %5281 = vmatmul.mubr.bf16.gmra.mxu0 %v2530
        %v5282 = vpop.f32.mrf.mxu0
        %v5283 = vadd.f32 %v2329, %v5282
        %v5284 = vpop.f32.mrf.mxu0
        %v5285 = vadd.f32 %v2333, %v5284
        %v5286 = vpop.f32.mrf.mxu0
        %v5287 = vadd.f32 %v2329, %v5286
        %v5288 = vpop.f32.mrf.mxu0
        %v5289 = vadd.f32 %v2333, %v5288
        %5290 = vmatprep.mubr.bf16.mxu0 %v2537
        %5291 = vmatmul.mubr.bf16.gmra.mxu0 %v2536
        %v5292 = vpop.f32.mrf.mxu0
        %v5293 = vadd.f32 %v2329, %v5292
        %v5294 = vpop.f32.mrf.mxu0
        %v5295 = vadd.f32 %v2333, %v5294
        %v5296 = vpop.f32.mrf.mxu0
        %v5297 = vadd.f32 %v2329, %v5296
        %v5298 = vpop.f32.mrf.mxu0
        %v5299 = vadd.f32 %v2333, %v5298
        %5300 = vdwg.mxu0
        %5301 = vmatprep.subr.bf16.mxu0 %v3931
        %5302 = vmatpush1.bf16.msra.mxu0 %v3930
        %5303 = vmatprep.subr.bf16.mxu0 %v3923
        %5304 = vmatpush1.bf16.msra.mxu0 %v3922
        %5305 = vmatprep.subr.bf16.mxu0 %v3915
        %5306 = vmatpush1.bf16.msra.mxu0 %v3914
        %5307 = vmatprep.subr.bf16.mxu0 %v3907
        %5308 = vmatpush1.bf16.msra.mxu0 %v3906
        %5309 = vmatprep.subr.bf16.mxu0 %v3899
        %5310 = vmatpush1.bf16.msra.mxu0 %v3898
        %5311 = vmatprep.subr.bf16.mxu0 %v3891
        %5312 = vmatpush1.bf16.msra.mxu0 %v3890
        %5313 = vmatprep.subr.bf16.mxu0 %v3883
        %5314 = vmatpush1.bf16.msra.mxu0 %v3882
        %5315 = vmatprep.subr.bf16.mxu0 %v3875
        %5316 = vmatpush1.bf16.msra.mxu0 %v3874
        %5317 = vmatprep.subr.bf16.mxu0 %v3995
        %5318 = vmatpush2.bf16.msra.mxu0 %v3994
        %5319 = vmatprep.subr.bf16.mxu0 %v3987
        %5320 = vmatpush2.bf16.msra.mxu0 %v3986
        %5321 = vmatprep.subr.bf16.mxu0 %v3979
        %5322 = vmatpush2.bf16.msra.mxu0 %v3978
        %5323 = vmatprep.subr.bf16.mxu0 %v3971
        %5324 = vmatpush2.bf16.msra.mxu0 %v3970
        %5325 = vmatprep.subr.bf16.mxu0 %v3963
        %5326 = vmatpush2.bf16.msra.mxu0 %v3962
        %5327 = vmatprep.subr.bf16.mxu0 %v3955
        %5328 = vmatpush2.bf16.msra.mxu0 %v3954
        %5329 = vmatprep.subr.bf16.mxu0 %v3947
        %5330 = vmatpush2.bf16.msra.mxu0 %v3946
        %5331 = vmatprep.subr.bf16.mxu0 %v3939
        %5332 = vmatpush2.bf16.msra.mxu0 %v3938
        %5333 = vmatprep.mubr.bf16.mxu0 %v2497
        %5334 = vmatmul.mubr.bf16.gmra.mxu0 %v2496
        %v5335 = vpop.f32.mrf.mxu0
        %v5336 = vadd.f32 %v5223, %v5335
        %v5337 = vpop.f32.mrf.mxu0
        %v5338 = vadd.f32 %v5225, %v5337
        %v5339 = vpop.f32.mrf.mxu0
        %v5340 = vadd.f32 %v5227, %v5339
        %v5341 = vpop.f32.mrf.mxu0
        %v5342 = vadd.f32 %v5229, %v5341
        %5343 = vmatprep.mubr.bf16.mxu0 %v2503
        %5344 = vmatmul.mubr.bf16.gmra.mxu0 %v2502
        %v5345 = vpop.f32.mrf.mxu0
        %v5346 = vadd.f32 %v5233, %v5345
        %v5347 = vpop.f32.mrf.mxu0
        %v5348 = vadd.f32 %v5235, %v5347
        %v5349 = vpop.f32.mrf.mxu0
        %v5350 = vadd.f32 %v5237, %v5349
        %v5351 = vpop.f32.mrf.mxu0
        %v5352 = vadd.f32 %v5239, %v5351
        %5353 = vmatprep.mubr.bf16.mxu0 %v2509
        %5354 = vmatmul.mubr.bf16.gmra.mxu0 %v2508
        %v5355 = vpop.f32.mrf.mxu0
        %v5356 = vadd.f32 %v5243, %v5355
        %v5357 = vpop.f32.mrf.mxu0
        %v5358 = vadd.f32 %v5245, %v5357
        %v5359 = vpop.f32.mrf.mxu0
        %v5360 = vadd.f32 %v5247, %v5359
        %v5361 = vpop.f32.mrf.mxu0
        %v5362 = vadd.f32 %v5249, %v5361
        %5363 = vmatprep.mubr.bf16.mxu0 %v2515
        %5364 = vmatmul.mubr.bf16.gmra.mxu0 %v2514
        %v5365 = vpop.f32.mrf.mxu0
        %v5366 = vadd.f32 %v5253, %v5365
        %v5367 = vpop.f32.mrf.mxu0
        %v5368 = vadd.f32 %v5255, %v5367
        %v5369 = vpop.f32.mrf.mxu0
        %v5370 = vadd.f32 %v5257, %v5369
        %v5371 = vpop.f32.mrf.mxu0
        %v5372 = vadd.f32 %v5259, %v5371
        %5373 = vmatprep.mubr.bf16.mxu0 %v2521
        %5374 = vmatmul.mubr.bf16.gmra.mxu0 %v2520
        %v5375 = vpop.f32.mrf.mxu0
        %v5376 = vadd.f32 %v5263, %v5375
        %v5377 = vpop.f32.mrf.mxu0
        %v5378 = vadd.f32 %v5265, %v5377
        %v5379 = vpop.f32.mrf.mxu0
        %v5380 = vadd.f32 %v5267, %v5379
        %v5381 = vpop.f32.mrf.mxu0
        %v5382 = vadd.f32 %v5269, %v5381
        %5383 = vmatprep.mubr.bf16.mxu0 %v2527
        %5384 = vmatmul.mubr.bf16.gmra.mxu0 %v2526
        %v5385 = vpop.f32.mrf.mxu0
        %v5386 = vadd.f32 %v5273, %v5385
        %v5387 = vpop.f32.mrf.mxu0
        %v5388 = vadd.f32 %v5275, %v5387
        %v5389 = vpop.f32.mrf.mxu0
        %v5390 = vadd.f32 %v5277, %v5389
        %v5391 = vpop.f32.mrf.mxu0
        %v5392 = vadd.f32 %v5279, %v5391
        %5393 = vmatprep.mubr.bf16.mxu0 %v2533
        %5394 = vmatmul.mubr.bf16.gmra.mxu0 %v2532
        %v5395 = vpop.f32.mrf.mxu0
        %v5396 = vadd.f32 %v5283, %v5395
        %v5397 = vpop.f32.mrf.mxu0
        %v5398 = vadd.f32 %v5285, %v5397
        %v5399 = vpop.f32.mrf.mxu0
        %v5400 = vadd.f32 %v5287, %v5399
        %v5401 = vpop.f32.mrf.mxu0
        %v5402 = vadd.f32 %v5289, %v5401
        %5403 = vmatprep.mubr.bf16.mxu0 %v2539
        %5404 = vmatmul.mubr.bf16.gmra.mxu0 %v2538
        %v5405 = vpop.f32.mrf.mxu0
        %v5406 = vadd.f32 %v5293, %v5405
        %v5407 = vpop.f32.mrf.mxu0
        %v5408 = vadd.f32 %v5295, %v5407
        %v5409 = vpop.f32.mrf.mxu0
        %v5410 = vadd.f32 %v5297, %v5409
        %v5411 = vpop.f32.mrf.mxu0
        %v5412 = vadd.f32 %v5299, %v5411
        %5413 = vdwg.mxu0
        %5414 = vmatprep.subr.bf16.mxu0 %v4059
        %5415 = vmatpush1.bf16.msra.mxu0 %v4058
        %5416 = vmatprep.subr.bf16.mxu0 %v4051
        %5417 = vmatpush1.bf16.msra.mxu0 %v4050
        %5418 = vmatprep.subr.bf16.mxu0 %v4043
        %5419 = vmatpush1.bf16.msra.mxu0 %v4042
        %5420 = vmatprep.subr.bf16.mxu0 %v4035
        %5421 = vmatpush1.bf16.msra.mxu0 %v4034
        %5422 = vmatprep.subr.bf16.mxu0 %v4027
        %5423 = vmatpush1.bf16.msra.mxu0 %v4026
        %5424 = vmatprep.subr.bf16.mxu0 %v4019
        %5425 = vmatpush1.bf16.msra.mxu0 %v4018
        %5426 = vmatprep.subr.bf16.mxu0 %v4011
        %5427 = vmatpush1.bf16.msra.mxu0 %v4010
        %5428 = vmatprep.subr.bf16.mxu0 %v4003
        %5429 = vmatpush1.bf16.msra.mxu0 %v4002
        %5430 = vmatprep.subr.bf16.mxu0 %v4123
        %5431 = vmatpush2.bf16.msra.mxu0 %v4122
        %5432 = vmatprep.subr.bf16.mxu0 %v4115
        %5433 = vmatpush2.bf16.msra.mxu0 %v4114
        %5434 = vmatprep.subr.bf16.mxu0 %v4107
        %5435 = vmatpush2.bf16.msra.mxu0 %v4106
        %5436 = vmatprep.subr.bf16.mxu0 %v4099
        %5437 = vmatpush2.bf16.msra.mxu0 %v4098
        %5438 = vmatprep.subr.bf16.mxu0 %v4091
        %5439 = vmatpush2.bf16.msra.mxu0 %v4090
        %5440 = vmatprep.subr.bf16.mxu0 %v4083
        %5441 = vmatpush2.bf16.msra.mxu0 %v4082
        %5442 = vmatprep.subr.bf16.mxu0 %v4075
        %5443 = vmatpush2.bf16.msra.mxu0 %v4074
        %5444 = vmatprep.subr.bf16.mxu0 %v4067
        %5445 = vmatpush2.bf16.msra.mxu0 %v4066
        %5446 = vmatprep.mubr.bf16.mxu0 %v2499
        %5447 = vmatmul.mubr.bf16.gmra.mxu0 %v2498
        %v5448 = vpop.f32.mrf.mxu0
        %v5449 = vadd.f32 %v5336, %v5448
        %v5450 = vpop.f32.mrf.mxu0
        %v5451 = vadd.f32 %v5338, %v5450
        %v5452 = vpop.f32.mrf.mxu0
        %v5453 = vadd.f32 %v5340, %v5452
        %v5454 = vpop.f32.mrf.mxu0
        %v5455 = vadd.f32 %v5342, %v5454
        %5456 = vmatprep.mubr.bf16.mxu0 %v2505
        %5457 = vmatmul.mubr.bf16.gmra.mxu0 %v2504
        %v5458 = vpop.f32.mrf.mxu0
        %v5459 = vadd.f32 %v5346, %v5458
        %v5460 = vpop.f32.mrf.mxu0
        %v5461 = vadd.f32 %v5348, %v5460
        %v5462 = vpop.f32.mrf.mxu0
        %v5463 = vadd.f32 %v5350, %v5462
        %v5464 = vpop.f32.mrf.mxu0
        %v5465 = vadd.f32 %v5352, %v5464
        %5466 = vmatprep.mubr.bf16.mxu0 %v2511
        %5467 = vmatmul.mubr.bf16.gmra.mxu0 %v2510
        %v5468 = vpop.f32.mrf.mxu0
        %v5469 = vadd.f32 %v5356, %v5468
        %v5470 = vpop.f32.mrf.mxu0
        %v5471 = vadd.f32 %v5358, %v5470
        %v5472 = vpop.f32.mrf.mxu0
        %v5473 = vadd.f32 %v5360, %v5472
        %v5474 = vpop.f32.mrf.mxu0
        %v5475 = vadd.f32 %v5362, %v5474
        %5476 = vmatprep.mubr.bf16.mxu0 %v2517
        %5477 = vmatmul.mubr.bf16.gmra.mxu0 %v2516
        %v5478 = vpop.f32.mrf.mxu0
        %v5479 = vadd.f32 %v5366, %v5478
        %v5480 = vpop.f32.mrf.mxu0
        %v5481 = vadd.f32 %v5368, %v5480
        %v5482 = vpop.f32.mrf.mxu0
        %v5483 = vadd.f32 %v5370, %v5482
        %v5484 = vpop.f32.mrf.mxu0
        %v5485 = vadd.f32 %v5372, %v5484
        %5486 = vmatprep.mubr.bf16.mxu0 %v2523
        %5487 = vmatmul.mubr.bf16.gmra.mxu0 %v2522
        %v5488 = vpop.f32.mrf.mxu0
        %v5489 = vadd.f32 %v5376, %v5488
        %v5490 = vpop.f32.mrf.mxu0
        %v5491 = vadd.f32 %v5378, %v5490
        %v5492 = vpop.f32.mrf.mxu0
        %v5493 = vadd.f32 %v5380, %v5492
        %v5494 = vpop.f32.mrf.mxu0
        %v5495 = vadd.f32 %v5382, %v5494
        %5496 = vmatprep.mubr.bf16.mxu0 %v2529
        %5497 = vmatmul.mubr.bf16.gmra.mxu0 %v2528
        %v5498 = vpop.f32.mrf.mxu0
        %v5499 = vadd.f32 %v5386, %v5498
        %v5500 = vpop.f32.mrf.mxu0
        %v5501 = vadd.f32 %v5388, %v5500
        %v5502 = vpop.f32.mrf.mxu0
        %v5503 = vadd.f32 %v5390, %v5502
        %v5504 = vpop.f32.mrf.mxu0
        %v5505 = vadd.f32 %v5392, %v5504
        %5506 = vmatprep.mubr.bf16.mxu0 %v2535
        %5507 = vmatmul.mubr.bf16.gmra.mxu0 %v2534
        %v5508 = vpop.f32.mrf.mxu0
        %v5509 = vadd.f32 %v5396, %v5508
        %v5510 = vpop.f32.mrf.mxu0
        %v5511 = vadd.f32 %v5398, %v5510
        %v5512 = vpop.f32.mrf.mxu0
        %v5513 = vadd.f32 %v5400, %v5512
        %v5514 = vpop.f32.mrf.mxu0
        %v5515 = vadd.f32 %v5402, %v5514
        %5516 = vmatprep.mubr.bf16.mxu0 %v2541
        %5517 = vmatmul.mubr.bf16.gmra.mxu0 %v2540
        %v5518 = vpop.f32.mrf.mxu0
        %v5519 = vadd.f32 %v5406, %v5518
        %v5520 = vpop.f32.mrf.mxu0
        %v5521 = vadd.f32 %v5408, %v5520
        %v5522 = vpop.f32.mrf.mxu0
        %v5523 = vadd.f32 %v5410, %v5522
        %v5524 = vpop.f32.mrf.mxu0
        %v5525 = vadd.f32 %v5412, %v5524
        %5526 = vdwg.mxu0
        %5527 = vmatprep.subr.bf16.mxu0 %v3805
        %5528 = vmatpush1.bf16.msra.mxu0 %v3804
        %5529 = vmatprep.subr.bf16.mxu0 %v3797
        %5530 = vmatpush1.bf16.msra.mxu0 %v3796
        %5531 = vmatprep.subr.bf16.mxu0 %v3789
        %5532 = vmatpush1.bf16.msra.mxu0 %v3788
        %5533 = vmatprep.subr.bf16.mxu0 %v3781
        %5534 = vmatpush1.bf16.msra.mxu0 %v3780
        %5535 = vmatprep.subr.bf16.mxu0 %v3773
        %5536 = vmatpush1.bf16.msra.mxu0 %v3772
        %5537 = vmatprep.subr.bf16.mxu0 %v3765
        %5538 = vmatpush1.bf16.msra.mxu0 %v3764
        %5539 = vmatprep.subr.bf16.mxu0 %v3757
        %5540 = vmatpush1.bf16.msra.mxu0 %v3756
        %5541 = vmatprep.subr.bf16.mxu0 %v3749
        %5542 = vmatpush1.bf16.msra.mxu0 %v3748
        %5543 = vmatprep.subr.bf16.mxu0 %v3869
        %5544 = vmatpush2.bf16.msra.mxu0 %v3868
        %5545 = vmatprep.subr.bf16.mxu0 %v3861
        %5546 = vmatpush2.bf16.msra.mxu0 %v3860
        %5547 = vmatprep.subr.bf16.mxu0 %v3853
        %5548 = vmatpush2.bf16.msra.mxu0 %v3852
        %5549 = vmatprep.subr.bf16.mxu0 %v3845
        %5550 = vmatpush2.bf16.msra.mxu0 %v3844
        %5551 = vmatprep.subr.bf16.mxu0 %v3837
        %5552 = vmatpush2.bf16.msra.mxu0 %v3836
        %5553 = vmatprep.subr.bf16.mxu0 %v3829
        %5554 = vmatpush2.bf16.msra.mxu0 %v3828
        %5555 = vmatprep.subr.bf16.mxu0 %v3821
        %5556 = vmatpush2.bf16.msra.mxu0 %v3820
        %5557 = vmatprep.subr.bf16.mxu0 %v3813
        %5558 = vmatpush2.bf16.msra.mxu0 %v3812
        %5559 = vmatprep.mubr.bf16.mxu0 %v2495
        %5560 = vmatmul.mubr.bf16.gmra.mxu0 %v2494
        %v5561 = vpop.f32.mrf.mxu0
        %v5562 = vadd.f32 %v2337, %v5561
        %v5563 = vpop.f32.mrf.mxu0
        %v5564 = vadd.f32 %v2341, %v5563
        %v5565 = vpop.f32.mrf.mxu0
        %v5566 = vadd.f32 %v2337, %v5565
        %v5567 = vpop.f32.mrf.mxu0
        %v5568 = vadd.f32 %v2341, %v5567
        %5569 = vmatprep.mubr.bf16.mxu0 %v2501
        %5570 = vmatmul.mubr.bf16.gmra.mxu0 %v2500
        %v5571 = vpop.f32.mrf.mxu0
        %v5572 = vadd.f32 %v2337, %v5571
        %v5573 = vpop.f32.mrf.mxu0
        %v5574 = vadd.f32 %v2341, %v5573
        %v5575 = vpop.f32.mrf.mxu0
        %v5576 = vadd.f32 %v2337, %v5575
        %v5577 = vpop.f32.mrf.mxu0
        %v5578 = vadd.f32 %v2341, %v5577
        %5579 = vmatprep.mubr.bf16.mxu0 %v2507
        %5580 = vmatmul.mubr.bf16.gmra.mxu0 %v2506
        %v5581 = vpop.f32.mrf.mxu0
        %v5582 = vadd.f32 %v2337, %v5581
        %v5583 = vpop.f32.mrf.mxu0
        %v5584 = vadd.f32 %v2341, %v5583
        %v5585 = vpop.f32.mrf.mxu0
        %v5586 = vadd.f32 %v2337, %v5585
        %v5587 = vpop.f32.mrf.mxu0
        %v5588 = vadd.f32 %v2341, %v5587
        %5589 = vmatprep.mubr.bf16.mxu0 %v2513
        %5590 = vmatmul.mubr.bf16.gmra.mxu0 %v2512
        %v5591 = vpop.f32.mrf.mxu0
        %v5592 = vadd.f32 %v2337, %v5591
        %v5593 = vpop.f32.mrf.mxu0
        %v5594 = vadd.f32 %v2341, %v5593
        %v5595 = vpop.f32.mrf.mxu0
        %v5596 = vadd.f32 %v2337, %v5595
        %v5597 = vpop.f32.mrf.mxu0
        %v5598 = vadd.f32 %v2341, %v5597
        %5599 = vmatprep.mubr.bf16.mxu0 %v2519
        %5600 = vmatmul.mubr.bf16.gmra.mxu0 %v2518
        %v5601 = vpop.f32.mrf.mxu0
        %v5602 = vadd.f32 %v2337, %v5601
        %v5603 = vpop.f32.mrf.mxu0
        %v5604 = vadd.f32 %v2341, %v5603
        %v5605 = vpop.f32.mrf.mxu0
        %v5606 = vadd.f32 %v2337, %v5605
        %v5607 = vpop.f32.mrf.mxu0
        %v5608 = vadd.f32 %v2341, %v5607
        %5609 = vmatprep.mubr.bf16.mxu0 %v2525
        %5610 = vmatmul.mubr.bf16.gmra.mxu0 %v2524
        %v5611 = vpop.f32.mrf.mxu0
        %v5612 = vadd.f32 %v2337, %v5611
        %v5613 = vpop.f32.mrf.mxu0
        %v5614 = vadd.f32 %v2341, %v5613
        %v5615 = vpop.f32.mrf.mxu0
        %v5616 = vadd.f32 %v2337, %v5615
        %v5617 = vpop.f32.mrf.mxu0
        %v5618 = vadd.f32 %v2341, %v5617
        %5619 = vmatprep.mubr.bf16.mxu0 %v2531
        %5620 = vmatmul.mubr.bf16.gmra.mxu0 %v2530
        %v5621 = vpop.f32.mrf.mxu0
        %v5622 = vadd.f32 %v2337, %v5621
        %v5623 = vpop.f32.mrf.mxu0
        %v5624 = vadd.f32 %v2341, %v5623
        %v5625 = vpop.f32.mrf.mxu0
        %v5626 = vadd.f32 %v2337, %v5625
        %v5627 = vpop.f32.mrf.mxu0
        %v5628 = vadd.f32 %v2341, %v5627
        %5629 = vmatprep.mubr.bf16.mxu0 %v2537
        %5630 = vmatmul.mubr.bf16.gmra.mxu0 %v2536
        %v5631 = vpop.f32.mrf.mxu0
        %v5632 = vadd.f32 %v2337, %v5631
        %v5633 = vpop.f32.mrf.mxu0
        %v5634 = vadd.f32 %v2341, %v5633
        %v5635 = vpop.f32.mrf.mxu0
        %v5636 = vadd.f32 %v2337, %v5635
        %v5637 = vpop.f32.mrf.mxu0
        %v5638 = vadd.f32 %v2341, %v5637
        %5639 = vdwg.mxu0
        %5640 = vmatprep.subr.bf16.mxu0 %v3933
        %5641 = vmatpush1.bf16.msra.mxu0 %v3932
        %5642 = vmatprep.subr.bf16.mxu0 %v3925
        %5643 = vmatpush1.bf16.msra.mxu0 %v3924
        %5644 = vmatprep.subr.bf16.mxu0 %v3917
        %5645 = vmatpush1.bf16.msra.mxu0 %v3916
        %5646 = vmatprep.subr.bf16.mxu0 %v3909
        %5647 = vmatpush1.bf16.msra.mxu0 %v3908
        %5648 = vmatprep.subr.bf16.mxu0 %v3901
        %5649 = vmatpush1.bf16.msra.mxu0 %v3900
        %5650 = vmatprep.subr.bf16.mxu0 %v3893
        %5651 = vmatpush1.bf16.msra.mxu0 %v3892
        %5652 = vmatprep.subr.bf16.mxu0 %v3885
        %5653 = vmatpush1.bf16.msra.mxu0 %v3884
        %5654 = vmatprep.subr.bf16.mxu0 %v3877
        %5655 = vmatpush1.bf16.msra.mxu0 %v3876
        %5656 = vmatprep.subr.bf16.mxu0 %v3997
        %5657 = vmatpush2.bf16.msra.mxu0 %v3996
        %5658 = vmatprep.subr.bf16.mxu0 %v3989
        %5659 = vmatpush2.bf16.msra.mxu0 %v3988
        %5660 = vmatprep.subr.bf16.mxu0 %v3981
        %5661 = vmatpush2.bf16.msra.mxu0 %v3980
        %5662 = vmatprep.subr.bf16.mxu0 %v3973
        %5663 = vmatpush2.bf16.msra.mxu0 %v3972
        %5664 = vmatprep.subr.bf16.mxu0 %v3965
        %5665 = vmatpush2.bf16.msra.mxu0 %v3964
        %5666 = vmatprep.subr.bf16.mxu0 %v3957
        %5667 = vmatpush2.bf16.msra.mxu0 %v3956
        %5668 = vmatprep.subr.bf16.mxu0 %v3949
        %5669 = vmatpush2.bf16.msra.mxu0 %v3948
        %5670 = vmatprep.subr.bf16.mxu0 %v3941
        %5671 = vmatpush2.bf16.msra.mxu0 %v3940
        %5672 = vmatprep.mubr.bf16.mxu0 %v2497
        %5673 = vmatmul.mubr.bf16.gmra.mxu0 %v2496
        %v5674 = vpop.f32.mrf.mxu0
        %v5675 = vadd.f32 %v5562, %v5674
        %v5676 = vpop.f32.mrf.mxu0
        %v5677 = vadd.f32 %v5564, %v5676
        %v5678 = vpop.f32.mrf.mxu0
        %v5679 = vadd.f32 %v5566, %v5678
        %v5680 = vpop.f32.mrf.mxu0
        %v5681 = vadd.f32 %v5568, %v5680
        %5682 = vmatprep.mubr.bf16.mxu0 %v2503
        %5683 = vmatmul.mubr.bf16.gmra.mxu0 %v2502
        %v5684 = vpop.f32.mrf.mxu0
        %v5685 = vadd.f32 %v5572, %v5684
        %v5686 = vpop.f32.mrf.mxu0
        %v5687 = vadd.f32 %v5574, %v5686
        %v5688 = vpop.f32.mrf.mxu0
        %v5689 = vadd.f32 %v5576, %v5688
        %v5690 = vpop.f32.mrf.mxu0
        %v5691 = vadd.f32 %v5578, %v5690
        %5692 = vmatprep.mubr.bf16.mxu0 %v2509
        %5693 = vmatmul.mubr.bf16.gmra.mxu0 %v2508
        %v5694 = vpop.f32.mrf.mxu0
        %v5695 = vadd.f32 %v5582, %v5694
        %v5696 = vpop.f32.mrf.mxu0
        %v5697 = vadd.f32 %v5584, %v5696
        %v5698 = vpop.f32.mrf.mxu0
        %v5699 = vadd.f32 %v5586, %v5698
        %v5700 = vpop.f32.mrf.mxu0
        %v5701 = vadd.f32 %v5588, %v5700
        %5702 = vmatprep.mubr.bf16.mxu0 %v2515
        %5703 = vmatmul.mubr.bf16.gmra.mxu0 %v2514
        %v5704 = vpop.f32.mrf.mxu0
        %v5705 = vadd.f32 %v5592, %v5704
        %v5706 = vpop.f32.mrf.mxu0
        %v5707 = vadd.f32 %v5594, %v5706
        %v5708 = vpop.f32.mrf.mxu0
        %v5709 = vadd.f32 %v5596, %v5708
        %v5710 = vpop.f32.mrf.mxu0
        %v5711 = vadd.f32 %v5598, %v5710
        %5712 = vmatprep.mubr.bf16.mxu0 %v2521
        %5713 = vmatmul.mubr.bf16.gmra.mxu0 %v2520
        %v5714 = vpop.f32.mrf.mxu0
        %v5715 = vadd.f32 %v5602, %v5714
        %v5716 = vpop.f32.mrf.mxu0
        %v5717 = vadd.f32 %v5604, %v5716
        %v5718 = vpop.f32.mrf.mxu0
        %v5719 = vadd.f32 %v5606, %v5718
        %v5720 = vpop.f32.mrf.mxu0
        %v5721 = vadd.f32 %v5608, %v5720
        %5722 = vmatprep.mubr.bf16.mxu0 %v2527
        %5723 = vmatmul.mubr.bf16.gmra.mxu0 %v2526
        %v5724 = vpop.f32.mrf.mxu0
        %v5725 = vadd.f32 %v5612, %v5724
        %v5726 = vpop.f32.mrf.mxu0
        %v5727 = vadd.f32 %v5614, %v5726
        %v5728 = vpop.f32.mrf.mxu0
        %v5729 = vadd.f32 %v5616, %v5728
        %v5730 = vpop.f32.mrf.mxu0
        %v5731 = vadd.f32 %v5618, %v5730
        %5732 = vmatprep.mubr.bf16.mxu0 %v2533
        %5733 = vmatmul.mubr.bf16.gmra.mxu0 %v2532
        %v5734 = vpop.f32.mrf.mxu0
        %v5735 = vadd.f32 %v5622, %v5734
        %v5736 = vpop.f32.mrf.mxu0
        %v5737 = vadd.f32 %v5624, %v5736
        %v5738 = vpop.f32.mrf.mxu0
        %v5739 = vadd.f32 %v5626, %v5738
        %v5740 = vpop.f32.mrf.mxu0
        %v5741 = vadd.f32 %v5628, %v5740
        %5742 = vmatprep.mubr.bf16.mxu0 %v2539
        %5743 = vmatmul.mubr.bf16.gmra.mxu0 %v2538
        %v5744 = vpop.f32.mrf.mxu0
        %v5745 = vadd.f32 %v5632, %v5744
        %v5746 = vpop.f32.mrf.mxu0
        %v5747 = vadd.f32 %v5634, %v5746
        %v5748 = vpop.f32.mrf.mxu0
        %v5749 = vadd.f32 %v5636, %v5748
        %v5750 = vpop.f32.mrf.mxu0
        %v5751 = vadd.f32 %v5638, %v5750
        %5752 = vdwg.mxu0
        %5753 = vmatprep.subr.bf16.mxu0 %v4061
        %5754 = vmatpush1.bf16.msra.mxu0 %v4060
        %5755 = vmatprep.subr.bf16.mxu0 %v4053
        %5756 = vmatpush1.bf16.msra.mxu0 %v4052
        %5757 = vmatprep.subr.bf16.mxu0 %v4045
        %5758 = vmatpush1.bf16.msra.mxu0 %v4044
        %5759 = vmatprep.subr.bf16.mxu0 %v4037
        %5760 = vmatpush1.bf16.msra.mxu0 %v4036
        %5761 = vmatprep.subr.bf16.mxu0 %v4029
        %5762 = vmatpush1.bf16.msra.mxu0 %v4028
        %5763 = vmatprep.subr.bf16.mxu0 %v4021
        %5764 = vmatpush1.bf16.msra.mxu0 %v4020
        %5765 = vmatprep.subr.bf16.mxu0 %v4013
        %5766 = vmatpush1.bf16.msra.mxu0 %v4012
        %5767 = vmatprep.subr.bf16.mxu0 %v4005
        %5768 = vmatpush1.bf16.msra.mxu0 %v4004
        %5769 = vmatprep.subr.bf16.mxu0 %v4125
        %5770 = vmatpush2.bf16.msra.mxu0 %v4124
        %5771 = vmatprep.subr.bf16.mxu0 %v4117
        %5772 = vmatpush2.bf16.msra.mxu0 %v4116
        %5773 = vmatprep.subr.bf16.mxu0 %v4109
        %5774 = vmatpush2.bf16.msra.mxu0 %v4108
        %5775 = vmatprep.subr.bf16.mxu0 %v4101
        %5776 = vmatpush2.bf16.msra.mxu0 %v4100
        %5777 = vmatprep.subr.bf16.mxu0 %v4093
        %5778 = vmatpush2.bf16.msra.mxu0 %v4092
        %5779 = vmatprep.subr.bf16.mxu0 %v4085
        %5780 = vmatpush2.bf16.msra.mxu0 %v4084
        %5781 = vmatprep.subr.bf16.mxu0 %v4077
        %5782 = vmatpush2.bf16.msra.mxu0 %v4076
        %5783 = vmatprep.subr.bf16.mxu0 %v4069
        %5784 = vmatpush2.bf16.msra.mxu0 %v4068
        %5785 = vmatprep.mubr.bf16.mxu0 %v2499
        %5786 = vmatmul.mubr.bf16.gmra.mxu0 %v2498
        %v5787 = vpop.f32.mrf.mxu0
        %v5788 = vadd.f32 %v5675, %v5787
        %v5789 = vpop.f32.mrf.mxu0
        %v5790 = vadd.f32 %v5677, %v5789
        %v5791 = vpop.f32.mrf.mxu0
        %v5792 = vadd.f32 %v5679, %v5791
        %v5793 = vpop.f32.mrf.mxu0
        %v5794 = vadd.f32 %v5681, %v5793
        %5795 = vmatprep.mubr.bf16.mxu0 %v2505
        %5796 = vmatmul.mubr.bf16.gmra.mxu0 %v2504
        %v5797 = vpop.f32.mrf.mxu0
        %v5798 = vadd.f32 %v5685, %v5797
        %v5799 = vpop.f32.mrf.mxu0
        %v5800 = vadd.f32 %v5687, %v5799
        %v5801 = vpop.f32.mrf.mxu0
        %v5802 = vadd.f32 %v5689, %v5801
        %v5803 = vpop.f32.mrf.mxu0
        %v5804 = vadd.f32 %v5691, %v5803
        %5805 = vmatprep.mubr.bf16.mxu0 %v2511
        %5806 = vmatmul.mubr.bf16.gmra.mxu0 %v2510
        %v5807 = vpop.f32.mrf.mxu0
        %v5808 = vadd.f32 %v5695, %v5807
        %v5809 = vpop.f32.mrf.mxu0
        %v5810 = vadd.f32 %v5697, %v5809
        %v5811 = vpop.f32.mrf.mxu0
        %v5812 = vadd.f32 %v5699, %v5811
        %v5813 = vpop.f32.mrf.mxu0
        %v5814 = vadd.f32 %v5701, %v5813
        %5815 = vmatprep.mubr.bf16.mxu0 %v2517
        %5816 = vmatmul.mubr.bf16.gmra.mxu0 %v2516
        %v5817 = vpop.f32.mrf.mxu0
        %v5818 = vadd.f32 %v5705, %v5817
        %v5819 = vpop.f32.mrf.mxu0
        %v5820 = vadd.f32 %v5707, %v5819
        %v5821 = vpop.f32.mrf.mxu0
        %v5822 = vadd.f32 %v5709, %v5821
        %v5823 = vpop.f32.mrf.mxu0
        %v5824 = vadd.f32 %v5711, %v5823
        %5825 = vmatprep.mubr.bf16.mxu0 %v2523
        %5826 = vmatmul.mubr.bf16.gmra.mxu0 %v2522
        %v5827 = vpop.f32.mrf.mxu0
        %v5828 = vadd.f32 %v5715, %v5827
        %v5829 = vpop.f32.mrf.mxu0
        %v5830 = vadd.f32 %v5717, %v5829
        %v5831 = vpop.f32.mrf.mxu0
        %v5832 = vadd.f32 %v5719, %v5831
        %v5833 = vpop.f32.mrf.mxu0
        %v5834 = vadd.f32 %v5721, %v5833
        %5835 = vmatprep.mubr.bf16.mxu0 %v2529
        %5836 = vmatmul.mubr.bf16.gmra.mxu0 %v2528
        %v5837 = vpop.f32.mrf.mxu0
        %v5838 = vadd.f32 %v5725, %v5837
        %v5839 = vpop.f32.mrf.mxu0
        %v5840 = vadd.f32 %v5727, %v5839
        %v5841 = vpop.f32.mrf.mxu0
        %v5842 = vadd.f32 %v5729, %v5841
        %v5843 = vpop.f32.mrf.mxu0
        %v5844 = vadd.f32 %v5731, %v5843
        %5845 = vmatprep.mubr.bf16.mxu0 %v2535
        %5846 = vmatmul.mubr.bf16.gmra.mxu0 %v2534
        %v5847 = vpop.f32.mrf.mxu0
        %v5848 = vadd.f32 %v5735, %v5847
        %v5849 = vpop.f32.mrf.mxu0
        %v5850 = vadd.f32 %v5737, %v5849
        %v5851 = vpop.f32.mrf.mxu0
        %v5852 = vadd.f32 %v5739, %v5851
        %v5853 = vpop.f32.mrf.mxu0
        %v5854 = vadd.f32 %v5741, %v5853
        %5855 = vmatprep.mubr.bf16.mxu0 %v2541
        %5856 = vmatmul.mubr.bf16.gmra.mxu0 %v2540
        %v5857 = vpop.f32.mrf.mxu0
        %v5858 = vadd.f32 %v5745, %v5857
        %v5859 = vpop.f32.mrf.mxu0
        %v5860 = vadd.f32 %v5747, %v5859
        %v5861 = vpop.f32.mrf.mxu0
        %v5862 = vadd.f32 %v5749, %v5861
        %v5863 = vpop.f32.mrf.mxu0
        %v5864 = vadd.f32 %v5751, %v5863
        %5865 = vdwg.mxu0
        %v5866 = vmax.f32 %v5110, 0.0
        %v5867 = vmax.f32 %v5112, 0.0
        %v5868 = vmax.f32 %v5449, 0.0
        %v5869 = vmax.f32 %v5451, 0.0
        %v5870 = vmax.f32 %v5788, 0.0
        %v5871 = vmax.f32 %v5790, 0.0
        %v5872 = vmax.f32 %v5114, 0.0
        %v5873 = vmax.f32 %v5116, 0.0
        %v5874 = vmax.f32 %v5453, 0.0
        %v5875 = vmax.f32 %v5455, 0.0
        %v5876 = vmax.f32 %v5792, 0.0
        %v5877 = vmax.f32 %v5794, 0.0
        %v5878 = vmax.f32 %v5120, 0.0
        %v5879 = vmax.f32 %v5122, 0.0
        %v5880 = vmax.f32 %v5459, 0.0
        %v5881 = vmax.f32 %v5461, 0.0
        %v5882 = vmax.f32 %v5798, 0.0
        %v5883 = vmax.f32 %v5800, 0.0
        %v5884 = vmax.f32 %v5124, 0.0
        %v5885 = vmax.f32 %v5126, 0.0
        %v5886 = vmax.f32 %v5463, 0.0
        %v5887 = vmax.f32 %v5465, 0.0
        %v5888 = vmax.f32 %v5802, 0.0
        %v5889 = vmax.f32 %v5804, 0.0
        %v5890 = vmax.f32 %v5130, 0.0
        %v5891 = vmax.f32 %v5132, 0.0
        %v5892 = vmax.f32 %v5469, 0.0
        %v5893 = vmax.f32 %v5471, 0.0
        %v5894 = vmax.f32 %v5808, 0.0
        %v5895 = vmax.f32 %v5810, 0.0
        %v5896 = vmax.f32 %v5134, 0.0
        %v5897 = vmax.f32 %v5136, 0.0
        %v5898 = vmax.f32 %v5473, 0.0
        %v5899 = vmax.f32 %v5475, 0.0
        %v5900 = vmax.f32 %v5812, 0.0
        %v5901 = vmax.f32 %v5814, 0.0
        %v5902 = vmax.f32 %v5140, 0.0
        %v5903 = vmax.f32 %v5142, 0.0
        %v5904 = vmax.f32 %v5479, 0.0
        %v5905 = vmax.f32 %v5481, 0.0
        %v5906 = vmax.f32 %v5818, 0.0
        %v5907 = vmax.f32 %v5820, 0.0
        %v5908 = vmax.f32 %v5144, 0.0
        %v5909 = vmax.f32 %v5146, 0.0
        %v5910 = vmax.f32 %v5483, 0.0
        %v5911 = vmax.f32 %v5485, 0.0
        %v5912 = vmax.f32 %v5822, 0.0
        %v5913 = vmax.f32 %v5824, 0.0
        %v5914 = vmax.f32 %v5150, 0.0
        %v5915 = vmax.f32 %v5152, 0.0
        %v5916 = vmax.f32 %v5489, 0.0
        %v5917 = vmax.f32 %v5491, 0.0
        %v5918 = vmax.f32 %v5828, 0.0
        %v5919 = vmax.f32 %v5830, 0.0
        %v5920 = vmax.f32 %v5154, 0.0
        %v5921 = vmax.f32 %v5156, 0.0
        %v5922 = vmax.f32 %v5493, 0.0
        %v5923 = vmax.f32 %v5495, 0.0
        %v5924 = vmax.f32 %v5832, 0.0
        %v5925 = vmax.f32 %v5834, 0.0
        %v5926 = vmax.f32 %v5160, 0.0
        %v5927 = vmax.f32 %v5162, 0.0
        %v5928 = vmax.f32 %v5499, 0.0
        %v5929 = vmax.f32 %v5501, 0.0
        %v5930 = vmax.f32 %v5838, 0.0
        %v5931 = vmax.f32 %v5840, 0.0
        %v5932 = vmax.f32 %v5164, 0.0
        %v5933 = vmax.f32 %v5166, 0.0
        %v5934 = vmax.f32 %v5503, 0.0
        %v5935 = vmax.f32 %v5505, 0.0
        %v5936 = vmax.f32 %v5842, 0.0
        %v5937 = vmax.f32 %v5844, 0.0
        %v5938 = vmax.f32 %v5170, 0.0
        %v5939 = vmax.f32 %v5172, 0.0
        %v5940 = vmax.f32 %v5509, 0.0
        %v5941 = vmax.f32 %v5511, 0.0
        %v5942 = vmax.f32 %v5848, 0.0
        %v5943 = vmax.f32 %v5850, 0.0
        %v5944 = vmax.f32 %v5174, 0.0
        %v5945 = vmax.f32 %v5176, 0.0
        %v5946 = vmax.f32 %v5513, 0.0
        %v5947 = vmax.f32 %v5515, 0.0
        %v5948 = vmax.f32 %v5852, 0.0
        %v5949 = vmax.f32 %v5854, 0.0
        %v5950 = vmax.f32 %v5180, 0.0
        %v5951 = vmax.f32 %v5182, 0.0
        %v5952 = vmax.f32 %v5519, 0.0
        %v5953 = vmax.f32 %v5521, 0.0
        %v5954 = vmax.f32 %v5858, 0.0
        %v5955 = vmax.f32 %v5860, 0.0
        %v5956 = vmax.f32 %v5184, 0.0
        %v5957 = vmax.f32 %v5186, 0.0
        %v5958 = vmax.f32 %v5523, 0.0
        %v5959 = vmax.f32 %v5525, 0.0
        %v5960 = vmax.f32 %v5862, 0.0
        %v5961 = vmax.f32 %v5864, 0.0
        %v5962 = vpack.c.bf16 %v5872, %v5866
        %v5963 = vpack.c.bf16 %v5873, %v5867
        %v5964 = vpack.c.bf16 %v5874, %v5868
        %v5965 = vpack.c.bf16 %v5875, %v5869
        %v5966 = vpack.c.bf16 %v5876, %v5870
        %v5967 = vpack.c.bf16 %v5877, %v5871
        %v5968 = vpack.c.bf16 %v5884, %v5878
        %v5969 = vpack.c.bf16 %v5885, %v5879
        %v5970 = vpack.c.bf16 %v5886, %v5880
        %v5971 = vpack.c.bf16 %v5887, %v5881
        %v5972 = vpack.c.bf16 %v5888, %v5882
        %v5973 = vpack.c.bf16 %v5889, %v5883
        %v5974 = vpack.c.bf16 %v5896, %v5890
        %v5975 = vpack.c.bf16 %v5897, %v5891
        %v5976 = vpack.c.bf16 %v5898, %v5892
        %v5977 = vpack.c.bf16 %v5899, %v5893
        %v5978 = vpack.c.bf16 %v5900, %v5894
        %v5979 = vpack.c.bf16 %v5901, %v5895
        %v5980 = vpack.c.bf16 %v5908, %v5902
        %v5981 = vpack.c.bf16 %v5909, %v5903
        %v5982 = vpack.c.bf16 %v5910, %v5904
        %v5983 = vpack.c.bf16 %v5911, %v5905
        %v5984 = vpack.c.bf16 %v5912, %v5906
        %v5985 = vpack.c.bf16 %v5913, %v5907
        %v5986 = vpack.c.bf16 %v5920, %v5914
        %v5987 = vpack.c.bf16 %v5921, %v5915
        %v5988 = vpack.c.bf16 %v5922, %v5916
        %v5989 = vpack.c.bf16 %v5923, %v5917
        %v5990 = vpack.c.bf16 %v5924, %v5918
        %v5991 = vpack.c.bf16 %v5925, %v5919
        %v5992 = vpack.c.bf16 %v5932, %v5926
        %v5993 = vpack.c.bf16 %v5933, %v5927
        %v5994 = vpack.c.bf16 %v5934, %v5928
        %v5995 = vpack.c.bf16 %v5935, %v5929
        %v5996 = vpack.c.bf16 %v5936, %v5930
        %v5997 = vpack.c.bf16 %v5937, %v5931
        %v5998 = vpack.c.bf16 %v5944, %v5938
        %v5999 = vpack.c.bf16 %v5945, %v5939
        %v6000 = vpack.c.bf16 %v5946, %v5940
        %v6001 = vpack.c.bf16 %v5947, %v5941
        %v6002 = vpack.c.bf16 %v5948, %v5942
        %v6003 = vpack.c.bf16 %v5949, %v5943
        %v6004 = vpack.c.bf16 %v5956, %v5950
        %v6005 = vpack.c.bf16 %v5957, %v5951
        %v6006 = vpack.c.bf16 %v5958, %v5952
        %v6007 = vpack.c.bf16 %v5959, %v5953
        %v6008 = vpack.c.bf16 %v5960, %v5954
        %v6009 = vpack.c.bf16 %v5961, %v5955
        %v6010 = vld [vmem:[#allocation14] sm:$0xff]
        %v6011 = vld [vmem:[#allocation14 + $0x8] sm:$0xff]
        %v6012 = vld [vmem:[#allocation14 + $0x10] sm:$0xff]
        %v6013 = vld [vmem:[#allocation14 + $0x18] sm:$0xff]
        %v6014 = vld [vmem:[#allocation14 + $0x20] sm:$0xff]
        %v6015 = vld [vmem:[#allocation14 + $0x28] sm:$0xff]
        %v6016 = vld [vmem:[#allocation14 + $0x30] sm:$0xff]
        %v6017 = vld [vmem:[#allocation14 + $0x38] sm:$0xff]
        %v6018 = vld [vmem:[#allocation14 + $0x40] sm:$0xff]
        %v6019 = vld [vmem:[#allocation14 + $0x48] sm:$0xff]
        %v6020 = vld [vmem:[#allocation14 + $0x50] sm:$0xff]
        %v6021 = vld [vmem:[#allocation14 + $0x58] sm:$0xff]
        %v6022 = vld [vmem:[#allocation14 + $0x60] sm:$0xff]
        %v6023 = vld [vmem:[#allocation14 + $0x68] sm:$0xff]
        %v6024 = vld [vmem:[#allocation14 + $0x70] sm:$0xff]
        %v6025 = vld [vmem:[#allocation14 + $0x78] sm:$0xff]
        %v6026 = vld [vmem:[#allocation14 + $0x80] sm:$0xff]
        %v6027 = vld [vmem:[#allocation14 + $0x88] sm:$0xff]
        %v6028 = vld [vmem:[#allocation14 + $0x90] sm:$0xff]
        %v6029 = vld [vmem:[#allocation14 + $0x98] sm:$0xff]
        %v6030 = vld [vmem:[#allocation14 + $0xa0] sm:$0xff]
        %v6031 = vld [vmem:[#allocation14 + $0xa8] sm:$0xff]
        %v6032 = vld [vmem:[#allocation14 + $0xb0] sm:$0xff]
        %v6033 = vld [vmem:[#allocation14 + $0xb8] sm:$0xff]
        %v6034 = vld [vmem:[#allocation14 + $0xc0] sm:$0xff]
        %v6035 = vld [vmem:[#allocation14 + $0xc8] sm:$0xff]
        %v6036 = vld [vmem:[#allocation14 + $0xd0] sm:$0xff]
        %v6037 = vld [vmem:[#allocation14 + $0xd8] sm:$0xff]
        %v6038 = vld [vmem:[#allocation14 + $0xe0] sm:$0xff]
        %v6039 = vld [vmem:[#allocation14 + $0xe8] sm:$0xff]
        %v6040 = vld [vmem:[#allocation14 + $0xf0] sm:$0xff]
        %v6041 = vld [vmem:[#allocation14 + $0xf8] sm:$0xff]
        %v6042 = vld [vmem:[#allocation14 + $0x100] sm:$0xff]
        %v6043 = vld [vmem:[#allocation14 + $0x108] sm:$0xff]
        %v6044 = vld [vmem:[#allocation14 + $0x110] sm:$0xff]
        %v6045 = vld [vmem:[#allocation14 + $0x118] sm:$0xff]
        %v6046 = vld [vmem:[#allocation14 + $0x120] sm:$0xff]
        %v6047 = vld [vmem:[#allocation14 + $0x128] sm:$0xff]
        %v6048 = vld [vmem:[#allocation14 + $0x130] sm:$0xff]
        %v6049 = vld [vmem:[#allocation14 + $0x138] sm:$0xff]
        %v6050 = vld [vmem:[#allocation14 + $0x140] sm:$0xff]
        %v6051 = vld [vmem:[#allocation14 + $0x148] sm:$0xff]
        %v6052 = vld [vmem:[#allocation14 + $0x150] sm:$0xff]
        %v6053 = vld [vmem:[#allocation14 + $0x158] sm:$0xff]
        %v6054 = vld [vmem:[#allocation14 + $0x160] sm:$0xff]
        %v6055 = vld [vmem:[#allocation14 + $0x168] sm:$0xff]
        %v6056 = vld [vmem:[#allocation14 + $0x170] sm:$0xff]
        %v6057 = vld [vmem:[#allocation14 + $0x178] sm:$0xff]
        %v6058 = vld [vmem:[#allocation14 + $0x180] sm:$0xff]
        %v6059 = vld [vmem:[#allocation14 + $0x188] sm:$0xff]
        %v6060 = vld [vmem:[#allocation14 + $0x190] sm:$0xff]
        %v6061 = vld [vmem:[#allocation14 + $0x198] sm:$0xff]
        %v6062 = vld [vmem:[#allocation14 + $0x1a0] sm:$0xff]
        %v6063 = vld [vmem:[#allocation14 + $0x1a8] sm:$0xff]
        %v6064 = vld [vmem:[#allocation14 + $0x1b0] sm:$0xff]
        %v6065 = vld [vmem:[#allocation14 + $0x1b8] sm:$0xff]
        %v6066 = vld [vmem:[#allocation14 + $0x1c0] sm:$0xff]
        %v6067 = vld [vmem:[#allocation14 + $0x1c8] sm:$0xff]
        %v6068 = vld [vmem:[#allocation14 + $0x1d0] sm:$0xff]
        %v6069 = vld [vmem:[#allocation14 + $0x1d8] sm:$0xff]
        %v6070 = vld [vmem:[#allocation14 + $0x1e0] sm:$0xff]
        %v6071 = vld [vmem:[#allocation14 + $0x1e8] sm:$0xff]
        %v6072 = vld [vmem:[#allocation14 + $0x1f0] sm:$0xff]
        %v6073 = vld [vmem:[#allocation14 + $0x1f8] sm:$0xff]
        %v6074 = vld [vmem:[#allocation14 + $0x200] sm:$0xff]
        %v6075 = vld [vmem:[#allocation14 + $0x208] sm:$0xff]
        %v6076 = vld [vmem:[#allocation14 + $0x210] sm:$0xff]
        %v6077 = vld [vmem:[#allocation14 + $0x218] sm:$0xff]
        %v6078 = vld [vmem:[#allocation14 + $0x220] sm:$0xff]
        %v6079 = vld [vmem:[#allocation14 + $0x228] sm:$0xff]
        %v6080 = vld [vmem:[#allocation14 + $0x230] sm:$0xff]
        %v6081 = vld [vmem:[#allocation14 + $0x238] sm:$0xff]
        %v6082 = vld [vmem:[#allocation14 + $0x240] sm:$0xff]
        %v6083 = vld [vmem:[#allocation14 + $0x248] sm:$0xff]
        %v6084 = vld [vmem:[#allocation14 + $0x250] sm:$0xff]
        %v6085 = vld [vmem:[#allocation14 + $0x258] sm:$0xff]
        %v6086 = vld [vmem:[#allocation14 + $0x260] sm:$0xff]
        %v6087 = vld [vmem:[#allocation14 + $0x268] sm:$0xff]
        %v6088 = vld [vmem:[#allocation14 + $0x270] sm:$0xff]
        %v6089 = vld [vmem:[#allocation14 + $0x278] sm:$0xff]
        %v6090 = vld [vmem:[#allocation14 + $0x280] sm:$0xff]
        %v6091 = vld [vmem:[#allocation14 + $0x288] sm:$0xff]
        %v6092 = vld [vmem:[#allocation14 + $0x290] sm:$0xff]
        %v6093 = vld [vmem:[#allocation14 + $0x298] sm:$0xff]
        %v6094 = vld [vmem:[#allocation14 + $0x2a0] sm:$0xff]
        %v6095 = vld [vmem:[#allocation14 + $0x2a8] sm:$0xff]
        %v6096 = vld [vmem:[#allocation14 + $0x2b0] sm:$0xff]
        %v6097 = vld [vmem:[#allocation14 + $0x2b8] sm:$0xff]
        %v6098 = vld [vmem:[#allocation14 + $0x2c0] sm:$0xff]
        %v6099 = vld [vmem:[#allocation14 + $0x2c8] sm:$0xff]
        %v6100 = vld [vmem:[#allocation14 + $0x2d0] sm:$0xff]
        %v6101 = vld [vmem:[#allocation14 + $0x2d8] sm:$0xff]
        %v6102 = vld [vmem:[#allocation14 + $0x2e0] sm:$0xff]
        %v6103 = vld [vmem:[#allocation14 + $0x2e8] sm:$0xff]
        %v6104 = vld [vmem:[#allocation14 + $0x2f0] sm:$0xff]
        %v6105 = vld [vmem:[#allocation14 + $0x2f8] sm:$0xff]
        %v6202 = vunpack.c.l.b16 %v6010
        %v6203 = vunpack.c.h.b16 %v6010
        %v6204 = vunpack.c.l.b16 %v6011
        %v6205 = vunpack.c.h.b16 %v6011
        %v6206 = vunpack.c.l.b16 %v6012
        %v6207 = vunpack.c.h.b16 %v6012
        %v6208 = vunpack.c.l.b16 %v6013
        %v6209 = vunpack.c.h.b16 %v6013
        %v6210 = vunpack.c.l.b16 %v6014
        %v6211 = vunpack.c.h.b16 %v6014
        %v6212 = vunpack.c.l.b16 %v6015
        %v6213 = vunpack.c.h.b16 %v6015
        %v6214 = vunpack.c.l.b16 %v6016
        %v6215 = vunpack.c.h.b16 %v6016
        %v6216 = vunpack.c.l.b16 %v6017
        %v6217 = vunpack.c.h.b16 %v6017
        %v6218 = vunpack.c.l.b16 %v6018
        %v6219 = vunpack.c.h.b16 %v6018
        %v6220 = vunpack.c.l.b16 %v6019
        %v6221 = vunpack.c.h.b16 %v6019
        %v6222 = vunpack.c.l.b16 %v6020
        %v6223 = vunpack.c.h.b16 %v6020
        %v6224 = vunpack.c.l.b16 %v6021
        %v6225 = vunpack.c.h.b16 %v6021
        %v6226 = vunpack.c.l.b16 %v6022
        %v6227 = vunpack.c.h.b16 %v6022
        %v6228 = vunpack.c.l.b16 %v6023
        %v6229 = vunpack.c.h.b16 %v6023
        %v6230 = vunpack.c.l.b16 %v6024
        %v6231 = vunpack.c.h.b16 %v6024
        %v6232 = vunpack.c.l.b16 %v6025
        %v6233 = vunpack.c.h.b16 %v6025
        %v6234 = vunpack.c.l.b16 %v6026
        %v6235 = vunpack.c.h.b16 %v6026
        %v6236 = vunpack.c.l.b16 %v6027
        %v6237 = vunpack.c.h.b16 %v6027
        %v6238 = vunpack.c.l.b16 %v6028
        %v6239 = vunpack.c.h.b16 %v6028
        %v6240 = vunpack.c.l.b16 %v6029
        %v6241 = vunpack.c.h.b16 %v6029
        %v6242 = vunpack.c.l.b16 %v6030
        %v6243 = vunpack.c.h.b16 %v6030
        %v6244 = vunpack.c.l.b16 %v6031
        %v6245 = vunpack.c.h.b16 %v6031
        %v6246 = vunpack.c.l.b16 %v6032
        %v6247 = vunpack.c.h.b16 %v6032
        %v6248 = vunpack.c.l.b16 %v6033
        %v6249 = vunpack.c.h.b16 %v6033
        %v6250 = vunpack.c.l.b16 %v6034
        %v6251 = vunpack.c.h.b16 %v6034
        %v6252 = vunpack.c.l.b16 %v6035
        %v6253 = vunpack.c.h.b16 %v6035
        %v6254 = vunpack.c.l.b16 %v6036
        %v6255 = vunpack.c.h.b16 %v6036
        %v6256 = vunpack.c.l.b16 %v6037
        %v6257 = vunpack.c.h.b16 %v6037
        %v6258 = vunpack.c.l.b16 %v6038
        %v6259 = vunpack.c.h.b16 %v6038
        %v6260 = vunpack.c.l.b16 %v6039
        %v6261 = vunpack.c.h.b16 %v6039
        %v6262 = vunpack.c.l.b16 %v6040
        %v6263 = vunpack.c.h.b16 %v6040
        %v6264 = vunpack.c.l.b16 %v6041
        %v6265 = vunpack.c.h.b16 %v6041
        %v6266 = vunpack.c.l.b16 %v6042
        %v6267 = vunpack.c.h.b16 %v6042
        %v6268 = vunpack.c.l.b16 %v6043
        %v6269 = vunpack.c.h.b16 %v6043
        %v6270 = vunpack.c.l.b16 %v6044
        %v6271 = vunpack.c.h.b16 %v6044
        %v6272 = vunpack.c.l.b16 %v6045
        %v6273 = vunpack.c.h.b16 %v6045
        %v6274 = vunpack.c.l.b16 %v6046
        %v6275 = vunpack.c.h.b16 %v6046
        %v6276 = vunpack.c.l.b16 %v6047
        %v6277 = vunpack.c.h.b16 %v6047
        %v6278 = vunpack.c.l.b16 %v6048
        %v6279 = vunpack.c.h.b16 %v6048
        %v6280 = vunpack.c.l.b16 %v6049
        %v6281 = vunpack.c.h.b16 %v6049
        %v6282 = vunpack.c.l.b16 %v6050
        %v6283 = vunpack.c.h.b16 %v6050
        %v6284 = vunpack.c.l.b16 %v6051
        %v6285 = vunpack.c.h.b16 %v6051
        %v6286 = vunpack.c.l.b16 %v6052
        %v6287 = vunpack.c.h.b16 %v6052
        %v6288 = vunpack.c.l.b16 %v6053
        %v6289 = vunpack.c.h.b16 %v6053
        %v6290 = vunpack.c.l.b16 %v6054
        %v6291 = vunpack.c.h.b16 %v6054
        %v6292 = vunpack.c.l.b16 %v6055
        %v6293 = vunpack.c.h.b16 %v6055
        %v6294 = vunpack.c.l.b16 %v6056
        %v6295 = vunpack.c.h.b16 %v6056
        %v6296 = vunpack.c.l.b16 %v6057
        %v6297 = vunpack.c.h.b16 %v6057
        %v6298 = vunpack.c.l.b16 %v6058
        %v6299 = vunpack.c.h.b16 %v6058
        %v6300 = vunpack.c.l.b16 %v6059
        %v6301 = vunpack.c.h.b16 %v6059
        %v6302 = vunpack.c.l.b16 %v6060
        %v6303 = vunpack.c.h.b16 %v6060
        %v6304 = vunpack.c.l.b16 %v6061
        %v6305 = vunpack.c.h.b16 %v6061
        %v6306 = vunpack.c.l.b16 %v6062
        %v6307 = vunpack.c.h.b16 %v6062
        %v6308 = vunpack.c.l.b16 %v6063
        %v6309 = vunpack.c.h.b16 %v6063
        %v6310 = vunpack.c.l.b16 %v6064
        %v6311 = vunpack.c.h.b16 %v6064
        %v6312 = vunpack.c.l.b16 %v6065
        %v6313 = vunpack.c.h.b16 %v6065
        %v6314 = vunpack.c.l.b16 %v6066
        %v6315 = vunpack.c.h.b16 %v6066
        %v6316 = vunpack.c.l.b16 %v6067
        %v6317 = vunpack.c.h.b16 %v6067
        %v6318 = vunpack.c.l.b16 %v6068
        %v6319 = vunpack.c.h.b16 %v6068
        %v6320 = vunpack.c.l.b16 %v6069
        %v6321 = vunpack.c.h.b16 %v6069
        %v6322 = vunpack.c.l.b16 %v6070
        %v6323 = vunpack.c.h.b16 %v6070
        %v6324 = vunpack.c.l.b16 %v6071
        %v6325 = vunpack.c.h.b16 %v6071
        %v6326 = vunpack.c.l.b16 %v6072
        %v6327 = vunpack.c.h.b16 %v6072
        %v6328 = vunpack.c.l.b16 %v6073
        %v6329 = vunpack.c.h.b16 %v6073
        %v6330 = vunpack.c.l.b16 %v6074
        %v6331 = vunpack.c.h.b16 %v6074
        %v6332 = vunpack.c.l.b16 %v6075
        %v6333 = vunpack.c.h.b16 %v6075
        %v6334 = vunpack.c.l.b16 %v6076
        %v6335 = vunpack.c.h.b16 %v6076
        %v6336 = vunpack.c.l.b16 %v6077
        %v6337 = vunpack.c.h.b16 %v6077
        %v6338 = vunpack.c.l.b16 %v6078
        %v6339 = vunpack.c.h.b16 %v6078
        %v6340 = vunpack.c.l.b16 %v6079
        %v6341 = vunpack.c.h.b16 %v6079
        %v6342 = vunpack.c.l.b16 %v6080
        %v6343 = vunpack.c.h.b16 %v6080
        %v6344 = vunpack.c.l.b16 %v6081
        %v6345 = vunpack.c.h.b16 %v6081
        %v6346 = vunpack.c.l.b16 %v6082
        %v6347 = vunpack.c.h.b16 %v6082
        %v6348 = vunpack.c.l.b16 %v6083
        %v6349 = vunpack.c.h.b16 %v6083
        %v6350 = vunpack.c.l.b16 %v6084
        %v6351 = vunpack.c.h.b16 %v6084
        %v6352 = vunpack.c.l.b16 %v6085
        %v6353 = vunpack.c.h.b16 %v6085
        %v6354 = vunpack.c.l.b16 %v6086
        %v6355 = vunpack.c.h.b16 %v6086
        %v6356 = vunpack.c.l.b16 %v6087
        %v6357 = vunpack.c.h.b16 %v6087
        %v6358 = vunpack.c.l.b16 %v6088
        %v6359 = vunpack.c.h.b16 %v6088
        %v6360 = vunpack.c.l.b16 %v6089
        %v6361 = vunpack.c.h.b16 %v6089
        %v6362 = vunpack.c.l.b16 %v6090
        %v6363 = vunpack.c.h.b16 %v6090
        %v6364 = vunpack.c.l.b16 %v6091
        %v6365 = vunpack.c.h.b16 %v6091
        %v6366 = vunpack.c.l.b16 %v6092
        %v6367 = vunpack.c.h.b16 %v6092
        %v6368 = vunpack.c.l.b16 %v6093
        %v6369 = vunpack.c.h.b16 %v6093
        %v6370 = vunpack.c.l.b16 %v6094
        %v6371 = vunpack.c.h.b16 %v6094
        %v6372 = vunpack.c.l.b16 %v6095
        %v6373 = vunpack.c.h.b16 %v6095
        %v6374 = vunpack.c.l.b16 %v6096
        %v6375 = vunpack.c.h.b16 %v6096
        %v6376 = vunpack.c.l.b16 %v6097
        %v6377 = vunpack.c.h.b16 %v6097
        %v6378 = vunpack.c.l.b16 %v6098
        %v6379 = vunpack.c.h.b16 %v6098
        %v6380 = vunpack.c.l.b16 %v6099
        %v6381 = vunpack.c.h.b16 %v6099
        %v6382 = vunpack.c.l.b16 %v6100
        %v6383 = vunpack.c.h.b16 %v6100
        %v6384 = vunpack.c.l.b16 %v6101
        %v6385 = vunpack.c.h.b16 %v6101
        %v6386 = vunpack.c.l.b16 %v6102
        %v6387 = vunpack.c.h.b16 %v6102
        %v6388 = vunpack.c.l.b16 %v6103
        %v6389 = vunpack.c.h.b16 %v6103
        %v6390 = vunpack.c.l.b16 %v6104
        %v6391 = vunpack.c.h.b16 %v6104
        %v6392 = vunpack.c.l.b16 %v6105
        %v6393 = vunpack.c.h.b16 %v6105
        %v6394 = vpack.c.b16 %v6204, %v6202
        %v6395 = vpack.c.b16 %v6205, %v6203
        %v6396 = vpack.c.b16 %v6208, %v6206
        %v6397 = vpack.c.b16 %v6209, %v6207
        %v6398 = vpack.c.b16 %v6212, %v6210
        %v6399 = vpack.c.b16 %v6213, %v6211
        %v6400 = vpack.c.b16 %v6216, %v6214
        %v6401 = vpack.c.b16 %v6217, %v6215
        %v6402 = vpack.c.b16 %v6220, %v6218
        %v6403 = vpack.c.b16 %v6221, %v6219
        %v6404 = vpack.c.b16 %v6224, %v6222
        %v6405 = vpack.c.b16 %v6225, %v6223
        %v6406 = vpack.c.b16 %v6228, %v6226
        %v6407 = vpack.c.b16 %v6229, %v6227
        %v6408 = vpack.c.b16 %v6232, %v6230
        %v6409 = vpack.c.b16 %v6233, %v6231
        %v6410 = vpack.c.b16 %v6236, %v6234
        %v6411 = vpack.c.b16 %v6237, %v6235
        %v6412 = vpack.c.b16 %v6240, %v6238
        %v6413 = vpack.c.b16 %v6241, %v6239
        %v6414 = vpack.c.b16 %v6244, %v6242
        %v6415 = vpack.c.b16 %v6245, %v6243
        %v6416 = vpack.c.b16 %v6248, %v6246
        %v6417 = vpack.c.b16 %v6249, %v6247
        %v6418 = vpack.c.b16 %v6252, %v6250
        %v6419 = vpack.c.b16 %v6253, %v6251
        %v6420 = vpack.c.b16 %v6256, %v6254
        %v6421 = vpack.c.b16 %v6257, %v6255
        %v6422 = vpack.c.b16 %v6260, %v6258
        %v6423 = vpack.c.b16 %v6261, %v6259
        %v6424 = vpack.c.b16 %v6264, %v6262
        %v6425 = vpack.c.b16 %v6265, %v6263
        %v6426 = vpack.c.b16 %v6268, %v6266
        %v6427 = vpack.c.b16 %v6269, %v6267
        %v6428 = vpack.c.b16 %v6272, %v6270
        %v6429 = vpack.c.b16 %v6273, %v6271
        %v6430 = vpack.c.b16 %v6276, %v6274
        %v6431 = vpack.c.b16 %v6277, %v6275
        %v6432 = vpack.c.b16 %v6280, %v6278
        %v6433 = vpack.c.b16 %v6281, %v6279
        %v6434 = vpack.c.b16 %v6284, %v6282
        %v6435 = vpack.c.b16 %v6285, %v6283
        %v6436 = vpack.c.b16 %v6288, %v6286
        %v6437 = vpack.c.b16 %v6289, %v6287
        %v6438 = vpack.c.b16 %v6292, %v6290
        %v6439 = vpack.c.b16 %v6293, %v6291
        %v6440 = vpack.c.b16 %v6296, %v6294
        %v6441 = vpack.c.b16 %v6297, %v6295
        %v6442 = vpack.c.b16 %v6300, %v6298
        %v6443 = vpack.c.b16 %v6301, %v6299
        %v6444 = vpack.c.b16 %v6304, %v6302
        %v6445 = vpack.c.b16 %v6305, %v6303
        %v6446 = vpack.c.b16 %v6308, %v6306
        %v6447 = vpack.c.b16 %v6309, %v6307
        %v6448 = vpack.c.b16 %v6312, %v6310
        %v6449 = vpack.c.b16 %v6313, %v6311
        %v6450 = vpack.c.b16 %v6316, %v6314
        %v6451 = vpack.c.b16 %v6317, %v6315
        %v6452 = vpack.c.b16 %v6320, %v6318
        %v6453 = vpack.c.b16 %v6321, %v6319
        %v6454 = vpack.c.b16 %v6324, %v6322
        %v6455 = vpack.c.b16 %v6325, %v6323
        %v6456 = vpack.c.b16 %v6328, %v6326
        %v6457 = vpack.c.b16 %v6329, %v6327
        %v6458 = vpack.c.b16 %v6332, %v6330
        %v6459 = vpack.c.b16 %v6333, %v6331
        %v6460 = vpack.c.b16 %v6336, %v6334
        %v6461 = vpack.c.b16 %v6337, %v6335
        %v6462 = vpack.c.b16 %v6340, %v6338
        %v6463 = vpack.c.b16 %v6341, %v6339
        %v6464 = vpack.c.b16 %v6344, %v6342
        %v6465 = vpack.c.b16 %v6345, %v6343
        %v6466 = vpack.c.b16 %v6348, %v6346
        %v6467 = vpack.c.b16 %v6349, %v6347
        %v6468 = vpack.c.b16 %v6352, %v6350
        %v6469 = vpack.c.b16 %v6353, %v6351
        %v6470 = vpack.c.b16 %v6356, %v6354
        %v6471 = vpack.c.b16 %v6357, %v6355
        %v6472 = vpack.c.b16 %v6360, %v6358
        %v6473 = vpack.c.b16 %v6361, %v6359
        %v6474 = vpack.c.b16 %v6364, %v6362
        %v6475 = vpack.c.b16 %v6365, %v6363
        %v6476 = vpack.c.b16 %v6368, %v6366
        %v6477 = vpack.c.b16 %v6369, %v6367
        %v6478 = vpack.c.b16 %v6372, %v6370
        %v6479 = vpack.c.b16 %v6373, %v6371
        %v6480 = vpack.c.b16 %v6376, %v6374
        %v6481 = vpack.c.b16 %v6377, %v6375
        %v6482 = vpack.c.b16 %v6380, %v6378
        %v6483 = vpack.c.b16 %v6381, %v6379
        %v6484 = vpack.c.b16 %v6384, %v6382
        %v6485 = vpack.c.b16 %v6385, %v6383
        %v6486 = vpack.c.b16 %v6388, %v6386
        %v6487 = vpack.c.b16 %v6389, %v6387
        %v6488 = vpack.c.b16 %v6392, %v6390
        %v6489 = vpack.c.b16 %v6393, %v6391
        %6586 = vmatprep.subr.bf16.mxu0 %v6409
        %6587 = vmatpush1.bf16.msra.mxu0 %v6408
        %6588 = vmatprep.subr.bf16.mxu0 %v6407
        %6589 = vmatpush1.bf16.msra.mxu0 %v6406
        %6590 = vmatprep.subr.bf16.mxu0 %v6405
        %6591 = vmatpush1.bf16.msra.mxu0 %v6404
        %6592 = vmatprep.subr.bf16.mxu0 %v6403
        %6593 = vmatpush1.bf16.msra.mxu0 %v6402
        %6594 = vmatprep.subr.bf16.mxu0 %v6401
        %6595 = vmatpush1.bf16.msra.mxu0 %v6400
        %6596 = vmatprep.subr.bf16.mxu0 %v6399
        %6597 = vmatpush1.bf16.msra.mxu0 %v6398
        %6598 = vmatprep.subr.bf16.mxu0 %v6397
        %6599 = vmatpush1.bf16.msra.mxu0 %v6396
        %6600 = vmatprep.subr.bf16.mxu0 %v6395
        %6601 = vmatpush1.bf16.msra.mxu0 %v6394
        %6602 = vmatprep.subr.bf16.mxu0 %v6425
        %6603 = vmatpush2.bf16.msra.mxu0 %v6424
        %6604 = vmatprep.subr.bf16.mxu0 %v6423
        %6605 = vmatpush2.bf16.msra.mxu0 %v6422
        %6606 = vmatprep.subr.bf16.mxu0 %v6421
        %6607 = vmatpush2.bf16.msra.mxu0 %v6420
        %6608 = vmatprep.subr.bf16.mxu0 %v6419
        %6609 = vmatpush2.bf16.msra.mxu0 %v6418
        %6610 = vmatprep.subr.bf16.mxu0 %v6417
        %6611 = vmatpush2.bf16.msra.mxu0 %v6416
        %6612 = vmatprep.subr.bf16.mxu0 %v6415
        %6613 = vmatpush2.bf16.msra.mxu0 %v6414
        %6614 = vmatprep.subr.bf16.mxu0 %v6413
        %6615 = vmatpush2.bf16.msra.mxu0 %v6412
        %6616 = vmatprep.subr.bf16.mxu0 %v6411
        %6617 = vmatpush2.bf16.msra.mxu0 %v6410
        %6618 = vmatprep.mubr.bf16.mxu0 %v5963
        %6619 = vmatmul.mubr.bf16.gmra.mxu0 %v5962
        %v6620 = vpop.f32.mrf.mxu0
        %v6621 = vadd.f32 0.0, %v6620
        %v6622 = vpop.f32.mrf.mxu0
        %v6623 = vadd.f32 0.0, %v6622
        %v6624 = vpop.f32.mrf.mxu0
        %v6625 = vadd.f32 0.0, %v6624
        %v6626 = vpop.f32.mrf.mxu0
        %v6627 = vadd.f32 0.0, %v6626
        %6628 = vmatprep.mubr.bf16.mxu0 %v5969
        %6629 = vmatmul.mubr.bf16.gmra.mxu0 %v5968
        %v6630 = vpop.f32.mrf.mxu0
        %v6631 = vadd.f32 0.0, %v6630
        %v6632 = vpop.f32.mrf.mxu0
        %v6633 = vadd.f32 0.0, %v6632
        %v6634 = vpop.f32.mrf.mxu0
        %v6635 = vadd.f32 0.0, %v6634
        %v6636 = vpop.f32.mrf.mxu0
        %v6637 = vadd.f32 0.0, %v6636
        %6638 = vmatprep.mubr.bf16.mxu0 %v5975
        %6639 = vmatmul.mubr.bf16.gmra.mxu0 %v5974
        %v6640 = vpop.f32.mrf.mxu0
        %v6641 = vadd.f32 0.0, %v6640
        %v6642 = vpop.f32.mrf.mxu0
        %v6643 = vadd.f32 0.0, %v6642
        %v6644 = vpop.f32.mrf.mxu0
        %v6645 = vadd.f32 0.0, %v6644
        %v6646 = vpop.f32.mrf.mxu0
        %v6647 = vadd.f32 0.0, %v6646
        %6648 = vmatprep.mubr.bf16.mxu0 %v5981
        %6649 = vmatmul.mubr.bf16.gmra.mxu0 %v5980
        %v6650 = vpop.f32.mrf.mxu0
        %v6651 = vadd.f32 0.0, %v6650
        %v6652 = vpop.f32.mrf.mxu0
        %v6653 = vadd.f32 0.0, %v6652
        %v6654 = vpop.f32.mrf.mxu0
        %v6655 = vadd.f32 0.0, %v6654
        %v6656 = vpop.f32.mrf.mxu0
        %v6657 = vadd.f32 0.0, %v6656
        %6658 = vmatprep.mubr.bf16.mxu0 %v5987
        %6659 = vmatmul.mubr.bf16.gmra.mxu0 %v5986
        %v6660 = vpop.f32.mrf.mxu0
        %v6661 = vadd.f32 0.0, %v6660
        %v6662 = vpop.f32.mrf.mxu0
        %v6663 = vadd.f32 0.0, %v6662
        %v6664 = vpop.f32.mrf.mxu0
        %v6665 = vadd.f32 0.0, %v6664
        %v6666 = vpop.f32.mrf.mxu0
        %v6667 = vadd.f32 0.0, %v6666
        %6668 = vmatprep.mubr.bf16.mxu0 %v5993
        %6669 = vmatmul.mubr.bf16.gmra.mxu0 %v5992
        %v6670 = vpop.f32.mrf.mxu0
        %v6671 = vadd.f32 0.0, %v6670
        %v6672 = vpop.f32.mrf.mxu0
        %v6673 = vadd.f32 0.0, %v6672
        %v6674 = vpop.f32.mrf.mxu0
        %v6675 = vadd.f32 0.0, %v6674
        %v6676 = vpop.f32.mrf.mxu0
        %v6677 = vadd.f32 0.0, %v6676
        %6678 = vmatprep.mubr.bf16.mxu0 %v5999
        %6679 = vmatmul.mubr.bf16.gmra.mxu0 %v5998
        %v6680 = vpop.f32.mrf.mxu0
        %v6681 = vadd.f32 0.0, %v6680
        %v6682 = vpop.f32.mrf.mxu0
        %v6683 = vadd.f32 0.0, %v6682
        %v6684 = vpop.f32.mrf.mxu0
        %v6685 = vadd.f32 0.0, %v6684
        %v6686 = vpop.f32.mrf.mxu0
        %v6687 = vadd.f32 0.0, %v6686
        %6688 = vmatprep.mubr.bf16.mxu0 %v6005
        %6689 = vmatmul.mubr.bf16.gmra.mxu0 %v6004
        %v6690 = vpop.f32.mrf.mxu0
        %v6691 = vadd.f32 0.0, %v6690
        %v6692 = vpop.f32.mrf.mxu0
        %v6693 = vadd.f32 0.0, %v6692
        %v6694 = vpop.f32.mrf.mxu0
        %v6695 = vadd.f32 0.0, %v6694
        %v6696 = vpop.f32.mrf.mxu0
        %v6697 = vadd.f32 0.0, %v6696
        %6698 = vdwg.mxu0
        %6699 = vmatprep.subr.bf16.mxu0 %v6441
        %6700 = vmatpush1.bf16.msra.mxu0 %v6440
        %6701 = vmatprep.subr.bf16.mxu0 %v6439
        %6702 = vmatpush1.bf16.msra.mxu0 %v6438
        %6703 = vmatprep.subr.bf16.mxu0 %v6437
        %6704 = vmatpush1.bf16.msra.mxu0 %v6436
        %6705 = vmatprep.subr.bf16.mxu0 %v6435
        %6706 = vmatpush1.bf16.msra.mxu0 %v6434
        %6707 = vmatprep.subr.bf16.mxu0 %v6433
        %6708 = vmatpush1.bf16.msra.mxu0 %v6432
        %6709 = vmatprep.subr.bf16.mxu0 %v6431
        %6710 = vmatpush1.bf16.msra.mxu0 %v6430
        %6711 = vmatprep.subr.bf16.mxu0 %v6429
        %6712 = vmatpush1.bf16.msra.mxu0 %v6428
        %6713 = vmatprep.subr.bf16.mxu0 %v6427
        %6714 = vmatpush1.bf16.msra.mxu0 %v6426
        %6715 = vmatprep.subr.bf16.mxu0 %v6457
        %6716 = vmatpush2.bf16.msra.mxu0 %v6456
        %6717 = vmatprep.subr.bf16.mxu0 %v6455
        %6718 = vmatpush2.bf16.msra.mxu0 %v6454
        %6719 = vmatprep.subr.bf16.mxu0 %v6453
        %6720 = vmatpush2.bf16.msra.mxu0 %v6452
        %6721 = vmatprep.subr.bf16.mxu0 %v6451
        %6722 = vmatpush2.bf16.msra.mxu0 %v6450
        %6723 = vmatprep.subr.bf16.mxu0 %v6449
        %6724 = vmatpush2.bf16.msra.mxu0 %v6448
        %6725 = vmatprep.subr.bf16.mxu0 %v6447
        %6726 = vmatpush2.bf16.msra.mxu0 %v6446
        %6727 = vmatprep.subr.bf16.mxu0 %v6445
        %6728 = vmatpush2.bf16.msra.mxu0 %v6444
        %6729 = vmatprep.subr.bf16.mxu0 %v6443
        %6730 = vmatpush2.bf16.msra.mxu0 %v6442
        %6731 = vmatprep.mubr.bf16.mxu0 %v5965
        %6732 = vmatmul.mubr.bf16.gmra.mxu0 %v5964
        %v6733 = vpop.f32.mrf.mxu0
        %v6734 = vadd.f32 %v6621, %v6733
        %v6735 = vpop.f32.mrf.mxu0
        %v6736 = vadd.f32 %v6623, %v6735
        %v6737 = vpop.f32.mrf.mxu0
        %v6738 = vadd.f32 %v6625, %v6737
        %v6739 = vpop.f32.mrf.mxu0
        %v6740 = vadd.f32 %v6627, %v6739
        %6741 = vmatprep.mubr.bf16.mxu0 %v5971
        %6742 = vmatmul.mubr.bf16.gmra.mxu0 %v5970
        %v6743 = vpop.f32.mrf.mxu0
        %v6744 = vadd.f32 %v6631, %v6743
        %v6745 = vpop.f32.mrf.mxu0
        %v6746 = vadd.f32 %v6633, %v6745
        %v6747 = vpop.f32.mrf.mxu0
        %v6748 = vadd.f32 %v6635, %v6747
        %v6749 = vpop.f32.mrf.mxu0
        %v6750 = vadd.f32 %v6637, %v6749
        %6751 = vmatprep.mubr.bf16.mxu0 %v5977
        %6752 = vmatmul.mubr.bf16.gmra.mxu0 %v5976
        %v6753 = vpop.f32.mrf.mxu0
        %v6754 = vadd.f32 %v6641, %v6753
        %v6755 = vpop.f32.mrf.mxu0
        %v6756 = vadd.f32 %v6643, %v6755
        %v6757 = vpop.f32.mrf.mxu0
        %v6758 = vadd.f32 %v6645, %v6757
        %v6759 = vpop.f32.mrf.mxu0
        %v6760 = vadd.f32 %v6647, %v6759
        %6761 = vmatprep.mubr.bf16.mxu0 %v5983
        %6762 = vmatmul.mubr.bf16.gmra.mxu0 %v5982
        %v6763 = vpop.f32.mrf.mxu0
        %v6764 = vadd.f32 %v6651, %v6763
        %v6765 = vpop.f32.mrf.mxu0
        %v6766 = vadd.f32 %v6653, %v6765
        %v6767 = vpop.f32.mrf.mxu0
        %v6768 = vadd.f32 %v6655, %v6767
        %v6769 = vpop.f32.mrf.mxu0
        %v6770 = vadd.f32 %v6657, %v6769
        %6771 = vmatprep.mubr.bf16.mxu0 %v5989
        %6772 = vmatmul.mubr.bf16.gmra.mxu0 %v5988
        %v6773 = vpop.f32.mrf.mxu0
        %v6774 = vadd.f32 %v6661, %v6773
        %v6775 = vpop.f32.mrf.mxu0
        %v6776 = vadd.f32 %v6663, %v6775
        %v6777 = vpop.f32.mrf.mxu0
        %v6778 = vadd.f32 %v6665, %v6777
        %v6779 = vpop.f32.mrf.mxu0
        %v6780 = vadd.f32 %v6667, %v6779
        %6781 = vmatprep.mubr.bf16.mxu0 %v5995
        %6782 = vmatmul.mubr.bf16.gmra.mxu0 %v5994
        %v6783 = vpop.f32.mrf.mxu0
        %v6784 = vadd.f32 %v6671, %v6783
        %v6785 = vpop.f32.mrf.mxu0
        %v6786 = vadd.f32 %v6673, %v6785
        %v6787 = vpop.f32.mrf.mxu0
        %v6788 = vadd.f32 %v6675, %v6787
        %v6789 = vpop.f32.mrf.mxu0
        %v6790 = vadd.f32 %v6677, %v6789
        %6791 = vmatprep.mubr.bf16.mxu0 %v6001
        %6792 = vmatmul.mubr.bf16.gmra.mxu0 %v6000
        %v6793 = vpop.f32.mrf.mxu0
        %v6794 = vadd.f32 %v6681, %v6793
        %v6795 = vpop.f32.mrf.mxu0
        %v6796 = vadd.f32 %v6683, %v6795
        %v6797 = vpop.f32.mrf.mxu0
        %v6798 = vadd.f32 %v6685, %v6797
        %v6799 = vpop.f32.mrf.mxu0
        %v6800 = vadd.f32 %v6687, %v6799
        %6801 = vmatprep.mubr.bf16.mxu0 %v6007
        %6802 = vmatmul.mubr.bf16.gmra.mxu0 %v6006
        %v6803 = vpop.f32.mrf.mxu0
        %v6804 = vadd.f32 %v6691, %v6803
        %v6805 = vpop.f32.mrf.mxu0
        %v6806 = vadd.f32 %v6693, %v6805
        %v6807 = vpop.f32.mrf.mxu0
        %v6808 = vadd.f32 %v6695, %v6807
        %v6809 = vpop.f32.mrf.mxu0
        %v6810 = vadd.f32 %v6697, %v6809
        %6811 = vdwg.mxu0
        %6812 = vmatprep.subr.bf16.mxu0 %v6473
        %6813 = vmatpush1.bf16.msra.mxu0 %v6472
        %6814 = vmatprep.subr.bf16.mxu0 %v6471
        %6815 = vmatpush1.bf16.msra.mxu0 %v6470
        %6816 = vmatprep.subr.bf16.mxu0 %v6469
        %6817 = vmatpush1.bf16.msra.mxu0 %v6468
        %6818 = vmatprep.subr.bf16.mxu0 %v6467
        %6819 = vmatpush1.bf16.msra.mxu0 %v6466
        %6820 = vmatprep.subr.bf16.mxu0 %v6465
        %6821 = vmatpush1.bf16.msra.mxu0 %v6464
        %6822 = vmatprep.subr.bf16.mxu0 %v6463
        %6823 = vmatpush1.bf16.msra.mxu0 %v6462
        %6824 = vmatprep.subr.bf16.mxu0 %v6461
        %6825 = vmatpush1.bf16.msra.mxu0 %v6460
        %6826 = vmatprep.subr.bf16.mxu0 %v6459
        %6827 = vmatpush1.bf16.msra.mxu0 %v6458
        %6828 = vmatprep.subr.bf16.mxu0 %v6489
        %6829 = vmatpush2.bf16.msra.mxu0 %v6488
        %6830 = vmatprep.subr.bf16.mxu0 %v6487
        %6831 = vmatpush2.bf16.msra.mxu0 %v6486
        %6832 = vmatprep.subr.bf16.mxu0 %v6485
        %6833 = vmatpush2.bf16.msra.mxu0 %v6484
        %6834 = vmatprep.subr.bf16.mxu0 %v6483
        %6835 = vmatpush2.bf16.msra.mxu0 %v6482
        %6836 = vmatprep.subr.bf16.mxu0 %v6481
        %6837 = vmatpush2.bf16.msra.mxu0 %v6480
        %6838 = vmatprep.subr.bf16.mxu0 %v6479
        %6839 = vmatpush2.bf16.msra.mxu0 %v6478
        %6840 = vmatprep.subr.bf16.mxu0 %v6477
        %6841 = vmatpush2.bf16.msra.mxu0 %v6476
        %6842 = vmatprep.subr.bf16.mxu0 %v6475
        %6843 = vmatpush2.bf16.msra.mxu0 %v6474
        %6844 = vmatprep.mubr.bf16.mxu0 %v5967
        %6845 = vmatmul.mubr.bf16.gmra.mxu0 %v5966
        %v6846 = vpop.f32.mrf.mxu0
        %v6847 = vadd.f32 %v6734, %v6846
        %v6848 = vpop.f32.mrf.mxu0
        %v6849 = vadd.f32 %v6736, %v6848
        %v6850 = vpop.f32.mrf.mxu0
        %v6851 = vadd.f32 %v6738, %v6850
        %v6852 = vpop.f32.mrf.mxu0
        %v6853 = vadd.f32 %v6740, %v6852
        %6854 = vmatprep.mubr.bf16.mxu0 %v5973
        %6855 = vmatmul.mubr.bf16.gmra.mxu0 %v5972
        %v6856 = vpop.f32.mrf.mxu0
        %v6857 = vadd.f32 %v6744, %v6856
        %v6858 = vpop.f32.mrf.mxu0
        %v6859 = vadd.f32 %v6746, %v6858
        %v6860 = vpop.f32.mrf.mxu0
        %v6861 = vadd.f32 %v6748, %v6860
        %v6862 = vpop.f32.mrf.mxu0
        %v6863 = vadd.f32 %v6750, %v6862
        %6864 = vmatprep.mubr.bf16.mxu0 %v5979
        %6865 = vmatmul.mubr.bf16.gmra.mxu0 %v5978
        %v6866 = vpop.f32.mrf.mxu0
        %v6867 = vadd.f32 %v6754, %v6866
        %v6868 = vpop.f32.mrf.mxu0
        %v6869 = vadd.f32 %v6756, %v6868
        %v6870 = vpop.f32.mrf.mxu0
        %v6871 = vadd.f32 %v6758, %v6870
        %v6872 = vpop.f32.mrf.mxu0
        %v6873 = vadd.f32 %v6760, %v6872
        %6874 = vmatprep.mubr.bf16.mxu0 %v5985
        %6875 = vmatmul.mubr.bf16.gmra.mxu0 %v5984
        %v6876 = vpop.f32.mrf.mxu0
        %v6877 = vadd.f32 %v6764, %v6876
        %v6878 = vpop.f32.mrf.mxu0
        %v6879 = vadd.f32 %v6766, %v6878
        %v6880 = vpop.f32.mrf.mxu0
        %v6881 = vadd.f32 %v6768, %v6880
        %v6882 = vpop.f32.mrf.mxu0
        %v6883 = vadd.f32 %v6770, %v6882
        %6884 = vmatprep.mubr.bf16.mxu0 %v5991
        %6885 = vmatmul.mubr.bf16.gmra.mxu0 %v5990
        %v6886 = vpop.f32.mrf.mxu0
        %v6887 = vadd.f32 %v6774, %v6886
        %v6888 = vpop.f32.mrf.mxu0
        %v6889 = vadd.f32 %v6776, %v6888
        %v6890 = vpop.f32.mrf.mxu0
        %v6891 = vadd.f32 %v6778, %v6890
        %v6892 = vpop.f32.mrf.mxu0
        %v6893 = vadd.f32 %v6780, %v6892
        %6894 = vmatprep.mubr.bf16.mxu0 %v5997
        %6895 = vmatmul.mubr.bf16.gmra.mxu0 %v5996
        %v6896 = vpop.f32.mrf.mxu0
        %v6897 = vadd.f32 %v6784, %v6896
        %v6898 = vpop.f32.mrf.mxu0
        %v6899 = vadd.f32 %v6786, %v6898
        %v6900 = vpop.f32.mrf.mxu0
        %v6901 = vadd.f32 %v6788, %v6900
        %v6902 = vpop.f32.mrf.mxu0
        %v6903 = vadd.f32 %v6790, %v6902
        %6904 = vmatprep.mubr.bf16.mxu0 %v6003
        %6905 = vmatmul.mubr.bf16.gmra.mxu0 %v6002
        %v6906 = vpop.f32.mrf.mxu0
        %v6907 = vadd.f32 %v6794, %v6906
        %v6908 = vpop.f32.mrf.mxu0
        %v6909 = vadd.f32 %v6796, %v6908
        %v6910 = vpop.f32.mrf.mxu0
        %v6911 = vadd.f32 %v6798, %v6910
        %v6912 = vpop.f32.mrf.mxu0
        %v6913 = vadd.f32 %v6800, %v6912
        %6914 = vmatprep.mubr.bf16.mxu0 %v6009
        %6915 = vmatmul.mubr.bf16.gmra.mxu0 %v6008
        %v6916 = vpop.f32.mrf.mxu0
        %v6917 = vadd.f32 %v6804, %v6916
        %v6918 = vpop.f32.mrf.mxu0
        %v6919 = vadd.f32 %v6806, %v6918
        %v6920 = vpop.f32.mrf.mxu0
        %v6921 = vadd.f32 %v6808, %v6920
        %v6922 = vpop.f32.mrf.mxu0
        %v6923 = vadd.f32 %v6810, %v6922
        %6924 = vdwg.mxu0
        %v6925 = vadd.f32 %v4771, %v6847
        %v6926 = vadd.f32 %v4773, %v6849
        %v6927 = vadd.f32 %v4775, %v6851
        %v6928 = vadd.f32 %v4777, %v6853
        %v6929 = vadd.f32 %v4781, %v6857
        %v6930 = vadd.f32 %v4783, %v6859
        %v6931 = vadd.f32 %v4785, %v6861
        %v6932 = vadd.f32 %v4787, %v6863
        %v6933 = vadd.f32 %v4791, %v6867
        %v6934 = vadd.f32 %v4793, %v6869
        %v6935 = vadd.f32 %v4795, %v6871
        %v6936 = vadd.f32 %v4797, %v6873
        %v6937 = vadd.f32 %v4801, %v6877
        %v6938 = vadd.f32 %v4803, %v6879
        %v6939 = vadd.f32 %v4805, %v6881
        %v6940 = vadd.f32 %v4807, %v6883
        %v6941 = vadd.f32 %v4811, %v6887
        %v6942 = vadd.f32 %v4813, %v6889
        %v6943 = vadd.f32 %v4815, %v6891
        %v6944 = vadd.f32 %v4817, %v6893
        %v6945 = vadd.f32 %v4821, %v6897
        %v6946 = vadd.f32 %v4823, %v6899
        %v6947 = vadd.f32 %v4825, %v6901
        %v6948 = vadd.f32 %v4827, %v6903
        %v6949 = vadd.f32 %v4831, %v6907
        %v6950 = vadd.f32 %v4833, %v6909
        %v6951 = vadd.f32 %v4835, %v6911
        %v6952 = vadd.f32 %v4837, %v6913
        %v6953 = vadd.f32 %v4841, %v6917
        %v6954 = vadd.f32 %v4843, %v6919
        %v6955 = vadd.f32 %v4845, %v6921
        %v6956 = vadd.f32 %v4847, %v6923
        %6957 = vst [vmem:[%s452] sm:$0xff] %v6925
        %6958 = vst [vmem:[%s452 + $0x8] sm:$0xff] %v6926
        %6959 = vst [vmem:[%s452 + $0x10] sm:$0xff] %v6927
        %6960 = vst [vmem:[%s452 + $0x18] sm:$0xff] %v6928
        %6961 = vst [vmem:[%s452 + $0x20] sm:$0xff] %v6929
        %6962 = vst [vmem:[%s452 + $0x28] sm:$0xff] %v6930
        %6963 = vst [vmem:[%s452 + $0x30] sm:$0xff] %v6931
        %6964 = vst [vmem:[%s452 + $0x38] sm:$0xff] %v6932
        %6965 = vst [vmem:[%s452 + $0x40] sm:$0xff] %v6933
        %6966 = vst [vmem:[%s452 + $0x48] sm:$0xff] %v6934
        %6967 = vst [vmem:[%s452 + $0x50] sm:$0xff] %v6935
        %6968 = vst [vmem:[%s452 + $0x58] sm:$0xff] %v6936
        %6969 = vst [vmem:[%s452 + $0x60] sm:$0xff] %v6937
        %6970 = vst [vmem:[%s452 + $0x68] sm:$0xff] %v6938
        %6971 = vst [vmem:[%s452 + $0x70] sm:$0xff] %v6939
        %6972 = vst [vmem:[%s452 + $0x78] sm:$0xff] %v6940
        %6973 = vst [vmem:[%s452 + $0x80] sm:$0xff] %v6941
        %6974 = vst [vmem:[%s452 + $0x88] sm:$0xff] %v6942
        %6975 = vst [vmem:[%s452 + $0x90] sm:$0xff] %v6943
        %6976 = vst [vmem:[%s452 + $0x98] sm:$0xff] %v6944
        %6977 = vst [vmem:[%s452 + $0xa0] sm:$0xff] %v6945
        %6978 = vst [vmem:[%s452 + $0xa8] sm:$0xff] %v6946
        %6979 = vst [vmem:[%s452 + $0xb0] sm:$0xff] %v6947
        %6980 = vst [vmem:[%s452 + $0xb8] sm:$0xff] %v6948
        %6981 = vst [vmem:[%s452 + $0xc0] sm:$0xff] %v6949
        %6982 = vst [vmem:[%s452 + $0xc8] sm:$0xff] %v6950
        %6983 = vst [vmem:[%s452 + $0xd0] sm:$0xff] %v6951
        %6984 = vst [vmem:[%s452 + $0xd8] sm:$0xff] %v6952
        %6985 = vst [vmem:[%s452 + $0xe0] sm:$0xff] %v6953
        %6986 = vst [vmem:[%s452 + $0xe8] sm:$0xff] %v6954
        %6987 = vst [vmem:[%s452 + $0xf0] sm:$0xff] %v6955
        %6988 = vst [vmem:[%s452 + $0xf8] sm:$0xff] %v6956
        %s6989 = sand.u32 %s229, 1
        %s6990 = scalar_lea.sflag [#allocation5], %s6989
        %s6991 = sand.u32 %s229, 1
        %s6992 = smul.addr %s6991, 256
        %s6993 = scalar_lea.vmem [#allocation15], %s6992
        // Predicated region
        $region85: #{_fused_forward.1} parent=47 // pred_check
          %p6994 = pneg %p239
        $region86: #{_fused_forward.1} parent=47 // pred_check_branch
          %6996 = sbr.rel (%p6994) target = $region88
        $region87: #{_fused_forward.1} parent=47 // pred_region
          %s6997 = smul.u32 16, %s34
          %s6999 = ssub.s32 4096, 4096
          %7000 = vsyncadd %s6990, %s6999
          %s7001 = smul.addr %s6997, 2
          %s7002 = smul.addr %s33, 32
          %s7003 = sadd.s32 %s7001, %s7002
          %s7004 = smul.addr %s7003, 128
          %s7005 = scalar_lea.hbm %s7, %s7004
          %s7006 = sshll.u32 %s6993, 4
          %s7007 = int_to_ptr.vmem [resolvable:$true] %s7006
          %7012 = dma.vmem_to_hbm [thread:$0]  %s7007, 4096, %s7005, %s6990, 256, 256, 16
        $region88: #{_fused_forward.1} parent=47 // pred_fallthru
          _
      $region48: #{_fused_forward.1} parent=5 // pred_fallthru
        _
      %p7013 = scmp.le.s32.totalorder 2, %s24
      // Predicated region
      $region89: #{_fused_forward.1} parent=5 // pred_check
        %p7014 = pneg %p7013
      $region90: #{_fused_forward.1} parent=5 // pred_check_branch
        %7016 = sbr.rel (%p7014) target = $region92
      $region91: #{_fused_forward.1} parent=5 // pred_region
        %s7017 = ssub.s32 %s24, 2
        // Predicated region
        $region93: #{_fused_forward.1} parent=91 // pred_check
          %p7018 = pneg %p245
        $region94: #{_fused_forward.1} parent=91 // pred_check_branch
          %7020 = sbr.rel (%p7018) target = $region96
        $region95: #{_fused_forward.1} parent=91 // pred_region
          %s7021 = sand.u32 %s230, 1
          %s7022 = scalar_lea.sflag [#allocation5], %s7021
          %s7023 = sand.u32 %s230, 1
          %s7024 = smul.addr %s7023, 256
          %s7025 = scalar_lea.vmem [#allocation15], %s7024
          %7026 = dma.done %s7022, 4096
        $region96: #{_fused_forward.1} parent=91 // pred_fallthru
          _
      $region92: #{_fused_forward.1} parent=5 // pred_fallthru
        _
    $region6: #{_fused_forward.1} parent=1 // loop_footer
      %s28 = sadd.s32 1, %s24
    $region7: #{_fused_forward.1} parent=1 // loop_footer_branch
      %23 = sbr.rel target = $region3
    $region8: #{_fused_forward.1} parent=1 // loop_exit
      _
    %7027 = vsyncpa [#allocation4], 1
    %s7028 = scalar_lea.sflag [#allocation4], 1
    %7029 = vsyncpa %s7028, 1
    %7030 = vsyncpa [#allocation7], 1
    %s7031 = scalar_lea.sflag [#allocation7], 1
    %7032 = vsyncpa %s7031, 1
    %7033 = vsyncpa [#allocation10], 1
    %7034 = vsyncpa [#allocation13], 1
    %7035 = vsyncpa [#allocation5], 1
    %s7036 = scalar_lea.sflag [#allocation5], 1
    %7037 = vsyncpa %s7036, 1

</llo_original>
